<compile_context>
chip_gen: v7x
topology: tpu7x:2x2x1
jax: 0.10.0
libtpu: 0.0.40
codegen_flags: <defaults>
</compile_context>

<pallas_src>
import math

import jax
import jax.numpy as jnp
from jax.experimental import pallas as pl
from jax.experimental.pallas import tpu as pltpu

# ---------------- small-BERT config (structurally bert-base-like) -----------
B, S = 2, 8            # batch, sequence
H = 128                # hidden size
N_HEADS = 2
HEAD_DIM = H // N_HEADS
INTER = 256            # FFN intermediate size
N_LAYERS = 2
VOCAB = 64
MAX_POS = 32
TYPE_VOCAB = 2
CLASSNUM = 8
LN_EPS = 1e-12
M = B * S              # rows of the activation slab


# ----------------------------- fused kernel ---------------------------------
def _layernorm(x, g, b):
    mean = jnp.mean(x, axis=-1, keepdims=True)
    c = x - mean
    var = jnp.mean(c * c, axis=-1, keepdims=True)
    return c * jax.lax.rsqrt(var + LN_EPS) * g + b


def _gelu(y):
    # TODO(synk): HF BERT uses exact erf-GELU; tanh approximation used here.
    return 0.5 * y * (1.0 + jnp.tanh(0.7978845608028654 * (y + 0.044715 * y * y * y)))


def _bert_fused_kernel(
    emb_ref, emb_g_ref, emb_b_ref,
    wqkv_ref, bqkv_ref, wo_ref, bo_ref, ln1g_ref, ln1b_ref,
    wi_ref, bi_ref, wo2_ref, bo2_ref, ln2g_ref, ln2b_ref,
    clsw_ref, clsb_ref,
    out_ref,
    ctx_ref,            # VMEM scratch (M, H): merged-heads context
):
    # ---- embedding LayerNorm (no residual, no zeros tensor) ----
    x = _layernorm(emb_ref[...], emb_g_ref[...], emb_b_ref[...])

    # ---- transformer encoder layers (statically unrolled) ----
    for l in range(N_LAYERS):
        # fused QKV projection: one (M,H) @ (H,3H) MXU pass.
        # (1/sqrt(head_dim) scale is pre-folded into the Q columns/bias.)
        qkv = jnp.dot(x, wqkv_ref[l], preferred_element_type=jnp.float32) + bqkv_ref[l]
        q = qkv[:, 0 * H:1 * H]
        k = qkv[:, 1 * H:2 * H]
        v = qkv[:, 2 * H:3 * H]

        # per-(batch, head) attention, fully unrolled (B*N_HEADS = 4 tiny tiles);
        # heads are contiguous 64-lane column slices -> no transposes needed.
        for b in range(B):
            r0, r1 = b * S, (b + 1) * S
            for h in range(N_HEADS):
                c0, c1 = h * HEAD_DIM, (h + 1) * HEAD_DIM
                qh = q[r0:r1, c0:c1]
                kh = k[r0:r1, c0:c1]
                vh = v[r0:r1, c0:c1]
                s = jnp.dot(qh, kh.T, preferred_element_type=jnp.float32)
                s = s - jnp.max(s, axis=-1, keepdims=True)
                p = jnp.exp(s)
                inv = pl.reciprocal(jnp.sum(p, axis=-1, keepdims=True), approx=True)
                ctx_ref[r0:r1, c0:c1] = jnp.dot(
                    p * inv, vh, preferred_element_type=jnp.float32)

        # attention output projection + residual + LayerNorm
        attn = jnp.dot(ctx_ref[...], wo_ref[l],
                       preferred_element_type=jnp.float32) + bo_ref[l]
        x = _layernorm(attn + x, ln1g_ref[l], ln1b_ref[l])

        # FFN (GELU) + residual + LayerNorm
        h1 = _gelu(jnp.dot(x, wi_ref[l],
                           preferred_element_type=jnp.float32) + bi_ref[l])
        h2 = jnp.dot(h1, wo2_ref[l],
                     preferred_element_type=jnp.float32) + bo2_ref[l]
        x = _layernorm(h2 + x, ln2g_ref[l], ln2b_ref[l])

    # ---- classifier + argmax (done in-kernel; first-max-index semantics) ----
    logits = jnp.dot(x, clsw_ref[...],
                     preferred_element_type=jnp.float32) + clsb_ref[...]
    mx = jnp.max(logits, axis=-1, keepdims=True)
    idx = jax.lax.broadcasted_iota(jnp.int32, logits.shape, 1)
    cand = jnp.where(logits == mx, idx, CLASSNUM)
    out_ref[...] = jnp.min(cand, axis=-1, keepdims=True).astype(jnp.int32)


# ------------------------------ parameters ----------------------------------
def init_params(key):
    def nrm(k, shape):
        return jax.random.normal(k, shape, jnp.float32) * 0.02

    keys = jax.random.split(key, 5 + N_LAYERS)
    params = {
        "word_emb": nrm(keys[0], (VOCAB, H)),
        "pos_emb": nrm(keys[1], (MAX_POS, H)),
        "type_emb": nrm(keys[2], (TYPE_VOCAB, H)),
        "emb_ln_g": jnp.ones((H,), jnp.float32),
        "emb_ln_b": jnp.zeros((H,), jnp.float32),
        "pool_w": nrm(keys[3], (H, H)),          # pooler (unused in argmax path)
        "pool_b": jnp.zeros((H,), jnp.float32),
        "cls_w": nrm(keys[4], (H, CLASSNUM)),
        "cls_b": jnp.zeros((CLASSNUM,), jnp.float32),
        "layers": [],
    }
    for l in range(N_LAYERS):
        lk = jax.random.split(keys[5 + l], 6)
        params["layers"].append({
            "wq": nrm(lk[0], (H, H)), "bq": jnp.zeros((H,), jnp.float32),
            "wk": nrm(lk[1], (H, H)), "bk": jnp.zeros((H,), jnp.float32),
            "wv": nrm(lk[2], (H, H)), "bv": jnp.zeros((H,), jnp.float32),
            "wo": nrm(lk[3], (H, H)), "bo": jnp.zeros((H,), jnp.float32),
            "ln1_g": jnp.ones((H,), jnp.float32), "ln1_b": jnp.zeros((H,), jnp.float32),
            "wi": nrm(lk[4], (H, INTER)), "bi": jnp.zeros((INTER,), jnp.float32),
            "wo2": nrm(lk[5], (INTER, H)), "bo2": jnp.zeros((H,), jnp.float32),
            "ln2_g": jnp.ones((H,), jnp.float32), "ln2_b": jnp.zeros((H,), jnp.float32),
        })
    return params


def _pack_params(params):
    """Stack per-layer weights and pre-fold the attention scale into Q."""
    scale = 1.0 / math.sqrt(HEAD_DIM)
    cols = {k: [] for k in ("wqkv", "bqkv", "wo", "bo", "ln1g", "ln1b",
                            "wi", "bi", "wo2", "bo2", "ln2g", "ln2b")}
    for lyr in params["layers"]:
        cols["wqkv"].append(jnp.concatenate(
            [lyr["wq"] * scale, lyr["wk"], lyr["wv"]], axis=1))
        cols["bqkv"].append(jnp.concatenate(
            [lyr["bq"] * scale, lyr["bk"], lyr["bv"]], axis=0)[None, :])
        cols["wo"].append(lyr["wo"]);   cols["bo"].append(lyr["bo"][None, :])
        cols["ln1g"].append(lyr["ln1_g"][None, :])
        cols["ln1b"].append(lyr["ln1_b"][None, :])
        cols["wi"].append(lyr["wi"]);   cols["bi"].append(lyr["bi"][None, :])
        cols["wo2"].append(lyr["wo2"]); cols["bo2"].append(lyr["bo2"][None, :])
        cols["ln2g"].append(lyr["ln2_g"][None, :])
        cols["ln2b"].append(lyr["ln2_b"][None, :])
    return {k: jnp.stack(v, axis=0) for k, v in cols.items()}


# ------------------------------ forward pass ---------------------------------
def bert_model_forward(params, batchdata):
    """Equivalent of BertModel.forward(batchdata)  (batchlabel=None path)."""
    Bsz, Seq = batchdata.shape

    # Embedding gathers (token/pos/type sum) kept in JAX glue; everything else
    # runs inside a single fused Pallas kernel with weights resident in VMEM.
    word = jnp.take(params["word_emb"], batchdata, axis=0)             # (B,S,H)
    pos = params["pos_emb"][:Seq]                                      # (S,H)
    typ = params["type_emb"][0]                                        # (H,)
    emb = (word + pos[None, :, :] + typ[None, None, :]).reshape(Bsz * Seq, H)

    p = _pack_params(params)

    out = pl.pallas_call(
        _bert_fused_kernel,
        out_shape=jax.ShapeDtypeStruct((Bsz * Seq, 1), jnp.int32),
        scratch_shapes=[pltpu.VMEM((Bsz * Seq, H), jnp.float32)],
    )(
        emb,
        params["emb_ln_g"][None, :], params["emb_ln_b"][None, :],
        p["wqkv"], p["bqkv"], p["wo"], p["bo"], p["ln1g"], p["ln1b"],
        p["wi"], p["bi"], p["wo2"], p["bo2"], p["ln2g"], p["ln2b"],
        params["cls_w"], params["cls_b"][None, :],
    )
    # NOTE: pooler output (bertOut[1]) is unused in the batchlabel=None path,
    # so it is not computed (dead work elimination).
    return out.reshape(Bsz, Seq)                                        # (B,S) int32


# ----------------------------------- main ------------------------------------
if __name__ == "__main__":
    root = jax.random.PRNGKey(0)
    k_params, k_ids = jax.random.split(root)
    params = init_params(k_params)
    batchdata = jax.random.randint(k_ids, (B, S), 0, VOCAB, dtype=jnp.int32)

    out = jax.jit(bert_model_forward)(params, batchdata)
    out = jax.block_until_ready(out)

    assert out.shape == (B, S)
    assert out.dtype in (jnp.int32, jnp.int64)
    assert bool(jnp.all((out >= 0) & (out < CLASSNUM)))
    print("KERNEL_OK")
</pallas_src>

<mosaic_0001>
module attributes {stable_mosaic.version = 11 : i64} {
  func.func @_bert_fused_kernel(%arg0: memref<16x128xf32, #tpu.memory_space<vmem>>, %arg1: memref<1x128xf32, #tpu.memory_space<vmem>>, %arg2: memref<1x128xf32, #tpu.memory_space<vmem>>, %arg3: memref<2x128x384xf32, #tpu.memory_space<vmem>>, %arg4: memref<2x1x384xf32, #tpu.memory_space<vmem>>, %arg5: memref<2x128x128xf32, #tpu.memory_space<vmem>>, %arg6: memref<2x1x128xf32, #tpu.memory_space<vmem>>, %arg7: memref<2x1x128xf32, #tpu.memory_space<vmem>>, %arg8: memref<2x1x128xf32, #tpu.memory_space<vmem>>, %arg9: memref<2x128x256xf32, #tpu.memory_space<vmem>>, %arg10: memref<2x1x256xf32, #tpu.memory_space<vmem>>, %arg11: memref<2x256x128xf32, #tpu.memory_space<vmem>>, %arg12: memref<2x1x128xf32, #tpu.memory_space<vmem>>, %arg13: memref<2x1x128xf32, #tpu.memory_space<vmem>>, %arg14: memref<2x1x128xf32, #tpu.memory_space<vmem>>, %arg15: memref<128x8xf32, #tpu.memory_space<vmem>>, %arg16: memref<1x8xf32, #tpu.memory_space<vmem>>, %arg17: memref<16x1xi32, #tpu.memory_space<vmem>>, %arg18: memref<16x128xf32, #tpu.memory_space<vmem>>) attributes {dimension_semantics = [], scalar_prefetch = 0 : i64, scratch_operands = 1 : i64, tpu.core_type = #tpu.core_type<tc>} {
    %c0 = arith.constant 0 : index
    %c0_0 = arith.constant 0 : index
    %0 = vector.load %arg0[%c0, %c0_0] : memref<16x128xf32, #tpu.memory_space<vmem>>, vector<16x128xf32>
    %c0_1 = arith.constant 0 : index
    %c0_2 = arith.constant 0 : index
    %1 = vector.load %arg1[%c0_1, %c0_2] : memref<1x128xf32, #tpu.memory_space<vmem>>, vector<1x128xf32>
    %c0_3 = arith.constant 0 : index
    %c0_4 = arith.constant 0 : index
    %2 = vector.load %arg2[%c0_3, %c0_4] : memref<1x128xf32, #tpu.memory_space<vmem>>, vector<1x128xf32>
    %cst = arith.constant dense<0.000000e+00> : vector<16xf32>
    %3 = vector.multi_reduction <add>, %0, %cst [1] : vector<16x128xf32> to vector<16xf32>
    %4 = vector.shape_cast %3 : vector<16xf32> to vector<16x1xf32>
    %cst_5 = arith.constant 1.280000e+02 : f32
    %5 = vector.broadcast %cst_5 : f32 to vector<16x1xf32>
    %6 = arith.divf %4, %5 : vector<16x1xf32>
    %7 = vector.broadcast %6 : vector<16x1xf32> to vector<16x128xf32>
    %8 = arith.subf %0, %7 : vector<16x128xf32>
    %9 = arith.mulf %8, %8 : vector<16x128xf32>
    %cst_6 = arith.constant dense<0.000000e+00> : vector<16xf32>
    %10 = vector.multi_reduction <add>, %9, %cst_6 [1] : vector<16x128xf32> to vector<16xf32>
    %11 = vector.shape_cast %10 : vector<16xf32> to vector<16x1xf32>
    %cst_7 = arith.constant 1.280000e+02 : f32
    %12 = vector.broadcast %cst_7 : f32 to vector<16x1xf32>
    %13 = arith.divf %11, %12 : vector<16x1xf32>
    %cst_8 = arith.constant 9.99999996E-13 : f32
    %14 = vector.broadcast %cst_8 : f32 to vector<16x1xf32>
    %15 = arith.addf %13, %14 : vector<16x1xf32>
    %16 = math.rsqrt %15 : vector<16x1xf32>
    %17 = vector.broadcast %16 : vector<16x1xf32> to vector<16x128xf32>
    %18 = arith.mulf %8, %17 : vector<16x128xf32>
    %19 = vector.broadcast %1 : vector<1x128xf32> to vector<16x128xf32>
    %20 = arith.mulf %18, %19 : vector<16x128xf32>
    %21 = vector.broadcast %2 : vector<1x128xf32> to vector<16x128xf32>
    %22 = arith.addf %20, %21 : vector<16x128xf32>
    %c0_9 = arith.constant 0 : index
    %c0_10 = arith.constant 0 : index
    %c0_11 = arith.constant 0 : index
    %23 = vector.load %arg3[%c0_9, %c0_10, %c0_11] : memref<2x128x384xf32, #tpu.memory_space<vmem>>, vector<1x128x384xf32>
    %24 = vector.shape_cast %23 : vector<1x128x384xf32> to vector<128x384xf32>
    %cst_12 = arith.constant dense<0.000000e+00> : vector<16x384xf32>
    %25 = tpu.matmul %22, %24, %cst_12 {dimension_numbers = #tpu.dot_dimension_numbers<[1], [0], [0], [1], [0, 0, 1, 1], [], []>} : vector<16x128xf32>, vector<128x384xf32>, vector<16x384xf32> -> vector<16x384xf32>
    %c0_13 = arith.constant 0 : index
    %c0_14 = arith.constant 0 : index
    %c0_15 = arith.constant 0 : index
    %26 = vector.load %arg4[%c0_13, %c0_14, %c0_15] : memref<2x1x384xf32, #tpu.memory_space<vmem>>, vector<1x1x384xf32>
    %27 = vector.shape_cast %26 : vector<1x1x384xf32> to vector<1x384xf32>
    %28 = vector.broadcast %27 : vector<1x384xf32> to vector<16x384xf32>
    %29 = arith.addf %25, %28 : vector<16x384xf32>
    %30 = vector.extract_strided_slice %29 {offsets = [0, 0], sizes = [16, 128], strides = [1, 1]} : vector<16x384xf32> to vector<16x128xf32>
    %31 = vector.extract_strided_slice %29 {offsets = [0, 128], sizes = [16, 128], strides = [1, 1]} : vector<16x384xf32> to vector<16x128xf32>
    %32 = vector.extract_strided_slice %29 {offsets = [0, 256], sizes = [16, 128], strides = [1, 1]} : vector<16x384xf32> to vector<16x128xf32>
    %33 = vector.extract_strided_slice %30 {offsets = [0, 0], sizes = [8, 64], strides = [1, 1]} : vector<16x128xf32> to vector<8x64xf32>
    %34 = vector.extract_strided_slice %31 {offsets = [0, 0], sizes = [8, 64], strides = [1, 1]} : vector<16x128xf32> to vector<8x64xf32>
    %35 = vector.extract_strided_slice %32 {offsets = [0, 0], sizes = [8, 64], strides = [1, 1]} : vector<16x128xf32> to vector<8x64xf32>
    %36 = tpu.transpose %34, [1, 0] : vector<8x64xf32> -> vector<64x8xf32>
    %cst_16 = arith.constant dense<0.000000e+00> : vector<8x8xf32>
    %37 = tpu.matmul %33, %36, %cst_16 {dimension_numbers = #tpu.dot_dimension_numbers<[1], [0], [0], [1], [0, 0, 1, 1], [], []>} : vector<8x64xf32>, vector<64x8xf32>, vector<8x8xf32> -> vector<8x8xf32>
    %cst_17 = arith.constant dense<0xFF800000> : vector<8xf32>
    %38 = vector.multi_reduction <maximumf>, %37, %cst_17 [1] : vector<8x8xf32> to vector<8xf32>
    %39 = vector.shape_cast %38 : vector<8xf32> to vector<8x1xf32>
    %40 = vector.broadcast %39 : vector<8x1xf32> to vector<8x8xf32>
    %41 = arith.subf %37, %40 : vector<8x8xf32>
    %42 = math.exp %41 : vector<8x8xf32>
    %cst_18 = arith.constant dense<0.000000e+00> : vector<8xf32>
    %43 = vector.multi_reduction <add>, %42, %cst_18 [1] : vector<8x8xf32> to vector<8xf32>
    %44 = vector.shape_cast %43 : vector<8xf32> to vector<8x1xf32>
    %45 = tpu.reciprocal %44 {approx = true} : vector<8x1xf32> -> vector<8x1xf32>
    %46 = vector.broadcast %45 : vector<8x1xf32> to vector<8x8xf32>
    %47 = arith.mulf %42, %46 : vector<8x8xf32>
    %cst_19 = arith.constant dense<0.000000e+00> : vector<8x64xf32>
    %48 = tpu.matmul %47, %35, %cst_19 {dimension_numbers = #tpu.dot_dimension_numbers<[1], [0], [0], [1], [0, 0, 1, 1], [], []>} : vector<8x8xf32>, vector<8x64xf32>, vector<8x64xf32> -> vector<8x64xf32>
    %c0_20 = arith.constant 0 : index
    %c0_21 = arith.constant 0 : index
    %49 = vector.load %arg18[%c0_20, %c0_21] : memref<16x128xf32, #tpu.memory_space<vmem>>, vector<8x64xf32>
    tpu.vector_store %arg18[%c0_20, %c0_21], %48 {strides = array<i32>} : memref<16x128xf32, #tpu.memory_space<vmem>>, vector<8x64xf32>,
    %50 = vector.extract_strided_slice %30 {offsets = [0, 64], sizes = [8, 64], strides = [1, 1]} : vector<16x128xf32> to vector<8x64xf32>
    %51 = vector.extract_strided_slice %31 {offsets = [0, 64], sizes = [8, 64], strides = [1, 1]} : vector<16x128xf32> to vector<8x64xf32>
    %52 = vector.extract_strided_slice %32 {offsets = [0, 64], sizes = [8, 64], strides = [1, 1]} : vector<16x128xf32> to vector<8x64xf32>
    %53 = tpu.transpose %51, [1, 0] : vector<8x64xf32> -> vector<64x8xf32>
    %cst_22 = arith.constant dense<0.000000e+00> : vector<8x8xf32>
    %54 = tpu.matmul %50, %53, %cst_22 {dimension_numbers = #tpu.dot_dimension_numbers<[1], [0], [0], [1], [0, 0, 1, 1], [], []>} : vector<8x64xf32>, vector<64x8xf32>, vector<8x8xf32> -> vector<8x8xf32>
    %cst_23 = arith.constant dense<0xFF800000> : vector<8xf32>
    %55 = vector.multi_reduction <maximumf>, %54, %cst_23 [1] : vector<8x8xf32> to vector<8xf32>
    %56 = vector.shape_cast %55 : vector<8xf32> to vector<8x1xf32>
    %57 = vector.broadcast %56 : vector<8x1xf32> to vector<8x8xf32>
    %58 = arith.subf %54, %57 : vector<8x8xf32>
    %59 = math.exp %58 : vector<8x8xf32>
    %cst_24 = arith.constant dense<0.000000e+00> : vector<8xf32>
    %60 = vector.multi_reduction <add>, %59, %cst_24 [1] : vector<8x8xf32> to vector<8xf32>
    %61 = vector.shape_cast %60 : vector<8xf32> to vector<8x1xf32>
    %62 = tpu.reciprocal %61 {approx = true} : vector<8x1xf32> -> vector<8x1xf32>
    %63 = vector.broadcast %62 : vector<8x1xf32> to vector<8x8xf32>
    %64 = arith.mulf %59, %63 : vector<8x8xf32>
    %cst_25 = arith.constant dense<0.000000e+00> : vector<8x64xf32>
    %65 = tpu.matmul %64, %52, %cst_25 {dimension_numbers = #tpu.dot_dimension_numbers<[1], [0], [0], [1], [0, 0, 1, 1], [], []>} : vector<8x8xf32>, vector<8x64xf32>, vector<8x64xf32> -> vector<8x64xf32>
    %c0_26 = arith.constant 0 : index
    %c64 = arith.constant 64 : index
    %66 = vector.load %arg18[%c0_26, %c64] : memref<16x128xf32, #tpu.memory_space<vmem>>, vector<8x64xf32>
    tpu.vector_store %arg18[%c0_26, %c64], %65 {strides = array<i32>} : memref<16x128xf32, #tpu.memory_space<vmem>>, vector<8x64xf32>,
    %67 = vector.extract_strided_slice %30 {offsets = [8, 0], sizes = [8, 64], strides = [1, 1]} : vector<16x128xf32> to vector<8x64xf32>
    %68 = vector.extract_strided_slice %31 {offsets = [8, 0], sizes = [8, 64], strides = [1, 1]} : vector<16x128xf32> to vector<8x64xf32>
    %69 = vector.extract_strided_slice %32 {offsets = [8, 0], sizes = [8, 64], strides = [1, 1]} : vector<16x128xf32> to vector<8x64xf32>
    %70 = tpu.transpose %68, [1, 0] : vector<8x64xf32> -> vector<64x8xf32>
    %cst_27 = arith.constant dense<0.000000e+00> : vector<8x8xf32>
    %71 = tpu.matmul %67, %70, %cst_27 {dimension_numbers = #tpu.dot_dimension_numbers<[1], [0], [0], [1], [0, 0, 1, 1], [], []>} : vector<8x64xf32>, vector<64x8xf32>, vector<8x8xf32> -> vector<8x8xf32>
    %cst_28 = arith.constant dense<0xFF800000> : vector<8xf32>
    %72 = vector.multi_reduction <maximumf>, %71, %cst_28 [1] : vector<8x8xf32> to vector<8xf32>
    %73 = vector.shape_cast %72 : vector<8xf32> to vector<8x1xf32>
    %74 = vector.broadcast %73 : vector<8x1xf32> to vector<8x8xf32>
    %75 = arith.subf %71, %74 : vector<8x8xf32>
    %76 = math.exp %75 : vector<8x8xf32>
    %cst_29 = arith.constant dense<0.000000e+00> : vector<8xf32>
    %77 = vector.multi_reduction <add>, %76, %cst_29 [1] : vector<8x8xf32> to vector<8xf32>
    %78 = vector.shape_cast %77 : vector<8xf32> to vector<8x1xf32>
    %79 = tpu.reciprocal %78 {approx = true} : vector<8x1xf32> -> vector<8x1xf32>
    %80 = vector.broadcast %79 : vector<8x1xf32> to vector<8x8xf32>
    %81 = arith.mulf %76, %80 : vector<8x8xf32>
    %cst_30 = arith.constant dense<0.000000e+00> : vector<8x64xf32>
    %82 = tpu.matmul %81, %69, %cst_30 {dimension_numbers = #tpu.dot_dimension_numbers<[1], [0], [0], [1], [0, 0, 1, 1], [], []>} : vector<8x8xf32>, vector<8x64xf32>, vector<8x64xf32> -> vector<8x64xf32>
    %c8 = arith.constant 8 : index
    %c0_31 = arith.constant 0 : index
    %83 = vector.load %arg18[%c8, %c0_31] : memref<16x128xf32, #tpu.memory_space<vmem>>, vector<8x64xf32>
    tpu.vector_store %arg18[%c8, %c0_31], %82 {strides = array<i32>} : memref<16x128xf32, #tpu.memory_space<vmem>>, vector<8x64xf32>,
    %84 = vector.extract_strided_slice %30 {offsets = [8, 64], sizes = [8, 64], strides = [1, 1]} : vector<16x128xf32> to vector<8x64xf32>
    %85 = vector.extract_strided_slice %31 {offsets = [8, 64], sizes = [8, 64], strides = [1, 1]} : vector<16x128xf32> to vector<8x64xf32>
    %86 = vector.extract_strided_slice %32 {offsets = [8, 64], sizes = [8, 64], strides = [1, 1]} : vector<16x128xf32> to vector<8x64xf32>
    %87 = tpu.transpose %85, [1, 0] : vector<8x64xf32> -> vector<64x8xf32>
    %cst_32 = arith.constant dense<0.000000e+00> : vector<8x8xf32>
    %88 = tpu.matmul %84, %87, %cst_32 {dimension_numbers = #tpu.dot_dimension_numbers<[1], [0], [0], [1], [0, 0, 1, 1], [], []>} : vector<8x64xf32>, vector<64x8xf32>, vector<8x8xf32> -> vector<8x8xf32>
    %cst_33 = arith.constant dense<0xFF800000> : vector<8xf32>
    %89 = vector.multi_reduction <maximumf>, %88, %cst_33 [1] : vector<8x8xf32> to vector<8xf32>
    %90 = vector.shape_cast %89 : vector<8xf32> to vector<8x1xf32>
    %91 = vector.broadcast %90 : vector<8x1xf32> to vector<8x8xf32>
    %92 = arith.subf %88, %91 : vector<8x8xf32>
    %93 = math.exp %92 : vector<8x8xf32>
    %cst_34 = arith.constant dense<0.000000e+00> : vector<8xf32>
    %94 = vector.multi_reduction <add>, %93, %cst_34 [1] : vector<8x8xf32> to vector<8xf32>
    %95 = vector.shape_cast %94 : vector<8xf32> to vector<8x1xf32>
    %96 = tpu.reciprocal %95 {approx = true} : vector<8x1xf32> -> vector<8x1xf32>
    %97 = vector.broadcast %96 : vector<8x1xf32> to vector<8x8xf32>
    %98 = arith.mulf %93, %97 : vector<8x8xf32>
    %cst_35 = arith.constant dense<0.000000e+00> : vector<8x64xf32>
    %99 = tpu.matmul %98, %86, %cst_35 {dimension_numbers = #tpu.dot_dimension_numbers<[1], [0], [0], [1], [0, 0, 1, 1], [], []>} : vector<8x8xf32>, vector<8x64xf32>, vector<8x64xf32> -> vector<8x64xf32>
    %c8_36 = arith.constant 8 : index
    %c64_37 = arith.constant 64 : index
    %100 = vector.load %arg18[%c8_36, %c64_37] : memref<16x128xf32, #tpu.memory_space<vmem>>, vector<8x64xf32>
    tpu.vector_store %arg18[%c8_36, %c64_37], %99 {strides = array<i32>} : memref<16x128xf32, #tpu.memory_space<vmem>>, vector<8x64xf32>,
    %c0_38 = arith.constant 0 : index
    %c0_39 = arith.constant 0 : index
    %101 = vector.load %arg18[%c0_38, %c0_39] : memref<16x128xf32, #tpu.memory_space<vmem>>, vector<16x128xf32>
    %c0_40 = arith.constant 0 : index
    %c0_41 = arith.constant 0 : index
    %c0_42 = arith.constant 0 : index
    %102 = vector.load %arg5[%c0_40, %c0_41, %c0_42] : memref<2x128x128xf32, #tpu.memory_space<vmem>>, vector<1x128x128xf32>
    %103 = vector.shape_cast %102 : vector<1x128x128xf32> to vector<128x128xf32>
    %cst_43 = arith.constant dense<0.000000e+00> : vector<16x128xf32>
    %104 = tpu.matmul %101, %103, %cst_43 {dimension_numbers = #tpu.dot_dimension_numbers<[1], [0], [0], [1], [0, 0, 1, 1], [], []>} : vector<16x128xf32>, vector<128x128xf32>, vector<16x128xf32> -> vector<16x128xf32>
    %c0_44 = arith.constant 0 : index
    %c0_45 = arith.constant 0 : index
    %c0_46 = arith.constant 0 : index
    %105 = vector.load %arg6[%c0_44, %c0_45, %c0_46] : memref<2x1x128xf32, #tpu.memory_space<vmem>>, vector<1x1x128xf32>
    %106 = vector.shape_cast %105 : vector<1x1x128xf32> to vector<1x128xf32>
    %107 = vector.broadcast %106 : vector<1x128xf32> to vector<16x128xf32>
    %108 = arith.addf %104, %107 : vector<16x128xf32>
    %109 = arith.addf %108, %22 : vector<16x128xf32>
    %c0_47 = arith.constant 0 : index
    %c0_48 = arith.constant 0 : index
    %c0_49 = arith.constant 0 : index
    %110 = vector.load %arg7[%c0_47, %c0_48, %c0_49] : memref<2x1x128xf32, #tpu.memory_space<vmem>>, vector<1x1x128xf32>
    %111 = vector.shape_cast %110 : vector<1x1x128xf32> to vector<1x128xf32>
    %c0_50 = arith.constant 0 : index
    %c0_51 = arith.constant 0 : index
    %c0_52 = arith.constant 0 : index
    %112 = vector.load %arg8[%c0_50, %c0_51, %c0_52] : memref<2x1x128xf32, #tpu.memory_space<vmem>>, vector<1x1x128xf32>
    %113 = vector.shape_cast %112 : vector<1x1x128xf32> to vector<1x128xf32>
    %cst_53 = arith.constant dense<0.000000e+00> : vector<16xf32>
    %114 = vector.multi_reduction <add>, %109, %cst_53 [1] : vector<16x128xf32> to vector<16xf32>
    %115 = vector.shape_cast %114 : vector<16xf32> to vector<16x1xf32>
    %cst_54 = arith.constant 1.280000e+02 : f32
    %116 = vector.broadcast %cst_54 : f32 to vector<16x1xf32>
    %117 = arith.divf %115, %116 : vector<16x1xf32>
    %118 = vector.broadcast %117 : vector<16x1xf32> to vector<16x128xf32>
    %119 = arith.subf %109, %118 : vector<16x128xf32>
    %120 = arith.mulf %119, %119 : vector<16x128xf32>
    %cst_55 = arith.constant dense<0.000000e+00> : vector<16xf32>
    %121 = vector.multi_reduction <add>, %120, %cst_55 [1] : vector<16x128xf32> to vector<16xf32>
    %122 = vector.shape_cast %121 : vector<16xf32> to vector<16x1xf32>
    %cst_56 = arith.constant 1.280000e+02 : f32
    %123 = vector.broadcast %cst_56 : f32 to vector<16x1xf32>
    %124 = arith.divf %122, %123 : vector<16x1xf32>
    %cst_57 = arith.constant 9.99999996E-13 : f32
    %125 = vector.broadcast %cst_57 : f32 to vector<16x1xf32>
    %126 = arith.addf %124, %125 : vector<16x1xf32>
    %127 = math.rsqrt %126 : vector<16x1xf32>
    %128 = vector.broadcast %127 : vector<16x1xf32> to vector<16x128xf32>
    %129 = arith.mulf %119, %128 : vector<16x128xf32>
    %130 = vector.broadcast %111 : vector<1x128xf32> to vector<16x128xf32>
    %131 = arith.mulf %129, %130 : vector<16x128xf32>
    %132 = vector.broadcast %113 : vector<1x128xf32> to vector<16x128xf32>
    %133 = arith.addf %131, %132 : vector<16x128xf32>
    %c0_58 = arith.constant 0 : index
    %c0_59 = arith.constant 0 : index
    %c0_60 = arith.constant 0 : index
    %134 = vector.load %arg9[%c0_58, %c0_59, %c0_60] : memref<2x128x256xf32, #tpu.memory_space<vmem>>, vector<1x128x256xf32>
    %135 = vector.shape_cast %134 : vector<1x128x256xf32> to vector<128x256xf32>
    %cst_61 = arith.constant dense<0.000000e+00> : vector<16x256xf32>
    %136 = tpu.matmul %133, %135, %cst_61 {dimension_numbers = #tpu.dot_dimension_numbers<[1], [0], [0], [1], [0, 0, 1, 1], [], []>} : vector<16x128xf32>, vector<128x256xf32>, vector<16x256xf32> -> vector<16x256xf32>
    %c0_62 = arith.constant 0 : index
    %c0_63 = arith.constant 0 : index
    %c0_64 = arith.constant 0 : index
    %137 = vector.load %arg10[%c0_62, %c0_63, %c0_64] : memref<2x1x256xf32, #tpu.memory_space<vmem>>, vector<1x1x256xf32>
    %138 = vector.shape_cast %137 : vector<1x1x256xf32> to vector<1x256xf32>
    %139 = vector.broadcast %138 : vector<1x256xf32> to vector<16x256xf32>
    %140 = arith.addf %136, %139 : vector<16x256xf32>
    %cst_65 = arith.constant 5.000000e-01 : f32
    %141 = vector.broadcast %cst_65 : f32 to vector<16x256xf32>
    %142 = arith.mulf %141, %140 : vector<16x256xf32>
    %cst_66 = arith.constant 4.471500e-02 : f32
    %143 = vector.broadcast %cst_66 : f32 to vector<16x256xf32>
    %144 = arith.mulf %143, %140 : vector<16x256xf32>
    %145 = arith.mulf %144, %140 : vector<16x256xf32>
    %146 = arith.mulf %145, %140 : vector<16x256xf32>
    %147 = arith.addf %140, %146 : vector<16x256xf32>
    %cst_67 = arith.constant 0.797884583 : f32
    %148 = vector.broadcast %cst_67 : f32 to vector<16x256xf32>
    %149 = arith.mulf %148, %147 : vector<16x256xf32>
    %150 = math.tanh %149 : vector<16x256xf32>
    %cst_68 = arith.constant 1.000000e+00 : f32
    %151 = vector.broadcast %cst_68 : f32 to vector<16x256xf32>
    %152 = arith.addf %151, %150 : vector<16x256xf32>
    %153 = arith.mulf %142, %152 : vector<16x256xf32>
    %c0_69 = arith.constant 0 : index
    %c0_70 = arith.constant 0 : index
    %c0_71 = arith.constant 0 : index
    %154 = vector.load %arg11[%c0_69, %c0_70, %c0_71] : memref<2x256x128xf32, #tpu.memory_space<vmem>>, vector<1x256x128xf32>
    %155 = vector.shape_cast %154 : vector<1x256x128xf32> to vector<256x128xf32>
    %cst_72 = arith.constant dense<0.000000e+00> : vector<16x128xf32>
    %156 = tpu.matmul %153, %155, %cst_72 {dimension_numbers = #tpu.dot_dimension_numbers<[1], [0], [0], [1], [0, 0, 1, 1], [], []>} : vector<16x256xf32>, vector<256x128xf32>, vector<16x128xf32> -> vector<16x128xf32>
    %c0_73 = arith.constant 0 : index
    %c0_74 = arith.constant 0 : index
    %c0_75 = arith.constant 0 : index
    %157 = vector.load %arg12[%c0_73, %c0_74, %c0_75] : memref<2x1x128xf32, #tpu.memory_space<vmem>>, vector<1x1x128xf32>
    %158 = vector.shape_cast %157 : vector<1x1x128xf32> to vector<1x128xf32>
    %159 = vector.broadcast %158 : vector<1x128xf32> to vector<16x128xf32>
    %160 = arith.addf %156, %159 : vector<16x128xf32>
    %161 = arith.addf %160, %133 : vector<16x128xf32>
    %c0_76 = arith.constant 0 : index
    %c0_77 = arith.constant 0 : index
    %c0_78 = arith.constant 0 : index
    %162 = vector.load %arg13[%c0_76, %c0_77, %c0_78] : memref<2x1x128xf32, #tpu.memory_space<vmem>>, vector<1x1x128xf32>
    %163 = vector.shape_cast %162 : vector<1x1x128xf32> to vector<1x128xf32>
    %c0_79 = arith.constant 0 : index
    %c0_80 = arith.constant 0 : index
    %c0_81 = arith.constant 0 : index
    %164 = vector.load %arg14[%c0_79, %c0_80, %c0_81] : memref<2x1x128xf32, #tpu.memory_space<vmem>>, vector<1x1x128xf32>
    %165 = vector.shape_cast %164 : vector<1x1x128xf32> to vector<1x128xf32>
    %cst_82 = arith.constant dense<0.000000e+00> : vector<16xf32>
    %166 = vector.multi_reduction <add>, %161, %cst_82 [1] : vector<16x128xf32> to vector<16xf32>
    %167 = vector.shape_cast %166 : vector<16xf32> to vector<16x1xf32>
    %cst_83 = arith.constant 1.280000e+02 : f32
    %168 = vector.broadcast %cst_83 : f32 to vector<16x1xf32>
    %169 = arith.divf %167, %168 : vector<16x1xf32>
    %170 = vector.broadcast %169 : vector<16x1xf32> to vector<16x128xf32>
    %171 = arith.subf %161, %170 : vector<16x128xf32>
    %172 = arith.mulf %171, %171 : vector<16x128xf32>
    %cst_84 = arith.constant dense<0.000000e+00> : vector<16xf32>
    %173 = vector.multi_reduction <add>, %172, %cst_84 [1] : vector<16x128xf32> to vector<16xf32>
    %174 = vector.shape_cast %173 : vector<16xf32> to vector<16x1xf32>
    %cst_85 = arith.constant 1.280000e+02 : f32
    %175 = vector.broadcast %cst_85 : f32 to vector<16x1xf32>
    %176 = arith.divf %174, %175 : vector<16x1xf32>
    %cst_86 = arith.constant 9.99999996E-13 : f32
    %177 = vector.broadcast %cst_86 : f32 to vector<16x1xf32>
    %178 = arith.addf %176, %177 : vector<16x1xf32>
    %179 = math.rsqrt %178 : vector<16x1xf32>
    %180 = vector.broadcast %179 : vector<16x1xf32> to vector<16x128xf32>
    %181 = arith.mulf %171, %180 : vector<16x128xf32>
    %182 = vector.broadcast %163 : vector<1x128xf32> to vector<16x128xf32>
    %183 = arith.mulf %181, %182 : vector<16x128xf32>
    %184 = vector.broadcast %165 : vector<1x128xf32> to vector<16x128xf32>
    %185 = arith.addf %183, %184 : vector<16x128xf32>
    %c1 = arith.constant 1 : index
    %c0_87 = arith.constant 0 : index
    %c0_88 = arith.constant 0 : index
    %186 = vector.load %arg3[%c1, %c0_87, %c0_88] : memref<2x128x384xf32, #tpu.memory_space<vmem>>, vector<1x128x384xf32>
    %187 = vector.shape_cast %186 : vector<1x128x384xf32> to vector<128x384xf32>
    %cst_89 = arith.constant dense<0.000000e+00> : vector<16x384xf32>
    %188 = tpu.matmul %185, %187, %cst_89 {dimension_numbers = #tpu.dot_dimension_numbers<[1], [0], [0], [1], [0, 0, 1, 1], [], []>} : vector<16x128xf32>, vector<128x384xf32>, vector<16x384xf32> -> vector<16x384xf32>
    %c1_90 = arith.constant 1 : index
    %c0_91 = arith.constant 0 : index
    %c0_92 = arith.constant 0 : index
    %189 = vector.load %arg4[%c1_90, %c0_91, %c0_92] : memref<2x1x384xf32, #tpu.memory_space<vmem>>, vector<1x1x384xf32>
    %190 = vector.shape_cast %189 : vector<1x1x384xf32> to vector<1x384xf32>
    %191 = vector.broadcast %190 : vector<1x384xf32> to vector<16x384xf32>
    %192 = arith.addf %188, %191 : vector<16x384xf32>
    %193 = vector.extract_strided_slice %192 {offsets = [0, 0], sizes = [16, 128], strides = [1, 1]} : vector<16x384xf32> to vector<16x128xf32>
    %194 = vector.extract_strided_slice %192 {offsets = [0, 128], sizes = [16, 128], strides = [1, 1]} : vector<16x384xf32> to vector<16x128xf32>
    %195 = vector.extract_strided_slice %192 {offsets = [0, 256], sizes = [16, 128], strides = [1, 1]} : vector<16x384xf32> to vector<16x128xf32>
    %196 = vector.extract_strided_slice %193 {offsets = [0, 0], sizes = [8, 64], strides = [1, 1]} : vector<16x128xf32> to vector<8x64xf32>
    %197 = vector.extract_strided_slice %194 {offsets = [0, 0], sizes = [8, 64], strides = [1, 1]} : vector<16x128xf32> to vector<8x64xf32>
    %198 = vector.extract_strided_slice %195 {offsets = [0, 0], sizes = [8, 64], strides = [1, 1]} : vector<16x128xf32> to vector<8x64xf32>
    %199 = tpu.transpose %197, [1, 0] : vector<8x64xf32> -> vector<64x8xf32>
    %cst_93 = arith.constant dense<0.000000e+00> : vector<8x8xf32>
    %200 = tpu.matmul %196, %199, %cst_93 {dimension_numbers = #tpu.dot_dimension_numbers<[1], [0], [0], [1], [0, 0, 1, 1], [], []>} : vector<8x64xf32>, vector<64x8xf32>, vector<8x8xf32> -> vector<8x8xf32>
    %cst_94 = arith.constant dense<0xFF800000> : vector<8xf32>
    %201 = vector.multi_reduction <maximumf>, %200, %cst_94 [1] : vector<8x8xf32> to vector<8xf32>
    %202 = vector.shape_cast %201 : vector<8xf32> to vector<8x1xf32>
    %203 = vector.broadcast %202 : vector<8x1xf32> to vector<8x8xf32>
    %204 = arith.subf %200, %203 : vector<8x8xf32>
    %205 = math.exp %204 : vector<8x8xf32>
    %cst_95 = arith.constant dense<0.000000e+00> : vector<8xf32>
    %206 = vector.multi_reduction <add>, %205, %cst_95 [1] : vector<8x8xf32> to vector<8xf32>
    %207 = vector.shape_cast %206 : vector<8xf32> to vector<8x1xf32>
    %208 = tpu.reciprocal %207 {approx = true} : vector<8x1xf32> -> vector<8x1xf32>
    %209 = vector.broadcast %208 : vector<8x1xf32> to vector<8x8xf32>
    %210 = arith.mulf %205, %209 : vector<8x8xf32>
    %cst_96 = arith.constant dense<0.000000e+00> : vector<8x64xf32>
    %211 = tpu.matmul %210, %198, %cst_96 {dimension_numbers = #tpu.dot_dimension_numbers<[1], [0], [0], [1], [0, 0, 1, 1], [], []>} : vector<8x8xf32>, vector<8x64xf32>, vector<8x64xf32> -> vector<8x64xf32>
    %c0_97 = arith.constant 0 : index
    %c0_98 = arith.constant 0 : index
    %212 = vector.load %arg18[%c0_97, %c0_98] : memref<16x128xf32, #tpu.memory_space<vmem>>, vector<8x64xf32>
    tpu.vector_store %arg18[%c0_97, %c0_98], %211 {strides = array<i32>} : memref<16x128xf32, #tpu.memory_space<vmem>>, vector<8x64xf32>,
    %213 = vector.extract_strided_slice %193 {offsets = [0, 64], sizes = [8, 64], strides = [1, 1]} : vector<16x128xf32> to vector<8x64xf32>
    %214 = vector.extract_strided_slice %194 {offsets = [0, 64], sizes = [8, 64], strides = [1, 1]} : vector<16x128xf32> to vector<8x64xf32>
    %215 = vector.extract_strided_slice %195 {offsets = [0, 64], sizes = [8, 64], strides = [1, 1]} : vector<16x128xf32> to vector<8x64xf32>
    %216 = tpu.transpose %214, [1, 0] : vector<8x64xf32> -> vector<64x8xf32>
    %cst_99 = arith.constant dense<0.000000e+00> : vector<8x8xf32>
    %217 = tpu.matmul %213, %216, %cst_99 {dimension_numbers = #tpu.dot_dimension_numbers<[1], [0], [0], [1], [0, 0, 1, 1], [], []>} : vector<8x64xf32>, vector<64x8xf32>, vector<8x8xf32> -> vector<8x8xf32>
    %cst_100 = arith.constant dense<0xFF800000> : vector<8xf32>
    %218 = vector.multi_reduction <maximumf>, %217, %cst_100 [1] : vector<8x8xf32> to vector<8xf32>
    %219 = vector.shape_cast %218 : vector<8xf32> to vector<8x1xf32>
    %220 = vector.broadcast %219 : vector<8x1xf32> to vector<8x8xf32>
    %221 = arith.subf %217, %220 : vector<8x8xf32>
    %222 = math.exp %221 : vector<8x8xf32>
    %cst_101 = arith.constant dense<0.000000e+00> : vector<8xf32>
    %223 = vector.multi_reduction <add>, %222, %cst_101 [1] : vector<8x8xf32> to vector<8xf32>
    %224 = vector.shape_cast %223 : vector<8xf32> to vector<8x1xf32>
    %225 = tpu.reciprocal %224 {approx = true} : vector<8x1xf32> -> vector<8x1xf32>
    %226 = vector.broadcast %225 : vector<8x1xf32> to vector<8x8xf32>
    %227 = arith.mulf %222, %226 : vector<8x8xf32>
    %cst_102 = arith.constant dense<0.000000e+00> : vector<8x64xf32>
    %228 = tpu.matmul %227, %215, %cst_102 {dimension_numbers = #tpu.dot_dimension_numbers<[1], [0], [0], [1], [0, 0, 1, 1], [], []>} : vector<8x8xf32>, vector<8x64xf32>, vector<8x64xf32> -> vector<8x64xf32>
    %c0_103 = arith.constant 0 : index
    %c64_104 = arith.constant 64 : index
    %229 = vector.load %arg18[%c0_103, %c64_104] : memref<16x128xf32, #tpu.memory_space<vmem>>, vector<8x64xf32>
    tpu.vector_store %arg18[%c0_103, %c64_104], %228 {strides = array<i32>} : memref<16x128xf32, #tpu.memory_space<vmem>>, vector<8x64xf32>,
    %230 = vector.extract_strided_slice %193 {offsets = [8, 0], sizes = [8, 64], strides = [1, 1]} : vector<16x128xf32> to vector<8x64xf32>
    %231 = vector.extract_strided_slice %194 {offsets = [8, 0], sizes = [8, 64], strides = [1, 1]} : vector<16x128xf32> to vector<8x64xf32>
    %232 = vector.extract_strided_slice %195 {offsets = [8, 0], sizes = [8, 64], strides = [1, 1]} : vector<16x128xf32> to vector<8x64xf32>
    %233 = tpu.transpose %231, [1, 0] : vector<8x64xf32> -> vector<64x8xf32>
    %cst_105 = arith.constant dense<0.000000e+00> : vector<8x8xf32>
    %234 = tpu.matmul %230, %233, %cst_105 {dimension_numbers = #tpu.dot_dimension_numbers<[1], [0], [0], [1], [0, 0, 1, 1], [], []>} : vector<8x64xf32>, vector<64x8xf32>, vector<8x8xf32> -> vector<8x8xf32>
    %cst_106 = arith.constant dense<0xFF800000> : vector<8xf32>
    %235 = vector.multi_reduction <maximumf>, %234, %cst_106 [1] : vector<8x8xf32> to vector<8xf32>
    %236 = vector.shape_cast %235 : vector<8xf32> to vector<8x1xf32>
    %237 = vector.broadcast %236 : vector<8x1xf32> to vector<8x8xf32>
    %238 = arith.subf %234, %237 : vector<8x8xf32>
    %239 = math.exp %238 : vector<8x8xf32>
    %cst_107 = arith.constant dense<0.000000e+00> : vector<8xf32>
    %240 = vector.multi_reduction <add>, %239, %cst_107 [1] : vector<8x8xf32> to vector<8xf32>
    %241 = vector.shape_cast %240 : vector<8xf32> to vector<8x1xf32>
    %242 = tpu.reciprocal %241 {approx = true} : vector<8x1xf32> -> vector<8x1xf32>
    %243 = vector.broadcast %242 : vector<8x1xf32> to vector<8x8xf32>
    %244 = arith.mulf %239, %243 : vector<8x8xf32>
    %cst_108 = arith.constant dense<0.000000e+00> : vector<8x64xf32>
    %245 = tpu.matmul %244, %232, %cst_108 {dimension_numbers = #tpu.dot_dimension_numbers<[1], [0], [0], [1], [0, 0, 1, 1], [], []>} : vector<8x8xf32>, vector<8x64xf32>, vector<8x64xf32> -> vector<8x64xf32>
    %c8_109 = arith.constant 8 : index
    %c0_110 = arith.constant 0 : index
    %246 = vector.load %arg18[%c8_109, %c0_110] : memref<16x128xf32, #tpu.memory_space<vmem>>, vector<8x64xf32>
    tpu.vector_store %arg18[%c8_109, %c0_110], %245 {strides = array<i32>} : memref<16x128xf32, #tpu.memory_space<vmem>>, vector<8x64xf32>,
    %247 = vector.extract_strided_slice %193 {offsets = [8, 64], sizes = [8, 64], strides = [1, 1]} : vector<16x128xf32> to vector<8x64xf32>
    %248 = vector.extract_strided_slice %194 {offsets = [8, 64], sizes = [8, 64], strides = [1, 1]} : vector<16x128xf32> to vector<8x64xf32>
    %249 = vector.extract_strided_slice %195 {offsets = [8, 64], sizes = [8, 64], strides = [1, 1]} : vector<16x128xf32> to vector<8x64xf32>
    %250 = tpu.transpose %248, [1, 0] : vector<8x64xf32> -> vector<64x8xf32>
    %cst_111 = arith.constant dense<0.000000e+00> : vector<8x8xf32>
    %251 = tpu.matmul %247, %250, %cst_111 {dimension_numbers = #tpu.dot_dimension_numbers<[1], [0], [0], [1], [0, 0, 1, 1], [], []>} : vector<8x64xf32>, vector<64x8xf32>, vector<8x8xf32> -> vector<8x8xf32>
    %cst_112 = arith.constant dense<0xFF800000> : vector<8xf32>
    %252 = vector.multi_reduction <maximumf>, %251, %cst_112 [1] : vector<8x8xf32> to vector<8xf32>
    %253 = vector.shape_cast %252 : vector<8xf32> to vector<8x1xf32>
    %254 = vector.broadcast %253 : vector<8x1xf32> to vector<8x8xf32>
    %255 = arith.subf %251, %254 : vector<8x8xf32>
    %256 = math.exp %255 : vector<8x8xf32>
    %cst_113 = arith.constant dense<0.000000e+00> : vector<8xf32>
    %257 = vector.multi_reduction <add>, %256, %cst_113 [1] : vector<8x8xf32> to vector<8xf32>
    %258 = vector.shape_cast %257 : vector<8xf32> to vector<8x1xf32>
    %259 = tpu.reciprocal %258 {approx = true} : vector<8x1xf32> -> vector<8x1xf32>
    %260 = vector.broadcast %259 : vector<8x1xf32> to vector<8x8xf32>
    %261 = arith.mulf %256, %260 : vector<8x8xf32>
    %cst_114 = arith.constant dense<0.000000e+00> : vector<8x64xf32>
    %262 = tpu.matmul %261, %249, %cst_114 {dimension_numbers = #tpu.dot_dimension_numbers<[1], [0], [0], [1], [0, 0, 1, 1], [], []>} : vector<8x8xf32>, vector<8x64xf32>, vector<8x64xf32> -> vector<8x64xf32>
    %c8_115 = arith.constant 8 : index
    %c64_116 = arith.constant 64 : index
    %263 = vector.load %arg18[%c8_115, %c64_116] : memref<16x128xf32, #tpu.memory_space<vmem>>, vector<8x64xf32>
    tpu.vector_store %arg18[%c8_115, %c64_116], %262 {strides = array<i32>} : memref<16x128xf32, #tpu.memory_space<vmem>>, vector<8x64xf32>,
    %c0_117 = arith.constant 0 : index
    %c0_118 = arith.constant 0 : index
    %264 = vector.load %arg18[%c0_117, %c0_118] : memref<16x128xf32, #tpu.memory_space<vmem>>, vector<16x128xf32>
    %c1_119 = arith.constant 1 : index
    %c0_120 = arith.constant 0 : index
    %c0_121 = arith.constant 0 : index
    %265 = vector.load %arg5[%c1_119, %c0_120, %c0_121] : memref<2x128x128xf32, #tpu.memory_space<vmem>>, vector<1x128x128xf32>
    %266 = vector.shape_cast %265 : vector<1x128x128xf32> to vector<128x128xf32>
    %cst_122 = arith.constant dense<0.000000e+00> : vector<16x128xf32>
    %267 = tpu.matmul %264, %266, %cst_122 {dimension_numbers = #tpu.dot_dimension_numbers<[1], [0], [0], [1], [0, 0, 1, 1], [], []>} : vector<16x128xf32>, vector<128x128xf32>, vector<16x128xf32> -> vector<16x128xf32>
    %c1_123 = arith.constant 1 : index
    %c0_124 = arith.constant 0 : index
    %c0_125 = arith.constant 0 : index
    %268 = vector.load %arg6[%c1_123, %c0_124, %c0_125] : memref<2x1x128xf32, #tpu.memory_space<vmem>>, vector<1x1x128xf32>
    %269 = vector.shape_cast %268 : vector<1x1x128xf32> to vector<1x128xf32>
    %270 = vector.broadcast %269 : vector<1x128xf32> to vector<16x128xf32>
    %271 = arith.addf %267, %270 : vector<16x128xf32>
    %272 = arith.addf %271, %185 : vector<16x128xf32>
    %c1_126 = arith.constant 1 : index
    %c0_127 = arith.constant 0 : index
    %c0_128 = arith.constant 0 : index
    %273 = vector.load %arg7[%c1_126, %c0_127, %c0_128] : memref<2x1x128xf32, #tpu.memory_space<vmem>>, vector<1x1x128xf32>
    %274 = vector.shape_cast %273 : vector<1x1x128xf32> to vector<1x128xf32>
    %c1_129 = arith.constant 1 : index
    %c0_130 = arith.constant 0 : index
    %c0_131 = arith.constant 0 : index
    %275 = vector.load %arg8[%c1_129, %c0_130, %c0_131] : memref<2x1x128xf32, #tpu.memory_space<vmem>>, vector<1x1x128xf32>
    %276 = vector.shape_cast %275 : vector<1x1x128xf32> to vector<1x128xf32>
    %cst_132 = arith.constant dense<0.000000e+00> : vector<16xf32>
    %277 = vector.multi_reduction <add>, %272, %cst_132 [1] : vector<16x128xf32> to vector<16xf32>
    %278 = vector.shape_cast %277 : vector<16xf32> to vector<16x1xf32>
    %cst_133 = arith.constant 1.280000e+02 : f32
    %279 = vector.broadcast %cst_133 : f32 to vector<16x1xf32>
    %280 = arith.divf %278, %279 : vector<16x1xf32>
    %281 = vector.broadcast %280 : vector<16x1xf32> to vector<16x128xf32>
    %282 = arith.subf %272, %281 : vector<16x128xf32>
    %283 = arith.mulf %282, %282 : vector<16x128xf32>
    %cst_134 = arith.constant dense<0.000000e+00> : vector<16xf32>
    %284 = vector.multi_reduction <add>, %283, %cst_134 [1] : vector<16x128xf32> to vector<16xf32>
    %285 = vector.shape_cast %284 : vector<16xf32> to vector<16x1xf32>
    %cst_135 = arith.constant 1.280000e+02 : f32
    %286 = vector.broadcast %cst_135 : f32 to vector<16x1xf32>
    %287 = arith.divf %285, %286 : vector<16x1xf32>
    %cst_136 = arith.constant 9.99999996E-13 : f32
    %288 = vector.broadcast %cst_136 : f32 to vector<16x1xf32>
    %289 = arith.addf %287, %288 : vector<16x1xf32>
    %290 = math.rsqrt %289 : vector<16x1xf32>
    %291 = vector.broadcast %290 : vector<16x1xf32> to vector<16x128xf32>
    %292 = arith.mulf %282, %291 : vector<16x128xf32>
    %293 = vector.broadcast %274 : vector<1x128xf32> to vector<16x128xf32>
    %294 = arith.mulf %292, %293 : vector<16x128xf32>
    %295 = vector.broadcast %276 : vector<1x128xf32> to vector<16x128xf32>
    %296 = arith.addf %294, %295 : vector<16x128xf32>
    %c1_137 = arith.constant 1 : index
    %c0_138 = arith.constant 0 : index
    %c0_139 = arith.constant 0 : index
    %297 = vector.load %arg9[%c1_137, %c0_138, %c0_139] : memref<2x128x256xf32, #tpu.memory_space<vmem>>, vector<1x128x256xf32>
    %298 = vector.shape_cast %297 : vector<1x128x256xf32> to vector<128x256xf32>
    %cst_140 = arith.constant dense<0.000000e+00> : vector<16x256xf32>
    %299 = tpu.matmul %296, %298, %cst_140 {dimension_numbers = #tpu.dot_dimension_numbers<[1], [0], [0], [1], [0, 0, 1, 1], [], []>} : vector<16x128xf32>, vector<128x256xf32>, vector<16x256xf32> -> vector<16x256xf32>
    %c1_141 = arith.constant 1 : index
    %c0_142 = arith.constant 0 : index
    %c0_143 = arith.constant 0 : index
    %300 = vector.load %arg10[%c1_141, %c0_142, %c0_143] : memref<2x1x256xf32, #tpu.memory_space<vmem>>, vector<1x1x256xf32>
    %301 = vector.shape_cast %300 : vector<1x1x256xf32> to vector<1x256xf32>
    %302 = vector.broadcast %301 : vector<1x256xf32> to vector<16x256xf32>
    %303 = arith.addf %299, %302 : vector<16x256xf32>
    %cst_144 = arith.constant 5.000000e-01 : f32
    %304 = vector.broadcast %cst_144 : f32 to vector<16x256xf32>
    %305 = arith.mulf %304, %303 : vector<16x256xf32>
    %cst_145 = arith.constant 4.471500e-02 : f32
    %306 = vector.broadcast %cst_145 : f32 to vector<16x256xf32>
    %307 = arith.mulf %306, %303 : vector<16x256xf32>
    %308 = arith.mulf %307, %303 : vector<16x256xf32>
    %309 = arith.mulf %308, %303 : vector<16x256xf32>
    %310 = arith.addf %303, %309 : vector<16x256xf32>
    %cst_146 = arith.constant 0.797884583 : f32
    %311 = vector.broadcast %cst_146 : f32 to vector<16x256xf32>
    %312 = arith.mulf %311, %310 : vector<16x256xf32>
    %313 = math.tanh %312 : vector<16x256xf32>
    %cst_147 = arith.constant 1.000000e+00 : f32
    %314 = vector.broadcast %cst_147 : f32 to vector<16x256xf32>
    %315 = arith.addf %314, %313 : vector<16x256xf32>
    %316 = arith.mulf %305, %315 : vector<16x256xf32>
    %c1_148 = arith.constant 1 : index
    %c0_149 = arith.constant 0 : index
    %c0_150 = arith.constant 0 : index
    %317 = vector.load %arg11[%c1_148, %c0_149, %c0_150] : memref<2x256x128xf32, #tpu.memory_space<vmem>>, vector<1x256x128xf32>
    %318 = vector.shape_cast %317 : vector<1x256x128xf32> to vector<256x128xf32>
    %cst_151 = arith.constant dense<0.000000e+00> : vector<16x128xf32>
    %319 = tpu.matmul %316, %318, %cst_151 {dimension_numbers = #tpu.dot_dimension_numbers<[1], [0], [0], [1], [0, 0, 1, 1], [], []>} : vector<16x256xf32>, vector<256x128xf32>, vector<16x128xf32> -> vector<16x128xf32>
    %c1_152 = arith.constant 1 : index
    %c0_153 = arith.constant 0 : index
    %c0_154 = arith.constant 0 : index
    %320 = vector.load %arg12[%c1_152, %c0_153, %c0_154] : memref<2x1x128xf32, #tpu.memory_space<vmem>>, vector<1x1x128xf32>
    %321 = vector.shape_cast %320 : vector<1x1x128xf32> to vector<1x128xf32>
    %322 = vector.broadcast %321 : vector<1x128xf32> to vector<16x128xf32>
    %323 = arith.addf %319, %322 : vector<16x128xf32>
    %324 = arith.addf %323, %296 : vector<16x128xf32>
    %c1_155 = arith.constant 1 : index
    %c0_156 = arith.constant 0 : index
    %c0_157 = arith.constant 0 : index
    %325 = vector.load %arg13[%c1_155, %c0_156, %c0_157] : memref<2x1x128xf32, #tpu.memory_space<vmem>>, vector<1x1x128xf32>
    %326 = vector.shape_cast %325 : vector<1x1x128xf32> to vector<1x128xf32>
    %c1_158 = arith.constant 1 : index
    %c0_159 = arith.constant 0 : index
    %c0_160 = arith.constant 0 : index
    %327 = vector.load %arg14[%c1_158, %c0_159, %c0_160] : memref<2x1x128xf32, #tpu.memory_space<vmem>>, vector<1x1x128xf32>
    %328 = vector.shape_cast %327 : vector<1x1x128xf32> to vector<1x128xf32>
    %cst_161 = arith.constant dense<0.000000e+00> : vector<16xf32>
    %329 = vector.multi_reduction <add>, %324, %cst_161 [1] : vector<16x128xf32> to vector<16xf32>
    %330 = vector.shape_cast %329 : vector<16xf32> to vector<16x1xf32>
    %cst_162 = arith.constant 1.280000e+02 : f32
    %331 = vector.broadcast %cst_162 : f32 to vector<16x1xf32>
    %332 = arith.divf %330, %331 : vector<16x1xf32>
    %333 = vector.broadcast %332 : vector<16x1xf32> to vector<16x128xf32>
    %334 = arith.subf %324, %333 : vector<16x128xf32>
    %335 = arith.mulf %334, %334 : vector<16x128xf32>
    %cst_163 = arith.constant dense<0.000000e+00> : vector<16xf32>
    %336 = vector.multi_reduction <add>, %335, %cst_163 [1] : vector<16x128xf32> to vector<16xf32>
    %337 = vector.shape_cast %336 : vector<16xf32> to vector<16x1xf32>
    %cst_164 = arith.constant 1.280000e+02 : f32
    %338 = vector.broadcast %cst_164 : f32 to vector<16x1xf32>
    %339 = arith.divf %337, %338 : vector<16x1xf32>
    %cst_165 = arith.constant 9.99999996E-13 : f32
    %340 = vector.broadcast %cst_165 : f32 to vector<16x1xf32>
    %341 = arith.addf %339, %340 : vector<16x1xf32>
    %342 = math.rsqrt %341 : vector<16x1xf32>
    %343 = vector.broadcast %342 : vector<16x1xf32> to vector<16x128xf32>
    %344 = arith.mulf %334, %343 : vector<16x128xf32>
    %345 = vector.broadcast %326 : vector<1x128xf32> to vector<16x128xf32>
    %346 = arith.mulf %344, %345 : vector<16x128xf32>
    %347 = vector.broadcast %328 : vector<1x128xf32> to vector<16x128xf32>
    %348 = arith.addf %346, %347 : vector<16x128xf32>
    %c0_166 = arith.constant 0 : index
    %c0_167 = arith.constant 0 : index
    %349 = vector.load %arg15[%c0_166, %c0_167] : memref<128x8xf32, #tpu.memory_space<vmem>>, vector<128x8xf32>
    %cst_168 = arith.constant dense<0.000000e+00> : vector<16x8xf32>
    %350 = tpu.matmul %348, %349, %cst_168 {dimension_numbers = #tpu.dot_dimension_numbers<[1], [0], [0], [1], [0, 0, 1, 1], [], []>} : vector<16x128xf32>, vector<128x8xf32>, vector<16x8xf32> -> vector<16x8xf32>
    %c0_169 = arith.constant 0 : index
    %c0_170 = arith.constant 0 : index
    %351 = vector.load %arg16[%c0_169, %c0_170] : memref<1x8xf32, #tpu.memory_space<vmem>>, vector<1x8xf32>
    %352 = vector.broadcast %351 : vector<1x8xf32> to vector<16x8xf32>
    %353 = arith.addf %350, %352 : vector<16x8xf32>
    %cst_171 = arith.constant dense<0xFF800000> : vector<16xf32>
    %354 = vector.multi_reduction <maximumf>, %353, %cst_171 [1] : vector<16x8xf32> to vector<16xf32>
    %355 = vector.shape_cast %354 : vector<16xf32> to vector<16x1xf32>
    %356 = tpu.iota {dimensions = array<i32: 1>} : vector<16x8xi32>
    %357 = vector.broadcast %355 : vector<16x1xf32> to vector<16x8xf32>
    %358 = arith.cmpf oeq, %353, %357 : vector<16x8xf32>
    %c8_i32 = arith.constant 8 : i32
    %359 = vector.broadcast %c8_i32 : i32 to vector<16x8xi32>
    %360 = arith.select %358, %356, %359 : vector<16x8xi1>, vector<16x8xi32>
    %cst_172 = arith.constant dense<2147483647> : vector<16xi32>
    %361 = vector.multi_reduction <minsi>, %360, %cst_172 [1] : vector<16x8xi32> to vector<16xi32>
    %362 = vector.shape_cast %361 : vector<16xi32> to vector<16x1xi32>
    %c0_173 = arith.constant 0 : index
    %c0_174 = arith.constant 0 : index
    %363 = vector.load %arg17[%c0_173, %c0_174] : memref<16x1xi32, #tpu.memory_space<vmem>>, vector<16x1xi32>
    tpu.vector_store %arg17[%c0_173, %c0_174], %362 {strides = array<i32>} : memref<16x1xi32, #tpu.memory_space<vmem>>, vector<16x1xi32>,
    return
  }
}

</mosaic_0001>

<llo_original>
// kernel: bert_model_forward.1
$region0: #{bert_model_forward.1}
  #allocation0 [shape = 'u32[]', space=smem, size = 0x4, offset = 0x4, fixed_abs, tag = 'smem constant byte address 0x4 - core index']
  #allocation1 [shape = 'u32[144,128]{1,0:T(1,128)}', space=vmem, size = 0x12000, scoped, tag = 'internal scratch']
  #allocation2 [shape = 'f32[16,128]{1,0:T(8,128)}', space=vmem, size = 0x2000, scoped, tag = 'scratch operand']
  %s0 = inlined_call_operand.vmem [shape: f32[16,128], index: 0, kind: input, shape index: {}]
  %s1 = inlined_call_operand.vmem [shape: f32[1,128], index: 1, kind: input, shape index: {}]
  %s2 = inlined_call_operand.vmem [shape: f32[1,128], index: 2, kind: input, shape index: {}]
  %s3 = inlined_call_operand.vmem [shape: f32[2,128,384], index: 3, kind: input, shape index: {}]
  %s4 = inlined_call_operand.vmem [shape: f32[2,1,384], index: 4, kind: input, shape index: {}]
  %s5 = inlined_call_operand.vmem [shape: f32[2,128,128], index: 5, kind: input, shape index: {}]
  %s6 = inlined_call_operand.vmem [shape: f32[2,1,128], index: 6, kind: input, shape index: {}]
  %s7 = inlined_call_operand.vmem [shape: f32[2,1,128], index: 7, kind: input, shape index: {}]
  %s8 = inlined_call_operand.vmem [shape: f32[2,1,128], index: 8, kind: input, shape index: {}]
  %s9 = inlined_call_operand.vmem [shape: f32[2,128,256], index: 9, kind: input, shape index: {}]
  %s10 = inlined_call_operand.vmem [shape: f32[2,1,256], index: 10, kind: input, shape index: {}]
  %s11 = inlined_call_operand.vmem [shape: f32[2,256,128], index: 11, kind: input, shape index: {}]
  %s12 = inlined_call_operand.vmem [shape: f32[2,1,128], index: 12, kind: input, shape index: {}]
  %s13 = inlined_call_operand.vmem [shape: f32[2,1,128], index: 13, kind: input, shape index: {}]
  %s14 = inlined_call_operand.vmem [shape: f32[2,1,128], index: 14, kind: input, shape index: {}]
  %s15 = inlined_call_operand.vmem [shape: f32[128,8], index: 15, kind: input, shape index: {}]
  %s16 = inlined_call_operand.vmem [shape: f32[1,8], index: 16, kind: input, shape index: {}]
  %s17 = inlined_call_operand.vmem [shape: s32[16,1], index: 17, kind: output, shape index: {}]
  %s18 = sld [smem:[#allocation0]]
  $region78: #{bert_model_forward.1} parent=0
    _
  %s20 = ssub.s32 1, %s18
  %s21 = scalar_select 0, %s20, %s18
  // Predicated region
  $region2: #{bert_model_forward.1} parent=0 // pred_check
    _
  $region3: #{bert_model_forward.1} parent=0 // pred_check_branch
    %23 = sbr.rel (0) target = $region5
  $region4: #{bert_model_forward.1} parent=0 // pred_region
    _
  $region5: #{bert_model_forward.1} parent=0 // pred_fallthru
    _
  // Predicated region
  $region6: #{bert_model_forward.1} parent=0 // pred_check
    _
  $region7: #{bert_model_forward.1} parent=0 // pred_check_branch
    %25 = sbr.rel (0) target = $region9
  $region8: #{bert_model_forward.1} parent=0 // pred_region
    _
  $region9: #{bert_model_forward.1} parent=0 // pred_fallthru
    _
  // Predicated region
  $region10: #{bert_model_forward.1} parent=0 // pred_check
    _
  $region11: #{bert_model_forward.1} parent=0 // pred_check_branch
    %27 = sbr.rel (0) target = $region13
  $region12: #{bert_model_forward.1} parent=0 // pred_region
    _
  $region13: #{bert_model_forward.1} parent=0 // pred_fallthru
    _
  // Predicated region
  $region14: #{bert_model_forward.1} parent=0 // pred_check
    _
  $region15: #{bert_model_forward.1} parent=0 // pred_check_branch
    %29 = sbr.rel (0) target = $region17
  $region16: #{bert_model_forward.1} parent=0 // pred_region
    _
  $region17: #{bert_model_forward.1} parent=0 // pred_fallthru
    _
  // Predicated region
  $region18: #{bert_model_forward.1} parent=0 // pred_check
    _
  $region19: #{bert_model_forward.1} parent=0 // pred_check_branch
    %31 = sbr.rel (0) target = $region21
  $region20: #{bert_model_forward.1} parent=0 // pred_region
    _
  $region21: #{bert_model_forward.1} parent=0 // pred_fallthru
    _
  // Predicated region
  $region22: #{bert_model_forward.1} parent=0 // pred_check
    _
  $region23: #{bert_model_forward.1} parent=0 // pred_check_branch
    %33 = sbr.rel (0) target = $region25
  $region24: #{bert_model_forward.1} parent=0 // pred_region
    _
  $region25: #{bert_model_forward.1} parent=0 // pred_fallthru
    _
  // Predicated region
  $region26: #{bert_model_forward.1} parent=0 // pred_check
    _
  $region27: #{bert_model_forward.1} parent=0 // pred_check_branch
    %35 = sbr.rel (0) target = $region29
  $region28: #{bert_model_forward.1} parent=0 // pred_region
    _
  $region29: #{bert_model_forward.1} parent=0 // pred_fallthru
    _
  // Predicated region
  $region30: #{bert_model_forward.1} parent=0 // pred_check
    _
  $region31: #{bert_model_forward.1} parent=0 // pred_check_branch
    %37 = sbr.rel (0) target = $region33
  $region32: #{bert_model_forward.1} parent=0 // pred_region
    _
  $region33: #{bert_model_forward.1} parent=0 // pred_fallthru
    _
  // Predicated region
  $region34: #{bert_model_forward.1} parent=0 // pred_check
    _
  $region35: #{bert_model_forward.1} parent=0 // pred_check_branch
    %39 = sbr.rel (0) target = $region37
  $region36: #{bert_model_forward.1} parent=0 // pred_region
    _
  $region37: #{bert_model_forward.1} parent=0 // pred_fallthru
    _
  // Predicated region
  $region38: #{bert_model_forward.1} parent=0 // pred_check
    _
  $region39: #{bert_model_forward.1} parent=0 // pred_check_branch
    %41 = sbr.rel (0) target = $region41
  $region40: #{bert_model_forward.1} parent=0 // pred_region
    _
  $region41: #{bert_model_forward.1} parent=0 // pred_fallthru
    _
  // Predicated region
  $region42: #{bert_model_forward.1} parent=0 // pred_check
    _
  $region43: #{bert_model_forward.1} parent=0 // pred_check_branch
    %43 = sbr.rel (0) target = $region45
  $region44: #{bert_model_forward.1} parent=0 // pred_region
    _
  $region45: #{bert_model_forward.1} parent=0 // pred_fallthru
    _
  // Predicated region
  $region46: #{bert_model_forward.1} parent=0 // pred_check
    _
  $region47: #{bert_model_forward.1} parent=0 // pred_check_branch
    %45 = sbr.rel (0) target = $region49
  $region48: #{bert_model_forward.1} parent=0 // pred_region
    _
  $region49: #{bert_model_forward.1} parent=0 // pred_fallthru
    _
  // Predicated region
  $region50: #{bert_model_forward.1} parent=0 // pred_check
    _
  $region51: #{bert_model_forward.1} parent=0 // pred_check_branch
    %47 = sbr.rel (0) target = $region53
  $region52: #{bert_model_forward.1} parent=0 // pred_region
    _
  $region53: #{bert_model_forward.1} parent=0 // pred_fallthru
    _
  // Predicated region
  $region54: #{bert_model_forward.1} parent=0 // pred_check
    _
  $region55: #{bert_model_forward.1} parent=0 // pred_check_branch
    %49 = sbr.rel (0) target = $region57
  $region56: #{bert_model_forward.1} parent=0 // pred_region
    _
  $region57: #{bert_model_forward.1} parent=0 // pred_fallthru
    _
  // Predicated region
  $region58: #{bert_model_forward.1} parent=0 // pred_check
    _
  $region59: #{bert_model_forward.1} parent=0 // pred_check_branch
    %51 = sbr.rel (0) target = $region61
  $region60: #{bert_model_forward.1} parent=0 // pred_region
    _
  $region61: #{bert_model_forward.1} parent=0 // pred_fallthru
    _
  // Predicated region
  $region62: #{bert_model_forward.1} parent=0 // pred_check
    _
  $region63: #{bert_model_forward.1} parent=0 // pred_check_branch
    %53 = sbr.rel (0) target = $region65
  $region64: #{bert_model_forward.1} parent=0 // pred_region
    _
  $region65: #{bert_model_forward.1} parent=0 // pred_fallthru
    _
  // Predicated region
  $region66: #{bert_model_forward.1} parent=0 // pred_check
    _
  $region67: #{bert_model_forward.1} parent=0 // pred_check_branch
    %55 = sbr.rel (0) target = $region69
  $region68: #{bert_model_forward.1} parent=0 // pred_region
    _
  $region69: #{bert_model_forward.1} parent=0 // pred_fallthru
    _
  %v56 = vld [vmem:[%s0] sm:$0xff]
  %v57 = vld [vmem:[%s0 + $0x8] sm:$0xff]
  %v58 = vld [vmem:[%s1] sm:$0x1]
  %v59 = vld [vmem:[%s2] sm:$0x1]
  %60 = vadd.xlane.f32.xlu0 %v56
  %v61 = vpop.xlane.xlu0 %60
  %62 = vadd.xlane.f32.xlu0 %v57
  %v63 = vpop.xlane.xlu0 %62
  %v64 = vrcp.pop 128.0
  %v65 = vmul.f32 %v61, %v64
  %v66 = vmul.f32 %v63, %v64
  %v67 = vsub.f32 %v56, %v65
  %v68 = vsub.f32 %v57, %v66
  %v69 = vmul.f32 %v67, %v67
  %v70 = vmul.f32 %v68, %v68
  %71 = vadd.xlane.f32.xlu0 %v69
  %v72 = vpop.xlane.xlu0 %71
  %73 = vadd.xlane.f32.xlu0 %v70
  %v74 = vpop.xlane.xlu0 %73
  %v75 = vmul.f32 %v72, %v64
  %v76 = vmul.f32 %v74, %v64
  %v77 = vadd.f32 %v75, 1e-12
  %v78 = vadd.f32 %v76, 1e-12
  %v79 = vrsqrt.pop %v77
  %v80 = vrsqrt.pop %v78
  %v81 = vmul.f32 %v67, %v79
  %v82 = vmul.f32 %v68, %v80
  %v84 = vlaneseq
  %v85 = vshrl.u32 %v84, 7
  %v86 = vsub.s32 0, %v85
  %v87 = vrot.slane %v58, %v86
  %v89 = vmul.f32 %v81, %v87
  %v90 = vmul.f32 %v82, %v87
  %v92 = vlaneseq
  %v93 = vshrl.u32 %v92, 7
  %v94 = vsub.s32 0, %v93
  %v95 = vrot.slane %v59, %v94
  %v97 = vadd.f32 %v89, %v95
  %v98 = vadd.f32 %v90, %v95
  %v99 = vld [vmem:[%s3] sm:$0xff]
  %v100 = vld [vmem:[%s3 + $0x8] sm:$0xff]
  %v101 = vld [vmem:[%s3 + $0x10] sm:$0xff]
  %v102 = vld [vmem:[%s3 + $0x18] sm:$0xff]
  %v103 = vld [vmem:[%s3 + $0x20] sm:$0xff]
  %v104 = vld [vmem:[%s3 + $0x28] sm:$0xff]
  %v105 = vld [vmem:[%s3 + $0x30] sm:$0xff]
  %v106 = vld [vmem:[%s3 + $0x38] sm:$0xff]
  %v107 = vld [vmem:[%s3 + $0x40] sm:$0xff]
  %v108 = vld [vmem:[%s3 + $0x48] sm:$0xff]
  %v109 = vld [vmem:[%s3 + $0x50] sm:$0xff]
  %v110 = vld [vmem:[%s3 + $0x58] sm:$0xff]
  %v111 = vld [vmem:[%s3 + $0x60] sm:$0xff]
  %v112 = vld [vmem:[%s3 + $0x68] sm:$0xff]
  %v113 = vld [vmem:[%s3 + $0x70] sm:$0xff]
  %v114 = vld [vmem:[%s3 + $0x78] sm:$0xff]
  %v115 = vld [vmem:[%s3 + $0x80] sm:$0xff]
  %v116 = vld [vmem:[%s3 + $0x88] sm:$0xff]
  %v117 = vld [vmem:[%s3 + $0x90] sm:$0xff]
  %v118 = vld [vmem:[%s3 + $0x98] sm:$0xff]
  %v119 = vld [vmem:[%s3 + $0xa0] sm:$0xff]
  %v120 = vld [vmem:[%s3 + $0xa8] sm:$0xff]
  %v121 = vld [vmem:[%s3 + $0xb0] sm:$0xff]
  %v122 = vld [vmem:[%s3 + $0xb8] sm:$0xff]
  %v123 = vld [vmem:[%s3 + $0xc0] sm:$0xff]
  %v124 = vld [vmem:[%s3 + $0xc8] sm:$0xff]
  %v125 = vld [vmem:[%s3 + $0xd0] sm:$0xff]
  %v126 = vld [vmem:[%s3 + $0xd8] sm:$0xff]
  %v127 = vld [vmem:[%s3 + $0xe0] sm:$0xff]
  %v128 = vld [vmem:[%s3 + $0xe8] sm:$0xff]
  %v129 = vld [vmem:[%s3 + $0xf0] sm:$0xff]
  %v130 = vld [vmem:[%s3 + $0xf8] sm:$0xff]
  %v131 = vld [vmem:[%s3 + $0x100] sm:$0xff]
  %v132 = vld [vmem:[%s3 + $0x108] sm:$0xff]
  %v133 = vld [vmem:[%s3 + $0x110] sm:$0xff]
  %v134 = vld [vmem:[%s3 + $0x118] sm:$0xff]
  %v135 = vld [vmem:[%s3 + $0x120] sm:$0xff]
  %v136 = vld [vmem:[%s3 + $0x128] sm:$0xff]
  %v137 = vld [vmem:[%s3 + $0x130] sm:$0xff]
  %v138 = vld [vmem:[%s3 + $0x138] sm:$0xff]
  %v139 = vld [vmem:[%s3 + $0x140] sm:$0xff]
  %v140 = vld [vmem:[%s3 + $0x148] sm:$0xff]
  %v141 = vld [vmem:[%s3 + $0x150] sm:$0xff]
  %v142 = vld [vmem:[%s3 + $0x158] sm:$0xff]
  %v143 = vld [vmem:[%s3 + $0x160] sm:$0xff]
  %v144 = vld [vmem:[%s3 + $0x168] sm:$0xff]
  %v145 = vld [vmem:[%s3 + $0x170] sm:$0xff]
  %v146 = vld [vmem:[%s3 + $0x178] sm:$0xff]
  %v147 = vld [vmem:[%s4] sm:$0x7]
  %v149 = vlaneseq
  %v150 = vshrl.u32 %v149, 7
  %v151 = vsub.s32 0, %v150
  %v152 = vrot.slane %v147, %v151
  %v153 = vlaneseq
  %v154 = vshrl.u32 %v153, 7
  %v155 = vsub.s32 1, %v154
  %v156 = vrot.slane %v147, %v155
  %v157 = vlaneseq
  %v158 = vshrl.u32 %v157, 7
  %v159 = vsub.s32 2, %v158
  %v160 = vrot.slane %v147, %v159
  %164 = vmatprep.subr.mxu0 %v100
  %165 = vmatpush1.msra.mxu0 %v99
  %166 = vmatprep.subr.mxu0 %v103
  %167 = vmatpush1.msra.mxu0 %v102
  %168 = vmatprep.subr.mxu0 %v106
  %169 = vmatpush1.msra.mxu0 %v105
  %170 = vmatprep.subr.mxu0 %v109
  %171 = vmatpush1.msra.mxu0 %v108
  %172 = vmatprep.subr.mxu0 %v112
  %173 = vmatpush1.msra.mxu0 %v111
  %174 = vmatprep.subr.mxu0 %v115
  %175 = vmatpush1.msra.mxu0 %v114
  %176 = vmatprep.subr.mxu0 %v118
  %177 = vmatpush1.msra.mxu0 %v117
  %178 = vmatprep.subr.mxu0 %v121
  %179 = vmatpush1.msra.mxu0 %v120
  %180 = vmatprep.subr.mxu0 %v124
  %181 = vmatpush1.msra.mxu0 %v123
  %182 = vmatprep.subr.mxu0 %v127
  %183 = vmatpush1.msra.mxu0 %v126
  %184 = vmatprep.subr.mxu0 %v130
  %185 = vmatpush1.msra.mxu0 %v129
  %186 = vmatprep.subr.mxu0 %v133
  %187 = vmatpush1.msra.mxu0 %v132
  %188 = vmatprep.subr.mxu0 %v136
  %189 = vmatpush1.msra.mxu0 %v135
  %190 = vmatprep.subr.mxu0 %v139
  %191 = vmatpush1.msra.mxu0 %v138
  %192 = vmatprep.subr.mxu0 %v142
  %193 = vmatpush1.msra.mxu0 %v141
  %194 = vmatprep.subr.mxu0 %v145
  %195 = vmatpush1.msra.mxu0 %v144
  %196 = vmatprep.subr.mxu0 0.0
  %197 = vmatpush1.msra.mxu0 0.0
  %198 = vmatprep.subr.mxu0 0.0
  %199 = vmatpush1.msra.mxu0 0.0
  %200 = vmatprep.subr.mxu0 0.0
  %201 = vmatpush1.msra.mxu0 0.0
  %202 = vmatprep.subr.mxu0 0.0
  %203 = vmatpush1.msra.mxu0 0.0
  %204 = vmatprep.subr.mxu0 0.0
  %205 = vmatpush1.msra.mxu0 0.0
  %206 = vmatprep.subr.mxu0 0.0
  %207 = vmatpush1.msra.mxu0 0.0
  %208 = vmatprep.subr.mxu0 0.0
  %209 = vmatpush1.msra.mxu0 0.0
  %210 = vmatprep.subr.mxu0 0.0
  %211 = vmatpush1.msra.mxu0 0.0
  %212 = vmatprep.subr.mxu0 0.0
  %213 = vmatpush1.msra.mxu0 0.0
  %214 = vmatprep.subr.mxu0 0.0
  %215 = vmatpush1.msra.mxu0 0.0
  %216 = vmatprep.subr.mxu0 0.0
  %217 = vmatpush1.msra.mxu0 0.0
  %218 = vmatprep.subr.mxu0 0.0
  %219 = vmatpush1.msra.mxu0 0.0
  %220 = vmatprep.subr.mxu0 0.0
  %221 = vmatpush1.msra.mxu0 0.0
  %222 = vmatprep.subr.mxu0 0.0
  %223 = vmatpush1.msra.mxu0 0.0
  %224 = vmatprep.subr.mxu0 0.0
  %225 = vmatpush1.msra.mxu0 0.0
  %226 = vmatprep.subr.mxu0 0.0
  %227 = vmatpush1.msra.mxu0 0.0
  %228 = vmatprep.mubr.f32.mxu0 0.0
  %229 = vmatmul.mubr.f32.gmra.mrb[0].mxu0 %v97
  %v230 = vpop.f32.mrb[0].mxu0
  %v231 = vadd.f32 %v152, %v230
  %v232 = vpop.f32.mrb[0].mxu0
  %v233 = vadd.f32 %v156, %v232
  %234 = vmatprep.mubr.f32.mxu0 0.0
  %235 = vmatmul.mubr.f32.gmra.mrb[0].mxu0 %v98
  %v236 = vpop.f32.mrb[0].mxu0
  %v237 = vadd.f32 %v152, %v236
  %v238 = vpop.f32.mrb[0].mxu0
  %v239 = vadd.f32 %v156, %v238
  %240 = vdwg.mxu0
  %241 = vmatprep.subr.mxu0 0.0
  %242 = vmatpush1.msra.mxu0 %v101
  %243 = vmatprep.subr.mxu0 0.0
  %244 = vmatpush1.msra.mxu0 %v104
  %245 = vmatprep.subr.mxu0 0.0
  %246 = vmatpush1.msra.mxu0 %v107
  %247 = vmatprep.subr.mxu0 0.0
  %248 = vmatpush1.msra.mxu0 %v110
  %249 = vmatprep.subr.mxu0 0.0
  %250 = vmatpush1.msra.mxu0 %v113
  %251 = vmatprep.subr.mxu0 0.0
  %252 = vmatpush1.msra.mxu0 %v116
  %253 = vmatprep.subr.mxu0 0.0
  %254 = vmatpush1.msra.mxu0 %v119
  %255 = vmatprep.subr.mxu0 0.0
  %256 = vmatpush1.msra.mxu0 %v122
  %257 = vmatprep.subr.mxu0 0.0
  %258 = vmatpush1.msra.mxu0 %v125
  %259 = vmatprep.subr.mxu0 0.0
  %260 = vmatpush1.msra.mxu0 %v128
  %261 = vmatprep.subr.mxu0 0.0
  %262 = vmatpush1.msra.mxu0 %v131
  %263 = vmatprep.subr.mxu0 0.0
  %264 = vmatpush1.msra.mxu0 %v134
  %265 = vmatprep.subr.mxu0 0.0
  %266 = vmatpush1.msra.mxu0 %v137
  %267 = vmatprep.subr.mxu0 0.0
  %268 = vmatpush1.msra.mxu0 %v140
  %269 = vmatprep.subr.mxu0 0.0
  %270 = vmatpush1.msra.mxu0 %v143
  %271 = vmatprep.subr.mxu0 0.0
  %272 = vmatpush1.msra.mxu0 %v146
  %273 = vmatprep.subr.mxu0 0.0
  %274 = vmatpush1.msra.mxu0 0.0
  %275 = vmatprep.subr.mxu0 0.0
  %276 = vmatpush1.msra.mxu0 0.0
  %277 = vmatprep.subr.mxu0 0.0
  %278 = vmatpush1.msra.mxu0 0.0
  %279 = vmatprep.subr.mxu0 0.0
  %280 = vmatpush1.msra.mxu0 0.0
  %281 = vmatprep.subr.mxu0 0.0
  %282 = vmatpush1.msra.mxu0 0.0
  %283 = vmatprep.subr.mxu0 0.0
  %284 = vmatpush1.msra.mxu0 0.0
  %285 = vmatprep.subr.mxu0 0.0
  %286 = vmatpush1.msra.mxu0 0.0
  %287 = vmatprep.subr.mxu0 0.0
  %288 = vmatpush1.msra.mxu0 0.0
  %289 = vmatprep.subr.mxu0 0.0
  %290 = vmatpush1.msra.mxu0 0.0
  %291 = vmatprep.subr.mxu0 0.0
  %292 = vmatpush1.msra.mxu0 0.0
  %293 = vmatprep.subr.mxu0 0.0
  %294 = vmatpush1.msra.mxu0 0.0
  %295 = vmatprep.subr.mxu0 0.0
  %296 = vmatpush1.msra.mxu0 0.0
  %297 = vmatprep.subr.mxu0 0.0
  %298 = vmatpush1.msra.mxu0 0.0
  %299 = vmatprep.subr.mxu0 0.0
  %300 = vmatpush1.msra.mxu0 0.0
  %301 = vmatprep.subr.mxu0 0.0
  %302 = vmatpush1.msra.mxu0 0.0
  %303 = vmatprep.subr.mxu0 0.0
  %304 = vmatpush1.msra.mxu0 0.0
  %305 = vmatprep.mubr.f32.mxu0 0.0
  %306 = vmatmul.mubr.f32.gmra.mrb[0].mxu0 %v97
  %v307 = vpop.f32.mrb[0].mxu0
  %v308 = vadd.f32 %v160, %v307
  %v309 = vpop.f32.mrb[0].mxu0
  %310 = vmatprep.mubr.f32.mxu0 0.0
  %311 = vmatmul.mubr.f32.gmra.mrb[0].mxu0 %v98
  %v312 = vpop.f32.mrb[0].mxu0
  %v313 = vadd.f32 %v160, %v312
  %v314 = vpop.f32.mrb[0].mxu0
  %315 = vdwg.mxu0
  %vm316 = vcmask 523264
  %v318 = vsel %vm316, %v231, 0
  %v321 = vsel %vm316, %v233, 0
  %323 = vmatprep.subr.mxu0 0.0
  %324 = vmatpush1.xpose.msra.mxu0 %v321
  %325 = vmatprep.subr.mxu0 0.0
  %326 = vmatpush1.xpose.msra.mxu0 0.0
  %327 = vmatprep.subr.mxu0 0.0
  %328 = vmatpush1.xpose.msra.mxu0 0.0
  %329 = vmatprep.subr.mxu0 0.0
  %330 = vmatpush1.xpose.msra.mxu0 0.0
  %331 = vmatprep.subr.mxu0 0.0
  %332 = vmatpush1.xpose.msra.mxu0 0.0
  %333 = vmatprep.subr.mxu0 0.0
  %334 = vmatpush1.xpose.msra.mxu0 0.0
  %335 = vmatprep.subr.mxu0 0.0
  %336 = vmatpush1.xpose.msra.mxu0 0.0
  %337 = vmatprep.subr.mxu0 0.0
  %338 = vmatpush1.xpose.msra.mxu0 0.0
  %339 = vmatprep.subr.mxu0 0.0
  %340 = vmatpush1.xpose.msra.mxu0 0.0
  %341 = vmatprep.subr.mxu0 0.0
  %342 = vmatpush1.xpose.msra.mxu0 0.0
  %343 = vmatprep.subr.mxu0 0.0
  %344 = vmatpush1.xpose.msra.mxu0 0.0
  %345 = vmatprep.subr.mxu0 0.0
  %346 = vmatpush1.xpose.msra.mxu0 0.0
  %347 = vmatprep.subr.mxu0 0.0
  %348 = vmatpush1.xpose.msra.mxu0 0.0
  %349 = vmatprep.subr.mxu0 0.0
  %350 = vmatpush1.xpose.msra.mxu0 0.0
  %351 = vmatprep.subr.mxu0 0.0
  %352 = vmatpush1.xpose.msra.mxu0 0.0
  %353 = vmatprep.subr.mxu0 0.0
  %354 = vmatpush1.xpose.msra.mxu0 0.0
  %355 = vmatprep.subr.mxu0 0.0
  %356 = vmatpush1.xpose.msra.mxu0 0.0
  %357 = vmatprep.subr.mxu0 0.0
  %358 = vmatpush1.xpose.msra.mxu0 0.0
  %359 = vmatprep.subr.mxu0 0.0
  %360 = vmatpush1.xpose.msra.mxu0 0.0
  %361 = vmatprep.subr.mxu0 0.0
  %362 = vmatpush1.xpose.msra.mxu0 0.0
  %363 = vmatprep.subr.mxu0 0.0
  %364 = vmatpush1.xpose.msra.mxu0 0.0
  %365 = vmatprep.subr.mxu0 0.0
  %366 = vmatpush1.xpose.msra.mxu0 0.0
  %367 = vmatprep.subr.mxu0 0.0
  %368 = vmatpush1.xpose.msra.mxu0 0.0
  %369 = vmatprep.subr.mxu0 0.0
  %370 = vmatpush1.xpose.msra.mxu0 0.0
  %371 = vmatprep.subr.mxu0 0.0
  %372 = vmatpush1.xpose.msra.mxu0 0.0
  %373 = vmatprep.subr.mxu0 0.0
  %374 = vmatpush1.xpose.msra.mxu0 0.0
  %375 = vmatprep.subr.mxu0 0.0
  %376 = vmatpush1.xpose.msra.mxu0 0.0
  %377 = vmatprep.subr.mxu0 0.0
  %378 = vmatpush1.xpose.msra.mxu0 0.0
  %379 = vmatprep.subr.mxu0 0.0
  %380 = vmatpush1.xpose.msra.mxu0 0.0
  %381 = vmatprep.subr.mxu0 0.0
  %382 = vmatpush1.xpose.msra.mxu0 0.0
  %383 = vmatprep.subr.mxu0 0.0
  %384 = vmatpush1.xpose.msra.mxu0 0.0
  %385 = vmatprep.subr.mxu0 0.0
  %386 = vmatpush1.xpose.msra.mxu0 0.0
  %387 = vmatprep.mubr.f32.mxu0 0.0
  %388 = vmatmul.mubr.f32.gmra.mrb[0].mxu0 %v318
  %v389 = vpop.f32.mrb[0].mxu0
  %v390 = vadd.f32 0.0, %v389
  %v391 = vpop.f32.mrb[0].mxu0
  %392 = vdwg.mxu0
  %vm393 = vcmask 64512
  %v394 = vsel %vm393, %v390, -inf
  %395 = vmax.xlane.f32.xlu0 %v394
  %v396 = vpop.xlane.xlu0 %395
  %v397 = vsub.f32 %v390, %v396
  %v398 = vmul.f32 %v397, 1.442695
  %v399 = vpow.pop %v398
  %v400 = vsel %vm393, %v399, 0.0
  %401 = vadd.xlane.f32.xlu0 %v400
  %v402 = vpop.xlane.xlu0 %401
  %v403 = vrcp.pop %v402
  %v404 = vmul.f32 %v399, %v403
  %v406 = vsel %vm393, %v404, 0
  %408 = vmatprep.subr.mxu0 0.0
  %409 = vmatpush1.msra.mxu0 %v308
  %410 = vmatprep.subr.mxu0 0.0
  %411 = vmatpush1.msra.mxu0 0.0
  %412 = vmatprep.subr.mxu0 0.0
  %413 = vmatpush1.msra.mxu0 0.0
  %414 = vmatprep.subr.mxu0 0.0
  %415 = vmatpush1.msra.mxu0 0.0
  %416 = vmatprep.subr.mxu0 0.0
  %417 = vmatpush1.msra.mxu0 0.0
  %418 = vmatprep.subr.mxu0 0.0
  %419 = vmatpush1.msra.mxu0 0.0
  %420 = vmatprep.subr.mxu0 0.0
  %421 = vmatpush1.msra.mxu0 0.0
  %422 = vmatprep.subr.mxu0 0.0
  %423 = vmatpush1.msra.mxu0 0.0
  %424 = vmatprep.subr.mxu0 0.0
  %425 = vmatpush1.msra.mxu0 0.0
  %426 = vmatprep.subr.mxu0 0.0
  %427 = vmatpush1.msra.mxu0 0.0
  %428 = vmatprep.subr.mxu0 0.0
  %429 = vmatpush1.msra.mxu0 0.0
  %430 = vmatprep.subr.mxu0 0.0
  %431 = vmatpush1.msra.mxu0 0.0
  %432 = vmatprep.subr.mxu0 0.0
  %433 = vmatpush1.msra.mxu0 0.0
  %434 = vmatprep.subr.mxu0 0.0
  %435 = vmatpush1.msra.mxu0 0.0
  %436 = vmatprep.subr.mxu0 0.0
  %437 = vmatpush1.msra.mxu0 0.0
  %438 = vmatprep.subr.mxu0 0.0
  %439 = vmatpush1.msra.mxu0 0.0
  %440 = vmatprep.subr.mxu0 0.0
  %441 = vmatpush1.msra.mxu0 0.0
  %442 = vmatprep.subr.mxu0 0.0
  %443 = vmatpush1.msra.mxu0 0.0
  %444 = vmatprep.subr.mxu0 0.0
  %445 = vmatpush1.msra.mxu0 0.0
  %446 = vmatprep.subr.mxu0 0.0
  %447 = vmatpush1.msra.mxu0 0.0
  %448 = vmatprep.subr.mxu0 0.0
  %449 = vmatpush1.msra.mxu0 0.0
  %450 = vmatprep.subr.mxu0 0.0
  %451 = vmatpush1.msra.mxu0 0.0
  %452 = vmatprep.subr.mxu0 0.0
  %453 = vmatpush1.msra.mxu0 0.0
  %454 = vmatprep.subr.mxu0 0.0
  %455 = vmatpush1.msra.mxu0 0.0
  %456 = vmatprep.subr.mxu0 0.0
  %457 = vmatpush1.msra.mxu0 0.0
  %458 = vmatprep.subr.mxu0 0.0
  %459 = vmatpush1.msra.mxu0 0.0
  %460 = vmatprep.subr.mxu0 0.0
  %461 = vmatpush1.msra.mxu0 0.0
  %462 = vmatprep.subr.mxu0 0.0
  %463 = vmatpush1.msra.mxu0 0.0
  %464 = vmatprep.subr.mxu0 0.0
  %465 = vmatpush1.msra.mxu0 0.0
  %466 = vmatprep.subr.mxu0 0.0
  %467 = vmatpush1.msra.mxu0 0.0
  %468 = vmatprep.subr.mxu0 0.0
  %469 = vmatpush1.msra.mxu0 0.0
  %470 = vmatprep.subr.mxu0 0.0
  %471 = vmatpush1.msra.mxu0 0.0
  %472 = vmatprep.mubr.f32.mxu0 0.0
  %473 = vmatmul.mubr.f32.gmra.mrb[0].mxu0 %v406
  %v474 = vpop.f32.mrb[0].mxu0
  %v475 = vadd.f32 0.0, %v474
  %v476 = vpop.f32.mrb[0].mxu0
  %477 = vdwg.mxu0
  %478 = vst.msk [vmem:[#allocation2] sm:$0xff] %vm316, %v475
  %479 = vrot.lane.b32.xlu0 %v231, 64
  %v480 = vpop.permute.xlu0 %479
  %481 = vrot.lane.b32.xlu0 %v233, 64
  %v482 = vpop.permute.xlu0 %481
  %v483 = vsel %vm316, %v480, 0
  %v485 = vsel %vm316, %v482, 0
  %487 = vmatprep.subr.mxu0 0.0
  %488 = vmatpush1.xpose.msra.mxu0 %v485
  %489 = vmatprep.subr.mxu0 0.0
  %490 = vmatpush1.xpose.msra.mxu0 0.0
  %491 = vmatprep.subr.mxu0 0.0
  %492 = vmatpush1.xpose.msra.mxu0 0.0
  %493 = vmatprep.subr.mxu0 0.0
  %494 = vmatpush1.xpose.msra.mxu0 0.0
  %495 = vmatprep.subr.mxu0 0.0
  %496 = vmatpush1.xpose.msra.mxu0 0.0
  %497 = vmatprep.subr.mxu0 0.0
  %498 = vmatpush1.xpose.msra.mxu0 0.0
  %499 = vmatprep.subr.mxu0 0.0
  %500 = vmatpush1.xpose.msra.mxu0 0.0
  %501 = vmatprep.subr.mxu0 0.0
  %502 = vmatpush1.xpose.msra.mxu0 0.0
  %503 = vmatprep.subr.mxu0 0.0
  %504 = vmatpush1.xpose.msra.mxu0 0.0
  %505 = vmatprep.subr.mxu0 0.0
  %506 = vmatpush1.xpose.msra.mxu0 0.0
  %507 = vmatprep.subr.mxu0 0.0
  %508 = vmatpush1.xpose.msra.mxu0 0.0
  %509 = vmatprep.subr.mxu0 0.0
  %510 = vmatpush1.xpose.msra.mxu0 0.0
  %511 = vmatprep.subr.mxu0 0.0
  %512 = vmatpush1.xpose.msra.mxu0 0.0
  %513 = vmatprep.subr.mxu0 0.0
  %514 = vmatpush1.xpose.msra.mxu0 0.0
  %515 = vmatprep.subr.mxu0 0.0
  %516 = vmatpush1.xpose.msra.mxu0 0.0
  %517 = vmatprep.subr.mxu0 0.0
  %518 = vmatpush1.xpose.msra.mxu0 0.0
  %519 = vmatprep.subr.mxu0 0.0
  %520 = vmatpush1.xpose.msra.mxu0 0.0
  %521 = vmatprep.subr.mxu0 0.0
  %522 = vmatpush1.xpose.msra.mxu0 0.0
  %523 = vmatprep.subr.mxu0 0.0
  %524 = vmatpush1.xpose.msra.mxu0 0.0
  %525 = vmatprep.subr.mxu0 0.0
  %526 = vmatpush1.xpose.msra.mxu0 0.0
  %527 = vmatprep.subr.mxu0 0.0
  %528 = vmatpush1.xpose.msra.mxu0 0.0
  %529 = vmatprep.subr.mxu0 0.0
  %530 = vmatpush1.xpose.msra.mxu0 0.0
  %531 = vmatprep.subr.mxu0 0.0
  %532 = vmatpush1.xpose.msra.mxu0 0.0
  %533 = vmatprep.subr.mxu0 0.0
  %534 = vmatpush1.xpose.msra.mxu0 0.0
  %535 = vmatprep.subr.mxu0 0.0
  %536 = vmatpush1.xpose.msra.mxu0 0.0
  %537 = vmatprep.subr.mxu0 0.0
  %538 = vmatpush1.xpose.msra.mxu0 0.0
  %539 = vmatprep.subr.mxu0 0.0
  %540 = vmatpush1.xpose.msra.mxu0 0.0
  %541 = vmatprep.subr.mxu0 0.0
  %542 = vmatpush1.xpose.msra.mxu0 0.0
  %543 = vmatprep.subr.mxu0 0.0
  %544 = vmatpush1.xpose.msra.mxu0 0.0
  %545 = vmatprep.subr.mxu0 0.0
  %546 = vmatpush1.xpose.msra.mxu0 0.0
  %547 = vmatprep.subr.mxu0 0.0
  %548 = vmatpush1.xpose.msra.mxu0 0.0
  %549 = vmatprep.subr.mxu0 0.0
  %550 = vmatpush1.xpose.msra.mxu0 0.0
  %551 = vmatprep.mubr.f32.mxu0 0.0
  %552 = vmatmul.mubr.f32.gmra.mrb[0].mxu0 %v483
  %v553 = vpop.f32.mrb[0].mxu0
  %v554 = vadd.f32 0.0, %v553
  %v555 = vpop.f32.mrb[0].mxu0
  %556 = vdwg.mxu0
  %v557 = vsel %vm393, %v554, -inf
  %558 = vmax.xlane.f32.xlu0 %v557
  %v559 = vpop.xlane.xlu0 %558
  %v560 = vsub.f32 %v554, %v559
  %v561 = vmul.f32 %v560, 1.442695
  %v562 = vpow.pop %v561
  %v563 = vsel %vm393, %v562, 0.0
  %564 = vadd.xlane.f32.xlu0 %v563
  %v565 = vpop.xlane.xlu0 %564
  %v566 = vrcp.pop %v565
  %v567 = vmul.f32 %v562, %v566
  %569 = vrot.lane.b32.xlu0 %v308, 64
  %v570 = vpop.permute.xlu0 %569
  %v573 = vsel %vm393, %v567, 0
  %575 = vmatprep.subr.mxu0 0.0
  %576 = vmatpush1.msra.mxu0 %v570
  %577 = vmatprep.subr.mxu0 0.0
  %578 = vmatpush1.msra.mxu0 0.0
  %579 = vmatprep.subr.mxu0 0.0
  %580 = vmatpush1.msra.mxu0 0.0
  %581 = vmatprep.subr.mxu0 0.0
  %582 = vmatpush1.msra.mxu0 0.0
  %583 = vmatprep.subr.mxu0 0.0
  %584 = vmatpush1.msra.mxu0 0.0
  %585 = vmatprep.subr.mxu0 0.0
  %586 = vmatpush1.msra.mxu0 0.0
  %587 = vmatprep.subr.mxu0 0.0
  %588 = vmatpush1.msra.mxu0 0.0
  %589 = vmatprep.subr.mxu0 0.0
  %590 = vmatpush1.msra.mxu0 0.0
  %591 = vmatprep.subr.mxu0 0.0
  %592 = vmatpush1.msra.mxu0 0.0
  %593 = vmatprep.subr.mxu0 0.0
  %594 = vmatpush1.msra.mxu0 0.0
  %595 = vmatprep.subr.mxu0 0.0
  %596 = vmatpush1.msra.mxu0 0.0
  %597 = vmatprep.subr.mxu0 0.0
  %598 = vmatpush1.msra.mxu0 0.0
  %599 = vmatprep.subr.mxu0 0.0
  %600 = vmatpush1.msra.mxu0 0.0
  %601 = vmatprep.subr.mxu0 0.0
  %602 = vmatpush1.msra.mxu0 0.0
  %603 = vmatprep.subr.mxu0 0.0
  %604 = vmatpush1.msra.mxu0 0.0
  %605 = vmatprep.subr.mxu0 0.0
  %606 = vmatpush1.msra.mxu0 0.0
  %607 = vmatprep.subr.mxu0 0.0
  %608 = vmatpush1.msra.mxu0 0.0
  %609 = vmatprep.subr.mxu0 0.0
  %610 = vmatpush1.msra.mxu0 0.0
  %611 = vmatprep.subr.mxu0 0.0
  %612 = vmatpush1.msra.mxu0 0.0
  %613 = vmatprep.subr.mxu0 0.0
  %614 = vmatpush1.msra.mxu0 0.0
  %615 = vmatprep.subr.mxu0 0.0
  %616 = vmatpush1.msra.mxu0 0.0
  %617 = vmatprep.subr.mxu0 0.0
  %618 = vmatpush1.msra.mxu0 0.0
  %619 = vmatprep.subr.mxu0 0.0
  %620 = vmatpush1.msra.mxu0 0.0
  %621 = vmatprep.subr.mxu0 0.0
  %622 = vmatpush1.msra.mxu0 0.0
  %623 = vmatprep.subr.mxu0 0.0
  %624 = vmatpush1.msra.mxu0 0.0
  %625 = vmatprep.subr.mxu0 0.0
  %626 = vmatpush1.msra.mxu0 0.0
  %627 = vmatprep.subr.mxu0 0.0
  %628 = vmatpush1.msra.mxu0 0.0
  %629 = vmatprep.subr.mxu0 0.0
  %630 = vmatpush1.msra.mxu0 0.0
  %631 = vmatprep.subr.mxu0 0.0
  %632 = vmatpush1.msra.mxu0 0.0
  %633 = vmatprep.subr.mxu0 0.0
  %634 = vmatpush1.msra.mxu0 0.0
  %635 = vmatprep.subr.mxu0 0.0
  %636 = vmatpush1.msra.mxu0 0.0
  %637 = vmatprep.subr.mxu0 0.0
  %638 = vmatpush1.msra.mxu0 0.0
  %639 = vmatprep.mubr.f32.mxu0 0.0
  %640 = vmatmul.mubr.f32.gmra.mrb[0].mxu0 %v573
  %v641 = vpop.f32.mrb[0].mxu0
  %v642 = vadd.f32 0.0, %v641
  %v643 = vpop.f32.mrb[0].mxu0
  %644 = vdwg.mxu0
  %646 = vrot.lane.b32.xlu0 %v642, 64
  %v647 = vpop.permute.xlu0 %646
  %vm649 = vcmask 1048064
  %650 = vst.msk [vmem:[#allocation2] sm:$0xff] %vm649, %v647
  %v652 = vsel %vm316, %v237, 0
  %v655 = vsel %vm316, %v239, 0
  %657 = vmatprep.subr.mxu0 0.0
  %658 = vmatpush1.xpose.msra.mxu0 %v655
  %659 = vmatprep.subr.mxu0 0.0
  %660 = vmatpush1.xpose.msra.mxu0 0.0
  %661 = vmatprep.subr.mxu0 0.0
  %662 = vmatpush1.xpose.msra.mxu0 0.0
  %663 = vmatprep.subr.mxu0 0.0
  %664 = vmatpush1.xpose.msra.mxu0 0.0
  %665 = vmatprep.subr.mxu0 0.0
  %666 = vmatpush1.xpose.msra.mxu0 0.0
  %667 = vmatprep.subr.mxu0 0.0
  %668 = vmatpush1.xpose.msra.mxu0 0.0
  %669 = vmatprep.subr.mxu0 0.0
  %670 = vmatpush1.xpose.msra.mxu0 0.0
  %671 = vmatprep.subr.mxu0 0.0
  %672 = vmatpush1.xpose.msra.mxu0 0.0
  %673 = vmatprep.subr.mxu0 0.0
  %674 = vmatpush1.xpose.msra.mxu0 0.0
  %675 = vmatprep.subr.mxu0 0.0
  %676 = vmatpush1.xpose.msra.mxu0 0.0
  %677 = vmatprep.subr.mxu0 0.0
  %678 = vmatpush1.xpose.msra.mxu0 0.0
  %679 = vmatprep.subr.mxu0 0.0
  %680 = vmatpush1.xpose.msra.mxu0 0.0
  %681 = vmatprep.subr.mxu0 0.0
  %682 = vmatpush1.xpose.msra.mxu0 0.0
  %683 = vmatprep.subr.mxu0 0.0
  %684 = vmatpush1.xpose.msra.mxu0 0.0
  %685 = vmatprep.subr.mxu0 0.0
  %686 = vmatpush1.xpose.msra.mxu0 0.0
  %687 = vmatprep.subr.mxu0 0.0
  %688 = vmatpush1.xpose.msra.mxu0 0.0
  %689 = vmatprep.subr.mxu0 0.0
  %690 = vmatpush1.xpose.msra.mxu0 0.0
  %691 = vmatprep.subr.mxu0 0.0
  %692 = vmatpush1.xpose.msra.mxu0 0.0
  %693 = vmatprep.subr.mxu0 0.0
  %694 = vmatpush1.xpose.msra.mxu0 0.0
  %695 = vmatprep.subr.mxu0 0.0
  %696 = vmatpush1.xpose.msra.mxu0 0.0
  %697 = vmatprep.subr.mxu0 0.0
  %698 = vmatpush1.xpose.msra.mxu0 0.0
  %699 = vmatprep.subr.mxu0 0.0
  %700 = vmatpush1.xpose.msra.mxu0 0.0
  %701 = vmatprep.subr.mxu0 0.0
  %702 = vmatpush1.xpose.msra.mxu0 0.0
  %703 = vmatprep.subr.mxu0 0.0
  %704 = vmatpush1.xpose.msra.mxu0 0.0
  %705 = vmatprep.subr.mxu0 0.0
  %706 = vmatpush1.xpose.msra.mxu0 0.0
  %707 = vmatprep.subr.mxu0 0.0
  %708 = vmatpush1.xpose.msra.mxu0 0.0
  %709 = vmatprep.subr.mxu0 0.0
  %710 = vmatpush1.xpose.msra.mxu0 0.0
  %711 = vmatprep.subr.mxu0 0.0
  %712 = vmatpush1.xpose.msra.mxu0 0.0
  %713 = vmatprep.subr.mxu0 0.0
  %714 = vmatpush1.xpose.msra.mxu0 0.0
  %715 = vmatprep.subr.mxu0 0.0
  %716 = vmatpush1.xpose.msra.mxu0 0.0
  %717 = vmatprep.subr.mxu0 0.0
  %718 = vmatpush1.xpose.msra.mxu0 0.0
  %719 = vmatprep.subr.mxu0 0.0
  %720 = vmatpush1.xpose.msra.mxu0 0.0
  %721 = vmatprep.mubr.f32.mxu0 0.0
  %722 = vmatmul.mubr.f32.gmra.mrb[0].mxu0 %v652
  %v723 = vpop.f32.mrb[0].mxu0
  %v724 = vadd.f32 0.0, %v723
  %v725 = vpop.f32.mrb[0].mxu0
  %726 = vdwg.mxu0
  %v727 = vsel %vm393, %v724, -inf
  %728 = vmax.xlane.f32.xlu0 %v727
  %v729 = vpop.xlane.xlu0 %728
  %v730 = vsub.f32 %v724, %v729
  %v731 = vmul.f32 %v730, 1.442695
  %v732 = vpow.pop %v731
  %v733 = vsel %vm393, %v732, 0.0
  %734 = vadd.xlane.f32.xlu0 %v733
  %v735 = vpop.xlane.xlu0 %734
  %v736 = vrcp.pop %v735
  %v737 = vmul.f32 %v732, %v736
  %v739 = vsel %vm393, %v737, 0
  %741 = vmatprep.subr.mxu0 0.0
  %742 = vmatpush1.msra.mxu0 %v313
  %743 = vmatprep.subr.mxu0 0.0
  %744 = vmatpush1.msra.mxu0 0.0
  %745 = vmatprep.subr.mxu0 0.0
  %746 = vmatpush1.msra.mxu0 0.0
  %747 = vmatprep.subr.mxu0 0.0
  %748 = vmatpush1.msra.mxu0 0.0
  %749 = vmatprep.subr.mxu0 0.0
  %750 = vmatpush1.msra.mxu0 0.0
  %751 = vmatprep.subr.mxu0 0.0
  %752 = vmatpush1.msra.mxu0 0.0
  %753 = vmatprep.subr.mxu0 0.0
  %754 = vmatpush1.msra.mxu0 0.0
  %755 = vmatprep.subr.mxu0 0.0
  %756 = vmatpush1.msra.mxu0 0.0
  %757 = vmatprep.subr.mxu0 0.0
  %758 = vmatpush1.msra.mxu0 0.0
  %759 = vmatprep.subr.mxu0 0.0
  %760 = vmatpush1.msra.mxu0 0.0
  %761 = vmatprep.subr.mxu0 0.0
  %762 = vmatpush1.msra.mxu0 0.0
  %763 = vmatprep.subr.mxu0 0.0
  %764 = vmatpush1.msra.mxu0 0.0
  %765 = vmatprep.subr.mxu0 0.0
  %766 = vmatpush1.msra.mxu0 0.0
  %767 = vmatprep.subr.mxu0 0.0
  %768 = vmatpush1.msra.mxu0 0.0
  %769 = vmatprep.subr.mxu0 0.0
  %770 = vmatpush1.msra.mxu0 0.0
  %771 = vmatprep.subr.mxu0 0.0
  %772 = vmatpush1.msra.mxu0 0.0
  %773 = vmatprep.subr.mxu0 0.0
  %774 = vmatpush1.msra.mxu0 0.0
  %775 = vmatprep.subr.mxu0 0.0
  %776 = vmatpush1.msra.mxu0 0.0
  %777 = vmatprep.subr.mxu0 0.0
  %778 = vmatpush1.msra.mxu0 0.0
  %779 = vmatprep.subr.mxu0 0.0
  %780 = vmatpush1.msra.mxu0 0.0
  %781 = vmatprep.subr.mxu0 0.0
  %782 = vmatpush1.msra.mxu0 0.0
  %783 = vmatprep.subr.mxu0 0.0
  %784 = vmatpush1.msra.mxu0 0.0
  %785 = vmatprep.subr.mxu0 0.0
  %786 = vmatpush1.msra.mxu0 0.0
  %787 = vmatprep.subr.mxu0 0.0
  %788 = vmatpush1.msra.mxu0 0.0
  %789 = vmatprep.subr.mxu0 0.0
  %790 = vmatpush1.msra.mxu0 0.0
  %791 = vmatprep.subr.mxu0 0.0
  %792 = vmatpush1.msra.mxu0 0.0
  %793 = vmatprep.subr.mxu0 0.0
  %794 = vmatpush1.msra.mxu0 0.0
  %795 = vmatprep.subr.mxu0 0.0
  %796 = vmatpush1.msra.mxu0 0.0
  %797 = vmatprep.subr.mxu0 0.0
  %798 = vmatpush1.msra.mxu0 0.0
  %799 = vmatprep.subr.mxu0 0.0
  %800 = vmatpush1.msra.mxu0 0.0
  %801 = vmatprep.subr.mxu0 0.0
  %802 = vmatpush1.msra.mxu0 0.0
  %803 = vmatprep.subr.mxu0 0.0
  %804 = vmatpush1.msra.mxu0 0.0
  %805 = vmatprep.mubr.f32.mxu0 0.0
  %806 = vmatmul.mubr.f32.gmra.mrb[0].mxu0 %v739
  %v807 = vpop.f32.mrb[0].mxu0
  %v808 = vadd.f32 0.0, %v807
  %v809 = vpop.f32.mrb[0].mxu0
  %810 = vdwg.mxu0
  %811 = vst.msk [vmem:[#allocation2 + $0x8] sm:$0xff] %vm316, %v808
  %812 = vrot.lane.b32.xlu0 %v237, 64
  %v813 = vpop.permute.xlu0 %812
  %814 = vrot.lane.b32.xlu0 %v239, 64
  %v815 = vpop.permute.xlu0 %814
  %v816 = vsel %vm316, %v813, 0
  %v818 = vsel %vm316, %v815, 0
  %820 = vmatprep.subr.mxu0 0.0
  %821 = vmatpush1.xpose.msra.mxu0 %v818
  %822 = vmatprep.subr.mxu0 0.0
  %823 = vmatpush1.xpose.msra.mxu0 0.0
  %824 = vmatprep.subr.mxu0 0.0
  %825 = vmatpush1.xpose.msra.mxu0 0.0
  %826 = vmatprep.subr.mxu0 0.0
  %827 = vmatpush1.xpose.msra.mxu0 0.0
  %828 = vmatprep.subr.mxu0 0.0
  %829 = vmatpush1.xpose.msra.mxu0 0.0
  %830 = vmatprep.subr.mxu0 0.0
  %831 = vmatpush1.xpose.msra.mxu0 0.0
  %832 = vmatprep.subr.mxu0 0.0
  %833 = vmatpush1.xpose.msra.mxu0 0.0
  %834 = vmatprep.subr.mxu0 0.0
  %835 = vmatpush1.xpose.msra.mxu0 0.0
  %836 = vmatprep.subr.mxu0 0.0
  %837 = vmatpush1.xpose.msra.mxu0 0.0
  %838 = vmatprep.subr.mxu0 0.0
  %839 = vmatpush1.xpose.msra.mxu0 0.0
  %840 = vmatprep.subr.mxu0 0.0
  %841 = vmatpush1.xpose.msra.mxu0 0.0
  %842 = vmatprep.subr.mxu0 0.0
  %843 = vmatpush1.xpose.msra.mxu0 0.0
  %844 = vmatprep.subr.mxu0 0.0
  %845 = vmatpush1.xpose.msra.mxu0 0.0
  %846 = vmatprep.subr.mxu0 0.0
  %847 = vmatpush1.xpose.msra.mxu0 0.0
  %848 = vmatprep.subr.mxu0 0.0
  %849 = vmatpush1.xpose.msra.mxu0 0.0
  %850 = vmatprep.subr.mxu0 0.0
  %851 = vmatpush1.xpose.msra.mxu0 0.0
  %852 = vmatprep.subr.mxu0 0.0
  %853 = vmatpush1.xpose.msra.mxu0 0.0
  %854 = vmatprep.subr.mxu0 0.0
  %855 = vmatpush1.xpose.msra.mxu0 0.0
  %856 = vmatprep.subr.mxu0 0.0
  %857 = vmatpush1.xpose.msra.mxu0 0.0
  %858 = vmatprep.subr.mxu0 0.0
  %859 = vmatpush1.xpose.msra.mxu0 0.0
  %860 = vmatprep.subr.mxu0 0.0
  %861 = vmatpush1.xpose.msra.mxu0 0.0
  %862 = vmatprep.subr.mxu0 0.0
  %863 = vmatpush1.xpose.msra.mxu0 0.0
  %864 = vmatprep.subr.mxu0 0.0
  %865 = vmatpush1.xpose.msra.mxu0 0.0
  %866 = vmatprep.subr.mxu0 0.0
  %867 = vmatpush1.xpose.msra.mxu0 0.0
  %868 = vmatprep.subr.mxu0 0.0
  %869 = vmatpush1.xpose.msra.mxu0 0.0
  %870 = vmatprep.subr.mxu0 0.0
  %871 = vmatpush1.xpose.msra.mxu0 0.0
  %872 = vmatprep.subr.mxu0 0.0
  %873 = vmatpush1.xpose.msra.mxu0 0.0
  %874 = vmatprep.subr.mxu0 0.0
  %875 = vmatpush1.xpose.msra.mxu0 0.0
  %876 = vmatprep.subr.mxu0 0.0
  %877 = vmatpush1.xpose.msra.mxu0 0.0
  %878 = vmatprep.subr.mxu0 0.0
  %879 = vmatpush1.xpose.msra.mxu0 0.0
  %880 = vmatprep.subr.mxu0 0.0
  %881 = vmatpush1.xpose.msra.mxu0 0.0
  %882 = vmatprep.subr.mxu0 0.0
  %883 = vmatpush1.xpose.msra.mxu0 0.0
  %884 = vmatprep.mubr.f32.mxu0 0.0
  %885 = vmatmul.mubr.f32.gmra.mrb[0].mxu0 %v816
  %v886 = vpop.f32.mrb[0].mxu0
  %v887 = vadd.f32 0.0, %v886
  %v888 = vpop.f32.mrb[0].mxu0
  %889 = vdwg.mxu0
  %v890 = vsel %vm393, %v887, -inf
  %891 = vmax.xlane.f32.xlu0 %v890
  %v892 = vpop.xlane.xlu0 %891
  %v893 = vsub.f32 %v887, %v892
  %v894 = vmul.f32 %v893, 1.442695
  %v895 = vpow.pop %v894
  %v896 = vsel %vm393, %v895, 0.0
  %897 = vadd.xlane.f32.xlu0 %v896
  %v898 = vpop.xlane.xlu0 %897
  %v899 = vrcp.pop %v898
  %v900 = vmul.f32 %v895, %v899
  %902 = vrot.lane.b32.xlu0 %v313, 64
  %v903 = vpop.permute.xlu0 %902
  %v906 = vsel %vm393, %v900, 0
  %908 = vmatprep.subr.mxu0 0.0
  %909 = vmatpush1.msra.mxu0 %v903
  %910 = vmatprep.subr.mxu0 0.0
  %911 = vmatpush1.msra.mxu0 0.0
  %912 = vmatprep.subr.mxu0 0.0
  %913 = vmatpush1.msra.mxu0 0.0
  %914 = vmatprep.subr.mxu0 0.0
  %915 = vmatpush1.msra.mxu0 0.0
  %916 = vmatprep.subr.mxu0 0.0
  %917 = vmatpush1.msra.mxu0 0.0
  %918 = vmatprep.subr.mxu0 0.0
  %919 = vmatpush1.msra.mxu0 0.0
  %920 = vmatprep.subr.mxu0 0.0
  %921 = vmatpush1.msra.mxu0 0.0
  %922 = vmatprep.subr.mxu0 0.0
  %923 = vmatpush1.msra.mxu0 0.0
  %924 = vmatprep.subr.mxu0 0.0
  %925 = vmatpush1.msra.mxu0 0.0
  %926 = vmatprep.subr.mxu0 0.0
  %927 = vmatpush1.msra.mxu0 0.0
  %928 = vmatprep.subr.mxu0 0.0
  %929 = vmatpush1.msra.mxu0 0.0
  %930 = vmatprep.subr.mxu0 0.0
  %931 = vmatpush1.msra.mxu0 0.0
  %932 = vmatprep.subr.mxu0 0.0
  %933 = vmatpush1.msra.mxu0 0.0
  %934 = vmatprep.subr.mxu0 0.0
  %935 = vmatpush1.msra.mxu0 0.0
  %936 = vmatprep.subr.mxu0 0.0
  %937 = vmatpush1.msra.mxu0 0.0
  %938 = vmatprep.subr.mxu0 0.0
  %939 = vmatpush1.msra.mxu0 0.0
  %940 = vmatprep.subr.mxu0 0.0
  %941 = vmatpush1.msra.mxu0 0.0
  %942 = vmatprep.subr.mxu0 0.0
  %943 = vmatpush1.msra.mxu0 0.0
  %944 = vmatprep.subr.mxu0 0.0
  %945 = vmatpush1.msra.mxu0 0.0
  %946 = vmatprep.subr.mxu0 0.0
  %947 = vmatpush1.msra.mxu0 0.0
  %948 = vmatprep.subr.mxu0 0.0
  %949 = vmatpush1.msra.mxu0 0.0
  %950 = vmatprep.subr.mxu0 0.0
  %951 = vmatpush1.msra.mxu0 0.0
  %952 = vmatprep.subr.mxu0 0.0
  %953 = vmatpush1.msra.mxu0 0.0
  %954 = vmatprep.subr.mxu0 0.0
  %955 = vmatpush1.msra.mxu0 0.0
  %956 = vmatprep.subr.mxu0 0.0
  %957 = vmatpush1.msra.mxu0 0.0
  %958 = vmatprep.subr.mxu0 0.0
  %959 = vmatpush1.msra.mxu0 0.0
  %960 = vmatprep.subr.mxu0 0.0
  %961 = vmatpush1.msra.mxu0 0.0
  %962 = vmatprep.subr.mxu0 0.0
  %963 = vmatpush1.msra.mxu0 0.0
  %964 = vmatprep.subr.mxu0 0.0
  %965 = vmatpush1.msra.mxu0 0.0
  %966 = vmatprep.subr.mxu0 0.0
  %967 = vmatpush1.msra.mxu0 0.0
  %968 = vmatprep.subr.mxu0 0.0
  %969 = vmatpush1.msra.mxu0 0.0
  %970 = vmatprep.subr.mxu0 0.0
  %971 = vmatpush1.msra.mxu0 0.0
  %972 = vmatprep.mubr.f32.mxu0 0.0
  %973 = vmatmul.mubr.f32.gmra.mrb[0].mxu0 %v906
  %v974 = vpop.f32.mrb[0].mxu0
  %v975 = vadd.f32 0.0, %v974
  %v976 = vpop.f32.mrb[0].mxu0
  %977 = vdwg.mxu0
  %979 = vrot.lane.b32.xlu0 %v975, 64
  %v980 = vpop.permute.xlu0 %979
  %982 = vst.msk [vmem:[#allocation2 + $0x8] sm:$0xff] %vm649, %v980
  %v983 = vld [vmem:[#allocation2] sm:$0xff]
  %v984 = vld [vmem:[#allocation2 + $0x8] sm:$0xff]
  %v985 = vld [vmem:[%s5] sm:$0xff]
  %v986 = vld [vmem:[%s5 + $0x8] sm:$0xff]
  %v987 = vld [vmem:[%s5 + $0x10] sm:$0xff]
  %v988 = vld [vmem:[%s5 + $0x18] sm:$0xff]
  %v989 = vld [vmem:[%s5 + $0x20] sm:$0xff]
  %v990 = vld [vmem:[%s5 + $0x28] sm:$0xff]
  %v991 = vld [vmem:[%s5 + $0x30] sm:$0xff]
  %v992 = vld [vmem:[%s5 + $0x38] sm:$0xff]
  %v993 = vld [vmem:[%s5 + $0x40] sm:$0xff]
  %v994 = vld [vmem:[%s5 + $0x48] sm:$0xff]
  %v995 = vld [vmem:[%s5 + $0x50] sm:$0xff]
  %v996 = vld [vmem:[%s5 + $0x58] sm:$0xff]
  %v997 = vld [vmem:[%s5 + $0x60] sm:$0xff]
  %v998 = vld [vmem:[%s5 + $0x68] sm:$0xff]
  %v999 = vld [vmem:[%s5 + $0x70] sm:$0xff]
  %v1000 = vld [vmem:[%s5 + $0x78] sm:$0xff]
  %v1001 = vld [vmem:[%s6] sm:$0x1]
  %v1003 = vlaneseq
  %v1004 = vshrl.u32 %v1003, 7
  %v1005 = vsub.s32 0, %v1004
  %v1006 = vrot.slane %v1001, %v1005
  %1008 = vmatprep.subr.mxu0 0.0
  %1009 = vmatpush1.msra.mxu0 %v985
  %1010 = vmatprep.subr.mxu0 0.0
  %1011 = vmatpush1.msra.mxu0 %v986
  %1012 = vmatprep.subr.mxu0 0.0
  %1013 = vmatpush1.msra.mxu0 %v987
  %1014 = vmatprep.subr.mxu0 0.0
  %1015 = vmatpush1.msra.mxu0 %v988
  %1016 = vmatprep.subr.mxu0 0.0
  %1017 = vmatpush1.msra.mxu0 %v989
  %1018 = vmatprep.subr.mxu0 0.0
  %1019 = vmatpush1.msra.mxu0 %v990
  %1020 = vmatprep.subr.mxu0 0.0
  %1021 = vmatpush1.msra.mxu0 %v991
  %1022 = vmatprep.subr.mxu0 0.0
  %1023 = vmatpush1.msra.mxu0 %v992
  %1024 = vmatprep.subr.mxu0 0.0
  %1025 = vmatpush1.msra.mxu0 %v993
  %1026 = vmatprep.subr.mxu0 0.0
  %1027 = vmatpush1.msra.mxu0 %v994
  %1028 = vmatprep.subr.mxu0 0.0
  %1029 = vmatpush1.msra.mxu0 %v995
  %1030 = vmatprep.subr.mxu0 0.0
  %1031 = vmatpush1.msra.mxu0 %v996
  %1032 = vmatprep.subr.mxu0 0.0
  %1033 = vmatpush1.msra.mxu0 %v997
  %1034 = vmatprep.subr.mxu0 0.0
  %1035 = vmatpush1.msra.mxu0 %v998
  %1036 = vmatprep.subr.mxu0 0.0
  %1037 = vmatpush1.msra.mxu0 %v999
  %1038 = vmatprep.subr.mxu0 0.0
  %1039 = vmatpush1.msra.mxu0 %v1000
  %1040 = vmatprep.subr.mxu0 0.0
  %1041 = vmatpush1.msra.mxu0 0.0
  %1042 = vmatprep.subr.mxu0 0.0
  %1043 = vmatpush1.msra.mxu0 0.0
  %1044 = vmatprep.subr.mxu0 0.0
  %1045 = vmatpush1.msra.mxu0 0.0
  %1046 = vmatprep.subr.mxu0 0.0
  %1047 = vmatpush1.msra.mxu0 0.0
  %1048 = vmatprep.subr.mxu0 0.0
  %1049 = vmatpush1.msra.mxu0 0.0
  %1050 = vmatprep.subr.mxu0 0.0
  %1051 = vmatpush1.msra.mxu0 0.0
  %1052 = vmatprep.subr.mxu0 0.0
  %1053 = vmatpush1.msra.mxu0 0.0
  %1054 = vmatprep.subr.mxu0 0.0
  %1055 = vmatpush1.msra.mxu0 0.0
  %1056 = vmatprep.subr.mxu0 0.0
  %1057 = vmatpush1.msra.mxu0 0.0
  %1058 = vmatprep.subr.mxu0 0.0
  %1059 = vmatpush1.msra.mxu0 0.0
  %1060 = vmatprep.subr.mxu0 0.0
  %1061 = vmatpush1.msra.mxu0 0.0
  %1062 = vmatprep.subr.mxu0 0.0
  %1063 = vmatpush1.msra.mxu0 0.0
  %1064 = vmatprep.subr.mxu0 0.0
  %1065 = vmatpush1.msra.mxu0 0.0
  %1066 = vmatprep.subr.mxu0 0.0
  %1067 = vmatpush1.msra.mxu0 0.0
  %1068 = vmatprep.subr.mxu0 0.0
  %1069 = vmatpush1.msra.mxu0 0.0
  %1070 = vmatprep.subr.mxu0 0.0
  %1071 = vmatpush1.msra.mxu0 0.0
  %1072 = vmatprep.mubr.f32.mxu0 0.0
  %1073 = vmatmul.mubr.f32.gmra.mrb[0].mxu0 %v983
  %v1074 = vpop.f32.mrb[0].mxu0
  %v1075 = vadd.f32 %v1006, %v1074
  %v1076 = vpop.f32.mrb[0].mxu0
  %1077 = vmatprep.mubr.f32.mxu0 0.0
  %1078 = vmatmul.mubr.f32.gmra.mrb[0].mxu0 %v984
  %v1079 = vpop.f32.mrb[0].mxu0
  %v1080 = vadd.f32 %v1006, %v1079
  %v1081 = vpop.f32.mrb[0].mxu0
  %1082 = vdwg.mxu0
  %v1083 = vadd.f32 %v1075, %v97
  %v1084 = vadd.f32 %v1080, %v98
  %v1085 = vld [vmem:[%s7] sm:$0x1]
  %v1086 = vld [vmem:[%s8] sm:$0x1]
  %1087 = vadd.xlane.f32.xlu0 %v1083
  %v1088 = vpop.xlane.xlu0 %1087
  %1089 = vadd.xlane.f32.xlu0 %v1084
  %v1090 = vpop.xlane.xlu0 %1089
  %v1091 = vmul.f32 %v1088, %v64
  %v1092 = vmul.f32 %v1090, %v64
  %v1093 = vsub.f32 %v1083, %v1091
  %v1094 = vsub.f32 %v1084, %v1092
  %v1095 = vmul.f32 %v1093, %v1093
  %v1096 = vmul.f32 %v1094, %v1094
  %1097 = vadd.xlane.f32.xlu0 %v1095
  %v1098 = vpop.xlane.xlu0 %1097
  %1099 = vadd.xlane.f32.xlu0 %v1096
  %v1100 = vpop.xlane.xlu0 %1099
  %v1101 = vmul.f32 %v1098, %v64
  %v1102 = vmul.f32 %v1100, %v64
  %v1103 = vadd.f32 %v1101, 1e-12
  %v1104 = vadd.f32 %v1102, 1e-12
  %v1105 = vrsqrt.pop %v1103
  %v1106 = vrsqrt.pop %v1104
  %v1107 = vmul.f32 %v1093, %v1105
  %v1108 = vmul.f32 %v1094, %v1106
  %v1110 = vlaneseq
  %v1111 = vshrl.u32 %v1110, 7
  %v1112 = vsub.s32 0, %v1111
  %v1113 = vrot.slane %v1085, %v1112
  %v1115 = vmul.f32 %v1107, %v1113
  %v1116 = vmul.f32 %v1108, %v1113
  %v1118 = vlaneseq
  %v1119 = vshrl.u32 %v1118, 7
  %v1120 = vsub.s32 0, %v1119
  %v1121 = vrot.slane %v1086, %v1120
  %v1123 = vadd.f32 %v1115, %v1121
  %v1124 = vadd.f32 %v1116, %v1121
  %v1125 = vld [vmem:[%s9] sm:$0xff]
  %v1126 = vld [vmem:[%s9 + $0x8] sm:$0xff]
  %v1127 = vld [vmem:[%s9 + $0x10] sm:$0xff]
  %v1128 = vld [vmem:[%s9 + $0x18] sm:$0xff]
  %v1129 = vld [vmem:[%s9 + $0x20] sm:$0xff]
  %v1130 = vld [vmem:[%s9 + $0x28] sm:$0xff]
  %v1131 = vld [vmem:[%s9 + $0x30] sm:$0xff]
  %v1132 = vld [vmem:[%s9 + $0x38] sm:$0xff]
  %v1133 = vld [vmem:[%s9 + $0x40] sm:$0xff]
  %v1134 = vld [vmem:[%s9 + $0x48] sm:$0xff]
  %v1135 = vld [vmem:[%s9 + $0x50] sm:$0xff]
  %v1136 = vld [vmem:[%s9 + $0x58] sm:$0xff]
  %v1137 = vld [vmem:[%s9 + $0x60] sm:$0xff]
  %v1138 = vld [vmem:[%s9 + $0x68] sm:$0xff]
  %v1139 = vld [vmem:[%s9 + $0x70] sm:$0xff]
  %v1140 = vld [vmem:[%s9 + $0x78] sm:$0xff]
  %v1141 = vld [vmem:[%s9 + $0x80] sm:$0xff]
  %v1142 = vld [vmem:[%s9 + $0x88] sm:$0xff]
  %v1143 = vld [vmem:[%s9 + $0x90] sm:$0xff]
  %v1144 = vld [vmem:[%s9 + $0x98] sm:$0xff]
  %v1145 = vld [vmem:[%s9 + $0xa0] sm:$0xff]
  %v1146 = vld [vmem:[%s9 + $0xa8] sm:$0xff]
  %v1147 = vld [vmem:[%s9 + $0xb0] sm:$0xff]
  %v1148 = vld [vmem:[%s9 + $0xb8] sm:$0xff]
  %v1149 = vld [vmem:[%s9 + $0xc0] sm:$0xff]
  %v1150 = vld [vmem:[%s9 + $0xc8] sm:$0xff]
  %v1151 = vld [vmem:[%s9 + $0xd0] sm:$0xff]
  %v1152 = vld [vmem:[%s9 + $0xd8] sm:$0xff]
  %v1153 = vld [vmem:[%s9 + $0xe0] sm:$0xff]
  %v1154 = vld [vmem:[%s9 + $0xe8] sm:$0xff]
  %v1155 = vld [vmem:[%s9 + $0xf0] sm:$0xff]
  %v1156 = vld [vmem:[%s9 + $0xf8] sm:$0xff]
  %v1157 = vld [vmem:[%s10] sm:$0x3]
  %v1159 = vlaneseq
  %v1160 = vshrl.u32 %v1159, 7
  %v1161 = vsub.s32 0, %v1160
  %v1162 = vrot.slane %v1157, %v1161
  %v1163 = vlaneseq
  %v1164 = vshrl.u32 %v1163, 7
  %v1165 = vsub.s32 1, %v1164
  %v1166 = vrot.slane %v1157, %v1165
  %1169 = vmatprep.subr.mxu0 %v1126
  %1170 = vmatpush1.msra.mxu0 %v1125
  %1171 = vmatprep.subr.mxu0 %v1128
  %1172 = vmatpush1.msra.mxu0 %v1127
  %1173 = vmatprep.subr.mxu0 %v1130
  %1174 = vmatpush1.msra.mxu0 %v1129
  %1175 = vmatprep.subr.mxu0 %v1132
  %1176 = vmatpush1.msra.mxu0 %v1131
  %1177 = vmatprep.subr.mxu0 %v1134
  %1178 = vmatpush1.msra.mxu0 %v1133
  %1179 = vmatprep.subr.mxu0 %v1136
  %1180 = vmatpush1.msra.mxu0 %v1135
  %1181 = vmatprep.subr.mxu0 %v1138
  %1182 = vmatpush1.msra.mxu0 %v1137
  %1183 = vmatprep.subr.mxu0 %v1140
  %1184 = vmatpush1.msra.mxu0 %v1139
  %1185 = vmatprep.subr.mxu0 %v1142
  %1186 = vmatpush1.msra.mxu0 %v1141
  %1187 = vmatprep.subr.mxu0 %v1144
  %1188 = vmatpush1.msra.mxu0 %v1143
  %1189 = vmatprep.subr.mxu0 %v1146
  %1190 = vmatpush1.msra.mxu0 %v1145
  %1191 = vmatprep.subr.mxu0 %v1148
  %1192 = vmatpush1.msra.mxu0 %v1147
  %1193 = vmatprep.subr.mxu0 %v1150
  %1194 = vmatpush1.msra.mxu0 %v1149
  %1195 = vmatprep.subr.mxu0 %v1152
  %1196 = vmatpush1.msra.mxu0 %v1151
  %1197 = vmatprep.subr.mxu0 %v1154
  %1198 = vmatpush1.msra.mxu0 %v1153
  %1199 = vmatprep.subr.mxu0 %v1156
  %1200 = vmatpush1.msra.mxu0 %v1155
  %1201 = vmatprep.subr.mxu0 0.0
  %1202 = vmatpush1.msra.mxu0 0.0
  %1203 = vmatprep.subr.mxu0 0.0
  %1204 = vmatpush1.msra.mxu0 0.0
  %1205 = vmatprep.subr.mxu0 0.0
  %1206 = vmatpush1.msra.mxu0 0.0
  %1207 = vmatprep.subr.mxu0 0.0
  %1208 = vmatpush1.msra.mxu0 0.0
  %1209 = vmatprep.subr.mxu0 0.0
  %1210 = vmatpush1.msra.mxu0 0.0
  %1211 = vmatprep.subr.mxu0 0.0
  %1212 = vmatpush1.msra.mxu0 0.0
  %1213 = vmatprep.subr.mxu0 0.0
  %1214 = vmatpush1.msra.mxu0 0.0
  %1215 = vmatprep.subr.mxu0 0.0
  %1216 = vmatpush1.msra.mxu0 0.0
  %1217 = vmatprep.subr.mxu0 0.0
  %1218 = vmatpush1.msra.mxu0 0.0
  %1219 = vmatprep.subr.mxu0 0.0
  %1220 = vmatpush1.msra.mxu0 0.0
  %1221 = vmatprep.subr.mxu0 0.0
  %1222 = vmatpush1.msra.mxu0 0.0
  %1223 = vmatprep.subr.mxu0 0.0
  %1224 = vmatpush1.msra.mxu0 0.0
  %1225 = vmatprep.subr.mxu0 0.0
  %1226 = vmatpush1.msra.mxu0 0.0
  %1227 = vmatprep.subr.mxu0 0.0
  %1228 = vmatpush1.msra.mxu0 0.0
  %1229 = vmatprep.subr.mxu0 0.0
  %1230 = vmatpush1.msra.mxu0 0.0
  %1231 = vmatprep.subr.mxu0 0.0
  %1232 = vmatpush1.msra.mxu0 0.0
  %1233 = vmatprep.mubr.f32.mxu0 0.0
  %1234 = vmatmul.mubr.f32.gmra.mrb[0].mxu0 %v1123
  %v1235 = vpop.f32.mrb[0].mxu0
  %v1236 = vadd.f32 %v1162, %v1235
  %v1237 = vpop.f32.mrb[0].mxu0
  %v1238 = vadd.f32 %v1166, %v1237
  %1239 = vmatprep.mubr.f32.mxu0 0.0
  %1240 = vmatmul.mubr.f32.gmra.mrb[0].mxu0 %v1124
  %v1241 = vpop.f32.mrb[0].mxu0
  %v1242 = vadd.f32 %v1162, %v1241
  %v1243 = vpop.f32.mrb[0].mxu0
  %v1244 = vadd.f32 %v1166, %v1243
  %1245 = vdwg.mxu0
  %v1246 = vmul.f32 %v1236, 0.5
  %v1247 = vmul.f32 %v1238, 0.5
  %v1248 = vmul.f32 %v1242, 0.5
  %v1249 = vmul.f32 %v1244, 0.5
  %v1250 = vmul.f32 %v1236, 0.044715
  %v1251 = vmul.f32 %v1238, 0.044715
  %v1252 = vmul.f32 %v1242, 0.044715
  %v1253 = vmul.f32 %v1244, 0.044715
  %v1254 = vmul.f32 %v1250, %v1236
  %v1255 = vmul.f32 %v1251, %v1238
  %v1256 = vmul.f32 %v1252, %v1242
  %v1257 = vmul.f32 %v1253, %v1244
  %v1258 = vmul.f32 %v1254, %v1236
  %v1259 = vmul.f32 %v1255, %v1238
  %v1260 = vmul.f32 %v1256, %v1242
  %v1261 = vmul.f32 %v1257, %v1244
  %v1262 = vadd.f32 %v1236, %v1258
  %v1263 = vadd.f32 %v1238, %v1259
  %v1264 = vadd.f32 %v1242, %v1260
  %v1265 = vadd.f32 %v1244, %v1261
  %v1266 = vmul.f32 %v1262, 0.7978846
  %v1267 = vmul.f32 %v1263, 0.7978846
  %v1268 = vmul.f32 %v1264, 0.7978846
  %v1269 = vmul.f32 %v1265, 0.7978846
  %v1270 = vtanh.pop %v1266
  %v1271 = vtanh.pop %v1267
  %v1272 = vtanh.pop %v1268
  %v1273 = vtanh.pop %v1269
  %v1274 = vadd.f32 %v1270, 1.0
  %v1275 = vadd.f32 %v1271, 1.0
  %v1276 = vadd.f32 %v1272, 1.0
  %v1277 = vadd.f32 %v1273, 1.0
  %v1278 = vmul.f32 %v1246, %v1274
  %v1279 = vmul.f32 %v1247, %v1275
  %v1280 = vmul.f32 %v1248, %v1276
  %v1281 = vmul.f32 %v1249, %v1277
  %v1282 = vld [vmem:[%s11] sm:$0xff]
  %v1283 = vld [vmem:[%s11 + $0x8] sm:$0xff]
  %v1284 = vld [vmem:[%s11 + $0x10] sm:$0xff]
  %v1285 = vld [vmem:[%s11 + $0x18] sm:$0xff]
  %v1286 = vld [vmem:[%s11 + $0x20] sm:$0xff]
  %v1287 = vld [vmem:[%s11 + $0x28] sm:$0xff]
  %v1288 = vld [vmem:[%s11 + $0x30] sm:$0xff]
  %v1289 = vld [vmem:[%s11 + $0x38] sm:$0xff]
  %v1290 = vld [vmem:[%s11 + $0x40] sm:$0xff]
  %v1291 = vld [vmem:[%s11 + $0x48] sm:$0xff]
  %v1292 = vld [vmem:[%s11 + $0x50] sm:$0xff]
  %v1293 = vld [vmem:[%s11 + $0x58] sm:$0xff]
  %v1294 = vld [vmem:[%s11 + $0x60] sm:$0xff]
  %v1295 = vld [vmem:[%s11 + $0x68] sm:$0xff]
  %v1296 = vld [vmem:[%s11 + $0x70] sm:$0xff]
  %v1297 = vld [vmem:[%s11 + $0x78] sm:$0xff]
  %v1298 = vld [vmem:[%s11 + $0x80] sm:$0xff]
  %v1299 = vld [vmem:[%s11 + $0x88] sm:$0xff]
  %v1300 = vld [vmem:[%s11 + $0x90] sm:$0xff]
  %v1301 = vld [vmem:[%s11 + $0x98] sm:$0xff]
  %v1302 = vld [vmem:[%s11 + $0xa0] sm:$0xff]
  %v1303 = vld [vmem:[%s11 + $0xa8] sm:$0xff]
  %v1304 = vld [vmem:[%s11 + $0xb0] sm:$0xff]
  %v1305 = vld [vmem:[%s11 + $0xb8] sm:$0xff]
  %v1306 = vld [vmem:[%s11 + $0xc0] sm:$0xff]
  %v1307 = vld [vmem:[%s11 + $0xc8] sm:$0xff]
  %v1308 = vld [vmem:[%s11 + $0xd0] sm:$0xff]
  %v1309 = vld [vmem:[%s11 + $0xd8] sm:$0xff]
  %v1310 = vld [vmem:[%s11 + $0xe0] sm:$0xff]
  %v1311 = vld [vmem:[%s11 + $0xe8] sm:$0xff]
  %v1312 = vld [vmem:[%s11 + $0xf0] sm:$0xff]
  %v1313 = vld [vmem:[%s11 + $0xf8] sm:$0xff]
  %v1314 = vld [vmem:[%s12] sm:$0x1]
  %v1316 = vlaneseq
  %v1317 = vshrl.u32 %v1316, 7
  %v1318 = vsub.s32 0, %v1317
  %v1319 = vrot.slane %v1314, %v1318
  %1321 = vmatprep.subr.mxu0 0.0
  %1322 = vmatpush1.msra.mxu0 %v1282
  %1323 = vmatprep.subr.mxu0 0.0
  %1324 = vmatpush1.msra.mxu0 %v1283
  %1325 = vmatprep.subr.mxu0 0.0
  %1326 = vmatpush1.msra.mxu0 %v1284
  %1327 = vmatprep.subr.mxu0 0.0
  %1328 = vmatpush1.msra.mxu0 %v1285
  %1329 = vmatprep.subr.mxu0 0.0
  %1330 = vmatpush1.msra.mxu0 %v1286
  %1331 = vmatprep.subr.mxu0 0.0
  %1332 = vmatpush1.msra.mxu0 %v1287
  %1333 = vmatprep.subr.mxu0 0.0
  %1334 = vmatpush1.msra.mxu0 %v1288
  %1335 = vmatprep.subr.mxu0 0.0
  %1336 = vmatpush1.msra.mxu0 %v1289
  %1337 = vmatprep.subr.mxu0 0.0
  %1338 = vmatpush1.msra.mxu0 %v1290
  %1339 = vmatprep.subr.mxu0 0.0
  %1340 = vmatpush1.msra.mxu0 %v1291
  %1341 = vmatprep.subr.mxu0 0.0
  %1342 = vmatpush1.msra.mxu0 %v1292
  %1343 = vmatprep.subr.mxu0 0.0
  %1344 = vmatpush1.msra.mxu0 %v1293
  %1345 = vmatprep.subr.mxu0 0.0
  %1346 = vmatpush1.msra.mxu0 %v1294
  %1347 = vmatprep.subr.mxu0 0.0
  %1348 = vmatpush1.msra.mxu0 %v1295
  %1349 = vmatprep.subr.mxu0 0.0
  %1350 = vmatpush1.msra.mxu0 %v1296
  %1351 = vmatprep.subr.mxu0 0.0
  %1352 = vmatpush1.msra.mxu0 %v1297
  %1353 = vmatprep.subr.mxu0 0.0
  %1354 = vmatpush1.msra.mxu0 %v1298
  %1355 = vmatprep.subr.mxu0 0.0
  %1356 = vmatpush1.msra.mxu0 %v1299
  %1357 = vmatprep.subr.mxu0 0.0
  %1358 = vmatpush1.msra.mxu0 %v1300
  %1359 = vmatprep.subr.mxu0 0.0
  %1360 = vmatpush1.msra.mxu0 %v1301
  %1361 = vmatprep.subr.mxu0 0.0
  %1362 = vmatpush1.msra.mxu0 %v1302
  %1363 = vmatprep.subr.mxu0 0.0
  %1364 = vmatpush1.msra.mxu0 %v1303
  %1365 = vmatprep.subr.mxu0 0.0
  %1366 = vmatpush1.msra.mxu0 %v1304
  %1367 = vmatprep.subr.mxu0 0.0
  %1368 = vmatpush1.msra.mxu0 %v1305
  %1369 = vmatprep.subr.mxu0 0.0
  %1370 = vmatpush1.msra.mxu0 %v1306
  %1371 = vmatprep.subr.mxu0 0.0
  %1372 = vmatpush1.msra.mxu0 %v1307
  %1373 = vmatprep.subr.mxu0 0.0
  %1374 = vmatpush1.msra.mxu0 %v1308
  %1375 = vmatprep.subr.mxu0 0.0
  %1376 = vmatpush1.msra.mxu0 %v1309
  %1377 = vmatprep.subr.mxu0 0.0
  %1378 = vmatpush1.msra.mxu0 %v1310
  %1379 = vmatprep.subr.mxu0 0.0
  %1380 = vmatpush1.msra.mxu0 %v1311
  %1381 = vmatprep.subr.mxu0 0.0
  %1382 = vmatpush1.msra.mxu0 %v1312
  %1383 = vmatprep.subr.mxu0 0.0
  %1384 = vmatpush1.msra.mxu0 %v1313
  %1385 = vmatprep.mubr.f32.mxu0 %v1279
  %1386 = vmatmul.mubr.f32.gmra.mrb[0].mxu0 %v1278
  %v1387 = vpop.f32.mrb[0].mxu0
  %v1388 = vadd.f32 %v1319, %v1387
  %v1389 = vpop.f32.mrb[0].mxu0
  %1390 = vmatprep.mubr.f32.mxu0 %v1281
  %1391 = vmatmul.mubr.f32.gmra.mrb[0].mxu0 %v1280
  %v1392 = vpop.f32.mrb[0].mxu0
  %v1393 = vadd.f32 %v1319, %v1392
  %v1394 = vpop.f32.mrb[0].mxu0
  %1395 = vdwg.mxu0
  %v1396 = vadd.f32 %v1388, %v1123
  %v1397 = vadd.f32 %v1393, %v1124
  %v1398 = vld [vmem:[%s13] sm:$0x1]
  %v1399 = vld [vmem:[%s14] sm:$0x1]
  %1400 = vadd.xlane.f32.xlu0 %v1396
  %v1401 = vpop.xlane.xlu0 %1400
  %1402 = vadd.xlane.f32.xlu0 %v1397
  %v1403 = vpop.xlane.xlu0 %1402
  %v1404 = vmul.f32 %v1401, %v64
  %v1405 = vmul.f32 %v1403, %v64
  %v1406 = vsub.f32 %v1396, %v1404
  %v1407 = vsub.f32 %v1397, %v1405
  %v1408 = vmul.f32 %v1406, %v1406
  %v1409 = vmul.f32 %v1407, %v1407
  %1410 = vadd.xlane.f32.xlu0 %v1408
  %v1411 = vpop.xlane.xlu0 %1410
  %1412 = vadd.xlane.f32.xlu0 %v1409
  %v1413 = vpop.xlane.xlu0 %1412
  %v1414 = vmul.f32 %v1411, %v64
  %v1415 = vmul.f32 %v1413, %v64
  %v1416 = vadd.f32 %v1414, 1e-12
  %v1417 = vadd.f32 %v1415, 1e-12
  %v1418 = vrsqrt.pop %v1416
  %v1419 = vrsqrt.pop %v1417
  %v1420 = vmul.f32 %v1406, %v1418
  %v1421 = vmul.f32 %v1407, %v1419
  %v1423 = vlaneseq
  %v1424 = vshrl.u32 %v1423, 7
  %v1425 = vsub.s32 0, %v1424
  %v1426 = vrot.slane %v1398, %v1425
  %v1428 = vmul.f32 %v1420, %v1426
  %v1429 = vmul.f32 %v1421, %v1426
  %v1431 = vlaneseq
  %v1432 = vshrl.u32 %v1431, 7
  %v1433 = vsub.s32 0, %v1432
  %v1434 = vrot.slane %v1399, %v1433
  %v1436 = vadd.f32 %v1428, %v1434
  %v1437 = vadd.f32 %v1429, %v1434
  %s1438 = scalar_lea.vmem %s3, 384
  %v1439 = vld [vmem:[%s1438] sm:$0xff]
  %v1440 = vld [vmem:[%s1438 + $0x8] sm:$0xff]
  %v1441 = vld [vmem:[%s1438 + $0x10] sm:$0xff]
  %v1442 = vld [vmem:[%s1438 + $0x18] sm:$0xff]
  %v1443 = vld [vmem:[%s1438 + $0x20] sm:$0xff]
  %v1444 = vld [vmem:[%s1438 + $0x28] sm:$0xff]
  %v1445 = vld [vmem:[%s1438 + $0x30] sm:$0xff]
  %v1446 = vld [vmem:[%s1438 + $0x38] sm:$0xff]
  %v1447 = vld [vmem:[%s1438 + $0x40] sm:$0xff]
  %v1448 = vld [vmem:[%s1438 + $0x48] sm:$0xff]
  %v1449 = vld [vmem:[%s1438 + $0x50] sm:$0xff]
  %v1450 = vld [vmem:[%s1438 + $0x58] sm:$0xff]
  %v1451 = vld [vmem:[%s1438 + $0x60] sm:$0xff]
  %v1452 = vld [vmem:[%s1438 + $0x68] sm:$0xff]
  %v1453 = vld [vmem:[%s1438 + $0x70] sm:$0xff]
  %v1454 = vld [vmem:[%s1438 + $0x78] sm:$0xff]
  %v1455 = vld [vmem:[%s1438 + $0x80] sm:$0xff]
  %v1456 = vld [vmem:[%s1438 + $0x88] sm:$0xff]
  %v1457 = vld [vmem:[%s1438 + $0x90] sm:$0xff]
  %v1458 = vld [vmem:[%s1438 + $0x98] sm:$0xff]
  %v1459 = vld [vmem:[%s1438 + $0xa0] sm:$0xff]
  %v1460 = vld [vmem:[%s1438 + $0xa8] sm:$0xff]
  %v1461 = vld [vmem:[%s1438 + $0xb0] sm:$0xff]
  %v1462 = vld [vmem:[%s1438 + $0xb8] sm:$0xff]
  %v1463 = vld [vmem:[%s1438 + $0xc0] sm:$0xff]
  %v1464 = vld [vmem:[%s1438 + $0xc8] sm:$0xff]
  %v1465 = vld [vmem:[%s1438 + $0xd0] sm:$0xff]
  %v1466 = vld [vmem:[%s1438 + $0xd8] sm:$0xff]
  %v1467 = vld [vmem:[%s1438 + $0xe0] sm:$0xff]
  %v1468 = vld [vmem:[%s1438 + $0xe8] sm:$0xff]
  %v1469 = vld [vmem:[%s1438 + $0xf0] sm:$0xff]
  %v1470 = vld [vmem:[%s1438 + $0xf8] sm:$0xff]
  %v1471 = vld [vmem:[%s1438 + $0x100] sm:$0xff]
  %v1472 = vld [vmem:[%s1438 + $0x108] sm:$0xff]
  %v1473 = vld [vmem:[%s1438 + $0x110] sm:$0xff]
  %v1474 = vld [vmem:[%s1438 + $0x118] sm:$0xff]
  %v1475 = vld [vmem:[%s1438 + $0x120] sm:$0xff]
  %v1476 = vld [vmem:[%s1438 + $0x128] sm:$0xff]
  %v1477 = vld [vmem:[%s1438 + $0x130] sm:$0xff]
  %v1478 = vld [vmem:[%s1438 + $0x138] sm:$0xff]
  %v1479 = vld [vmem:[%s1438 + $0x140] sm:$0xff]
  %v1480 = vld [vmem:[%s1438 + $0x148] sm:$0xff]
  %v1481 = vld [vmem:[%s1438 + $0x150] sm:$0xff]
  %v1482 = vld [vmem:[%s1438 + $0x158] sm:$0xff]
  %v1483 = vld [vmem:[%s1438 + $0x160] sm:$0xff]
  %v1484 = vld [vmem:[%s1438 + $0x168] sm:$0xff]
  %v1485 = vld [vmem:[%s1438 + $0x170] sm:$0xff]
  %v1486 = vld [vmem:[%s1438 + $0x178] sm:$0xff]
  %s1487 = scalar_lea.vmem %s4, 3
  %v1488 = vld [vmem:[%s1487] sm:$0x7]
  %v1490 = vlaneseq
  %v1491 = vshrl.u32 %v1490, 7
  %v1492 = vsub.s32 0, %v1491
  %v1493 = vrot.slane %v1488, %v1492
  %v1494 = vlaneseq
  %v1495 = vshrl.u32 %v1494, 7
  %v1496 = vsub.s32 1, %v1495
  %v1497 = vrot.slane %v1488, %v1496
  %v1498 = vlaneseq
  %v1499 = vshrl.u32 %v1498, 7
  %v1500 = vsub.s32 2, %v1499
  %v1501 = vrot.slane %v1488, %v1500
  %1505 = vmatprep.subr.mxu0 %v1440
  %1506 = vmatpush1.msra.mxu0 %v1439
  %1507 = vmatprep.subr.mxu0 %v1443
  %1508 = vmatpush1.msra.mxu0 %v1442
  %1509 = vmatprep.subr.mxu0 %v1446
  %1510 = vmatpush1.msra.mxu0 %v1445
  %1511 = vmatprep.subr.mxu0 %v1449
  %1512 = vmatpush1.msra.mxu0 %v1448
  %1513 = vmatprep.subr.mxu0 %v1452
  %1514 = vmatpush1.msra.mxu0 %v1451
  %1515 = vmatprep.subr.mxu0 %v1455
  %1516 = vmatpush1.msra.mxu0 %v1454
  %1517 = vmatprep.subr.mxu0 %v1458
  %1518 = vmatpush1.msra.mxu0 %v1457
  %1519 = vmatprep.subr.mxu0 %v1461
  %1520 = vmatpush1.msra.mxu0 %v1460
  %1521 = vmatprep.subr.mxu0 %v1464
  %1522 = vmatpush1.msra.mxu0 %v1463
  %1523 = vmatprep.subr.mxu0 %v1467
  %1524 = vmatpush1.msra.mxu0 %v1466
  %1525 = vmatprep.subr.mxu0 %v1470
  %1526 = vmatpush1.msra.mxu0 %v1469
  %1527 = vmatprep.subr.mxu0 %v1473
  %1528 = vmatpush1.msra.mxu0 %v1472
  %1529 = vmatprep.subr.mxu0 %v1476
  %1530 = vmatpush1.msra.mxu0 %v1475
  %1531 = vmatprep.subr.mxu0 %v1479
  %1532 = vmatpush1.msra.mxu0 %v1478
  %1533 = vmatprep.subr.mxu0 %v1482
  %1534 = vmatpush1.msra.mxu0 %v1481
  %1535 = vmatprep.subr.mxu0 %v1485
  %1536 = vmatpush1.msra.mxu0 %v1484
  %1537 = vmatprep.subr.mxu0 0.0
  %1538 = vmatpush1.msra.mxu0 0.0
  %1539 = vmatprep.subr.mxu0 0.0
  %1540 = vmatpush1.msra.mxu0 0.0
  %1541 = vmatprep.subr.mxu0 0.0
  %1542 = vmatpush1.msra.mxu0 0.0
  %1543 = vmatprep.subr.mxu0 0.0
  %1544 = vmatpush1.msra.mxu0 0.0
  %1545 = vmatprep.subr.mxu0 0.0
  %1546 = vmatpush1.msra.mxu0 0.0
  %1547 = vmatprep.subr.mxu0 0.0
  %1548 = vmatpush1.msra.mxu0 0.0
  %1549 = vmatprep.subr.mxu0 0.0
  %1550 = vmatpush1.msra.mxu0 0.0
  %1551 = vmatprep.subr.mxu0 0.0
  %1552 = vmatpush1.msra.mxu0 0.0
  %1553 = vmatprep.subr.mxu0 0.0
  %1554 = vmatpush1.msra.mxu0 0.0
  %1555 = vmatprep.subr.mxu0 0.0
  %1556 = vmatpush1.msra.mxu0 0.0
  %1557 = vmatprep.subr.mxu0 0.0
  %1558 = vmatpush1.msra.mxu0 0.0
  %1559 = vmatprep.subr.mxu0 0.0
  %1560 = vmatpush1.msra.mxu0 0.0
  %1561 = vmatprep.subr.mxu0 0.0
  %1562 = vmatpush1.msra.mxu0 0.0
  %1563 = vmatprep.subr.mxu0 0.0
  %1564 = vmatpush1.msra.mxu0 0.0
  %1565 = vmatprep.subr.mxu0 0.0
  %1566 = vmatpush1.msra.mxu0 0.0
  %1567 = vmatprep.subr.mxu0 0.0
  %1568 = vmatpush1.msra.mxu0 0.0
  %1569 = vmatprep.mubr.f32.mxu0 0.0
  %1570 = vmatmul.mubr.f32.gmra.mrb[0].mxu0 %v1436
  %v1571 = vpop.f32.mrb[0].mxu0
  %v1572 = vadd.f32 %v1493, %v1571
  %v1573 = vpop.f32.mrb[0].mxu0
  %v1574 = vadd.f32 %v1497, %v1573
  %1575 = vmatprep.mubr.f32.mxu0 0.0
  %1576 = vmatmul.mubr.f32.gmra.mrb[0].mxu0 %v1437
  %v1577 = vpop.f32.mrb[0].mxu0
  %v1578 = vadd.f32 %v1493, %v1577
  %v1579 = vpop.f32.mrb[0].mxu0
  %v1580 = vadd.f32 %v1497, %v1579
  %1581 = vdwg.mxu0
  %1582 = vmatprep.subr.mxu0 0.0
  %1583 = vmatpush1.msra.mxu0 %v1441
  %1584 = vmatprep.subr.mxu0 0.0
  %1585 = vmatpush1.msra.mxu0 %v1444
  %1586 = vmatprep.subr.mxu0 0.0
  %1587 = vmatpush1.msra.mxu0 %v1447
  %1588 = vmatprep.subr.mxu0 0.0
  %1589 = vmatpush1.msra.mxu0 %v1450
  %1590 = vmatprep.subr.mxu0 0.0
  %1591 = vmatpush1.msra.mxu0 %v1453
  %1592 = vmatprep.subr.mxu0 0.0
  %1593 = vmatpush1.msra.mxu0 %v1456
  %1594 = vmatprep.subr.mxu0 0.0
  %1595 = vmatpush1.msra.mxu0 %v1459
  %1596 = vmatprep.subr.mxu0 0.0
  %1597 = vmatpush1.msra.mxu0 %v1462
  %1598 = vmatprep.subr.mxu0 0.0
  %1599 = vmatpush1.msra.mxu0 %v1465
  %1600 = vmatprep.subr.mxu0 0.0
  %1601 = vmatpush1.msra.mxu0 %v1468
  %1602 = vmatprep.subr.mxu0 0.0
  %1603 = vmatpush1.msra.mxu0 %v1471
  %1604 = vmatprep.subr.mxu0 0.0
  %1605 = vmatpush1.msra.mxu0 %v1474
  %1606 = vmatprep.subr.mxu0 0.0
  %1607 = vmatpush1.msra.mxu0 %v1477
  %1608 = vmatprep.subr.mxu0 0.0
  %1609 = vmatpush1.msra.mxu0 %v1480
  %1610 = vmatprep.subr.mxu0 0.0
  %1611 = vmatpush1.msra.mxu0 %v1483
  %1612 = vmatprep.subr.mxu0 0.0
  %1613 = vmatpush1.msra.mxu0 %v1486
  %1614 = vmatprep.subr.mxu0 0.0
  %1615 = vmatpush1.msra.mxu0 0.0
  %1616 = vmatprep.subr.mxu0 0.0
  %1617 = vmatpush1.msra.mxu0 0.0
  %1618 = vmatprep.subr.mxu0 0.0
  %1619 = vmatpush1.msra.mxu0 0.0
  %1620 = vmatprep.subr.mxu0 0.0
  %1621 = vmatpush1.msra.mxu0 0.0
  %1622 = vmatprep.subr.mxu0 0.0
  %1623 = vmatpush1.msra.mxu0 0.0
  %1624 = vmatprep.subr.mxu0 0.0
  %1625 = vmatpush1.msra.mxu0 0.0
  %1626 = vmatprep.subr.mxu0 0.0
  %1627 = vmatpush1.msra.mxu0 0.0
  %1628 = vmatprep.subr.mxu0 0.0
  %1629 = vmatpush1.msra.mxu0 0.0
  %1630 = vmatprep.subr.mxu0 0.0
  %1631 = vmatpush1.msra.mxu0 0.0
  %1632 = vmatprep.subr.mxu0 0.0
  %1633 = vmatpush1.msra.mxu0 0.0
  %1634 = vmatprep.subr.mxu0 0.0
  %1635 = vmatpush1.msra.mxu0 0.0
  %1636 = vmatprep.subr.mxu0 0.0
  %1637 = vmatpush1.msra.mxu0 0.0
  %1638 = vmatprep.subr.mxu0 0.0
  %1639 = vmatpush1.msra.mxu0 0.0
  %1640 = vmatprep.subr.mxu0 0.0
  %1641 = vmatpush1.msra.mxu0 0.0
  %1642 = vmatprep.subr.mxu0 0.0
  %1643 = vmatpush1.msra.mxu0 0.0
  %1644 = vmatprep.subr.mxu0 0.0
  %1645 = vmatpush1.msra.mxu0 0.0
  %1646 = vmatprep.mubr.f32.mxu0 0.0
  %1647 = vmatmul.mubr.f32.gmra.mrb[0].mxu0 %v1436
  %v1648 = vpop.f32.mrb[0].mxu0
  %v1649 = vadd.f32 %v1501, %v1648
  %v1650 = vpop.f32.mrb[0].mxu0
  %1651 = vmatprep.mubr.f32.mxu0 0.0
  %1652 = vmatmul.mubr.f32.gmra.mrb[0].mxu0 %v1437
  %v1653 = vpop.f32.mrb[0].mxu0
  %v1654 = vadd.f32 %v1501, %v1653
  %v1655 = vpop.f32.mrb[0].mxu0
  %1656 = vdwg.mxu0
  %v1658 = vsel %vm316, %v1572, 0
  %v1661 = vsel %vm316, %v1574, 0
  %1663 = vmatprep.subr.mxu0 0.0
  %1664 = vmatpush1.xpose.msra.mxu0 %v1661
  %1665 = vmatprep.subr.mxu0 0.0
  %1666 = vmatpush1.xpose.msra.mxu0 0.0
  %1667 = vmatprep.subr.mxu0 0.0
  %1668 = vmatpush1.xpose.msra.mxu0 0.0
  %1669 = vmatprep.subr.mxu0 0.0
  %1670 = vmatpush1.xpose.msra.mxu0 0.0
  %1671 = vmatprep.subr.mxu0 0.0
  %1672 = vmatpush1.xpose.msra.mxu0 0.0
  %1673 = vmatprep.subr.mxu0 0.0
  %1674 = vmatpush1.xpose.msra.mxu0 0.0
  %1675 = vmatprep.subr.mxu0 0.0
  %1676 = vmatpush1.xpose.msra.mxu0 0.0
  %1677 = vmatprep.subr.mxu0 0.0
  %1678 = vmatpush1.xpose.msra.mxu0 0.0
  %1679 = vmatprep.subr.mxu0 0.0
  %1680 = vmatpush1.xpose.msra.mxu0 0.0
  %1681 = vmatprep.subr.mxu0 0.0
  %1682 = vmatpush1.xpose.msra.mxu0 0.0
  %1683 = vmatprep.subr.mxu0 0.0
  %1684 = vmatpush1.xpose.msra.mxu0 0.0
  %1685 = vmatprep.subr.mxu0 0.0
  %1686 = vmatpush1.xpose.msra.mxu0 0.0
  %1687 = vmatprep.subr.mxu0 0.0
  %1688 = vmatpush1.xpose.msra.mxu0 0.0
  %1689 = vmatprep.subr.mxu0 0.0
  %1690 = vmatpush1.xpose.msra.mxu0 0.0
  %1691 = vmatprep.subr.mxu0 0.0
  %1692 = vmatpush1.xpose.msra.mxu0 0.0
  %1693 = vmatprep.subr.mxu0 0.0
  %1694 = vmatpush1.xpose.msra.mxu0 0.0
  %1695 = vmatprep.subr.mxu0 0.0
  %1696 = vmatpush1.xpose.msra.mxu0 0.0
  %1697 = vmatprep.subr.mxu0 0.0
  %1698 = vmatpush1.xpose.msra.mxu0 0.0
  %1699 = vmatprep.subr.mxu0 0.0
  %1700 = vmatpush1.xpose.msra.mxu0 0.0
  %1701 = vmatprep.subr.mxu0 0.0
  %1702 = vmatpush1.xpose.msra.mxu0 0.0
  %1703 = vmatprep.subr.mxu0 0.0
  %1704 = vmatpush1.xpose.msra.mxu0 0.0
  %1705 = vmatprep.subr.mxu0 0.0
  %1706 = vmatpush1.xpose.msra.mxu0 0.0
  %1707 = vmatprep.subr.mxu0 0.0
  %1708 = vmatpush1.xpose.msra.mxu0 0.0
  %1709 = vmatprep.subr.mxu0 0.0
  %1710 = vmatpush1.xpose.msra.mxu0 0.0
  %1711 = vmatprep.subr.mxu0 0.0
  %1712 = vmatpush1.xpose.msra.mxu0 0.0
  %1713 = vmatprep.subr.mxu0 0.0
  %1714 = vmatpush1.xpose.msra.mxu0 0.0
  %1715 = vmatprep.subr.mxu0 0.0
  %1716 = vmatpush1.xpose.msra.mxu0 0.0
  %1717 = vmatprep.subr.mxu0 0.0
  %1718 = vmatpush1.xpose.msra.mxu0 0.0
  %1719 = vmatprep.subr.mxu0 0.0
  %1720 = vmatpush1.xpose.msra.mxu0 0.0
  %1721 = vmatprep.subr.mxu0 0.0
  %1722 = vmatpush1.xpose.msra.mxu0 0.0
  %1723 = vmatprep.subr.mxu0 0.0
  %1724 = vmatpush1.xpose.msra.mxu0 0.0
  %1725 = vmatprep.subr.mxu0 0.0
  %1726 = vmatpush1.xpose.msra.mxu0 0.0
  %1727 = vmatprep.mubr.f32.mxu0 0.0
  %1728 = vmatmul.mubr.f32.gmra.mrb[0].mxu0 %v1658
  %v1729 = vpop.f32.mrb[0].mxu0
  %v1730 = vadd.f32 0.0, %v1729
  %v1731 = vpop.f32.mrb[0].mxu0
  %1732 = vdwg.mxu0
  %v1733 = vsel %vm393, %v1730, -inf
  %1734 = vmax.xlane.f32.xlu0 %v1733
  %v1735 = vpop.xlane.xlu0 %1734
  %v1736 = vsub.f32 %v1730, %v1735
  %v1737 = vmul.f32 %v1736, 1.442695
  %v1738 = vpow.pop %v1737
  %v1739 = vsel %vm393, %v1738, 0.0
  %1740 = vadd.xlane.f32.xlu0 %v1739
  %v1741 = vpop.xlane.xlu0 %1740
  %v1742 = vrcp.pop %v1741
  %v1743 = vmul.f32 %v1738, %v1742
  %v1745 = vsel %vm393, %v1743, 0
  %1747 = vmatprep.subr.mxu0 0.0
  %1748 = vmatpush1.msra.mxu0 %v1649
  %1749 = vmatprep.subr.mxu0 0.0
  %1750 = vmatpush1.msra.mxu0 0.0
  %1751 = vmatprep.subr.mxu0 0.0
  %1752 = vmatpush1.msra.mxu0 0.0
  %1753 = vmatprep.subr.mxu0 0.0
  %1754 = vmatpush1.msra.mxu0 0.0
  %1755 = vmatprep.subr.mxu0 0.0
  %1756 = vmatpush1.msra.mxu0 0.0
  %1757 = vmatprep.subr.mxu0 0.0
  %1758 = vmatpush1.msra.mxu0 0.0
  %1759 = vmatprep.subr.mxu0 0.0
  %1760 = vmatpush1.msra.mxu0 0.0
  %1761 = vmatprep.subr.mxu0 0.0
  %1762 = vmatpush1.msra.mxu0 0.0
  %1763 = vmatprep.subr.mxu0 0.0
  %1764 = vmatpush1.msra.mxu0 0.0
  %1765 = vmatprep.subr.mxu0 0.0
  %1766 = vmatpush1.msra.mxu0 0.0
  %1767 = vmatprep.subr.mxu0 0.0
  %1768 = vmatpush1.msra.mxu0 0.0
  %1769 = vmatprep.subr.mxu0 0.0
  %1770 = vmatpush1.msra.mxu0 0.0
  %1771 = vmatprep.subr.mxu0 0.0
  %1772 = vmatpush1.msra.mxu0 0.0
  %1773 = vmatprep.subr.mxu0 0.0
  %1774 = vmatpush1.msra.mxu0 0.0
  %1775 = vmatprep.subr.mxu0 0.0
  %1776 = vmatpush1.msra.mxu0 0.0
  %1777 = vmatprep.subr.mxu0 0.0
  %1778 = vmatpush1.msra.mxu0 0.0
  %1779 = vmatprep.subr.mxu0 0.0
  %1780 = vmatpush1.msra.mxu0 0.0
  %1781 = vmatprep.subr.mxu0 0.0
  %1782 = vmatpush1.msra.mxu0 0.0
  %1783 = vmatprep.subr.mxu0 0.0
  %1784 = vmatpush1.msra.mxu0 0.0
  %1785 = vmatprep.subr.mxu0 0.0
  %1786 = vmatpush1.msra.mxu0 0.0
  %1787 = vmatprep.subr.mxu0 0.0
  %1788 = vmatpush1.msra.mxu0 0.0
  %1789 = vmatprep.subr.mxu0 0.0
  %1790 = vmatpush1.msra.mxu0 0.0
  %1791 = vmatprep.subr.mxu0 0.0
  %1792 = vmatpush1.msra.mxu0 0.0
  %1793 = vmatprep.subr.mxu0 0.0
  %1794 = vmatpush1.msra.mxu0 0.0
  %1795 = vmatprep.subr.mxu0 0.0
  %1796 = vmatpush1.msra.mxu0 0.0
  %1797 = vmatprep.subr.mxu0 0.0
  %1798 = vmatpush1.msra.mxu0 0.0
  %1799 = vmatprep.subr.mxu0 0.0
  %1800 = vmatpush1.msra.mxu0 0.0
  %1801 = vmatprep.subr.mxu0 0.0
  %1802 = vmatpush1.msra.mxu0 0.0
  %1803 = vmatprep.subr.mxu0 0.0
  %1804 = vmatpush1.msra.mxu0 0.0
  %1805 = vmatprep.subr.mxu0 0.0
  %1806 = vmatpush1.msra.mxu0 0.0
  %1807 = vmatprep.subr.mxu0 0.0
  %1808 = vmatpush1.msra.mxu0 0.0
  %1809 = vmatprep.subr.mxu0 0.0
  %1810 = vmatpush1.msra.mxu0 0.0
  %1811 = vmatprep.mubr.f32.mxu0 0.0
  %1812 = vmatmul.mubr.f32.gmra.mrb[0].mxu0 %v1745
  %v1813 = vpop.f32.mrb[0].mxu0
  %v1814 = vadd.f32 0.0, %v1813
  %v1815 = vpop.f32.mrb[0].mxu0
  %1816 = vdwg.mxu0
  %1817 = vst.msk [vmem:[#allocation2] sm:$0xff] %vm316, %v1814
  %1818 = vrot.lane.b32.xlu0 %v1572, 64
  %v1819 = vpop.permute.xlu0 %1818
  %1820 = vrot.lane.b32.xlu0 %v1574, 64
  %v1821 = vpop.permute.xlu0 %1820
  %v1822 = vsel %vm316, %v1819, 0
  %v1824 = vsel %vm316, %v1821, 0
  %1826 = vmatprep.subr.mxu0 0.0
  %1827 = vmatpush1.xpose.msra.mxu0 %v1824
  %1828 = vmatprep.subr.mxu0 0.0
  %1829 = vmatpush1.xpose.msra.mxu0 0.0
  %1830 = vmatprep.subr.mxu0 0.0
  %1831 = vmatpush1.xpose.msra.mxu0 0.0
  %1832 = vmatprep.subr.mxu0 0.0
  %1833 = vmatpush1.xpose.msra.mxu0 0.0
  %1834 = vmatprep.subr.mxu0 0.0
  %1835 = vmatpush1.xpose.msra.mxu0 0.0
  %1836 = vmatprep.subr.mxu0 0.0
  %1837 = vmatpush1.xpose.msra.mxu0 0.0
  %1838 = vmatprep.subr.mxu0 0.0
  %1839 = vmatpush1.xpose.msra.mxu0 0.0
  %1840 = vmatprep.subr.mxu0 0.0
  %1841 = vmatpush1.xpose.msra.mxu0 0.0
  %1842 = vmatprep.subr.mxu0 0.0
  %1843 = vmatpush1.xpose.msra.mxu0 0.0
  %1844 = vmatprep.subr.mxu0 0.0
  %1845 = vmatpush1.xpose.msra.mxu0 0.0
  %1846 = vmatprep.subr.mxu0 0.0
  %1847 = vmatpush1.xpose.msra.mxu0 0.0
  %1848 = vmatprep.subr.mxu0 0.0
  %1849 = vmatpush1.xpose.msra.mxu0 0.0
  %1850 = vmatprep.subr.mxu0 0.0
  %1851 = vmatpush1.xpose.msra.mxu0 0.0
  %1852 = vmatprep.subr.mxu0 0.0
  %1853 = vmatpush1.xpose.msra.mxu0 0.0
  %1854 = vmatprep.subr.mxu0 0.0
  %1855 = vmatpush1.xpose.msra.mxu0 0.0
  %1856 = vmatprep.subr.mxu0 0.0
  %1857 = vmatpush1.xpose.msra.mxu0 0.0
  %1858 = vmatprep.subr.mxu0 0.0
  %1859 = vmatpush1.xpose.msra.mxu0 0.0
  %1860 = vmatprep.subr.mxu0 0.0
  %1861 = vmatpush1.xpose.msra.mxu0 0.0
  %1862 = vmatprep.subr.mxu0 0.0
  %1863 = vmatpush1.xpose.msra.mxu0 0.0
  %1864 = vmatprep.subr.mxu0 0.0
  %1865 = vmatpush1.xpose.msra.mxu0 0.0
  %1866 = vmatprep.subr.mxu0 0.0
  %1867 = vmatpush1.xpose.msra.mxu0 0.0
  %1868 = vmatprep.subr.mxu0 0.0
  %1869 = vmatpush1.xpose.msra.mxu0 0.0
  %1870 = vmatprep.subr.mxu0 0.0
  %1871 = vmatpush1.xpose.msra.mxu0 0.0
  %1872 = vmatprep.subr.mxu0 0.0
  %1873 = vmatpush1.xpose.msra.mxu0 0.0
  %1874 = vmatprep.subr.mxu0 0.0
  %1875 = vmatpush1.xpose.msra.mxu0 0.0
  %1876 = vmatprep.subr.mxu0 0.0
  %1877 = vmatpush1.xpose.msra.mxu0 0.0
  %1878 = vmatprep.subr.mxu0 0.0
  %1879 = vmatpush1.xpose.msra.mxu0 0.0
  %1880 = vmatprep.subr.mxu0 0.0
  %1881 = vmatpush1.xpose.msra.mxu0 0.0
  %1882 = vmatprep.subr.mxu0 0.0
  %1883 = vmatpush1.xpose.msra.mxu0 0.0
  %1884 = vmatprep.subr.mxu0 0.0
  %1885 = vmatpush1.xpose.msra.mxu0 0.0
  %1886 = vmatprep.subr.mxu0 0.0
  %1887 = vmatpush1.xpose.msra.mxu0 0.0
  %1888 = vmatprep.subr.mxu0 0.0
  %1889 = vmatpush1.xpose.msra.mxu0 0.0
  %1890 = vmatprep.mubr.f32.mxu0 0.0
  %1891 = vmatmul.mubr.f32.gmra.mrb[0].mxu0 %v1822
  %v1892 = vpop.f32.mrb[0].mxu0
  %v1893 = vadd.f32 0.0, %v1892
  %v1894 = vpop.f32.mrb[0].mxu0
  %1895 = vdwg.mxu0
  %v1896 = vsel %vm393, %v1893, -inf
  %1897 = vmax.xlane.f32.xlu0 %v1896
  %v1898 = vpop.xlane.xlu0 %1897
  %v1899 = vsub.f32 %v1893, %v1898
  %v1900 = vmul.f32 %v1899, 1.442695
  %v1901 = vpow.pop %v1900
  %v1902 = vsel %vm393, %v1901, 0.0
  %1903 = vadd.xlane.f32.xlu0 %v1902
  %v1904 = vpop.xlane.xlu0 %1903
  %v1905 = vrcp.pop %v1904
  %v1906 = vmul.f32 %v1901, %v1905
  %1908 = vrot.lane.b32.xlu0 %v1649, 64
  %v1909 = vpop.permute.xlu0 %1908
  %v1912 = vsel %vm393, %v1906, 0
  %1914 = vmatprep.subr.mxu0 0.0
  %1915 = vmatpush1.msra.mxu0 %v1909
  %1916 = vmatprep.subr.mxu0 0.0
  %1917 = vmatpush1.msra.mxu0 0.0
  %1918 = vmatprep.subr.mxu0 0.0
  %1919 = vmatpush1.msra.mxu0 0.0
  %1920 = vmatprep.subr.mxu0 0.0
  %1921 = vmatpush1.msra.mxu0 0.0
  %1922 = vmatprep.subr.mxu0 0.0
  %1923 = vmatpush1.msra.mxu0 0.0
  %1924 = vmatprep.subr.mxu0 0.0
  %1925 = vmatpush1.msra.mxu0 0.0
  %1926 = vmatprep.subr.mxu0 0.0
  %1927 = vmatpush1.msra.mxu0 0.0
  %1928 = vmatprep.subr.mxu0 0.0
  %1929 = vmatpush1.msra.mxu0 0.0
  %1930 = vmatprep.subr.mxu0 0.0
  %1931 = vmatpush1.msra.mxu0 0.0
  %1932 = vmatprep.subr.mxu0 0.0
  %1933 = vmatpush1.msra.mxu0 0.0
  %1934 = vmatprep.subr.mxu0 0.0
  %1935 = vmatpush1.msra.mxu0 0.0
  %1936 = vmatprep.subr.mxu0 0.0
  %1937 = vmatpush1.msra.mxu0 0.0
  %1938 = vmatprep.subr.mxu0 0.0
  %1939 = vmatpush1.msra.mxu0 0.0
  %1940 = vmatprep.subr.mxu0 0.0
  %1941 = vmatpush1.msra.mxu0 0.0
  %1942 = vmatprep.subr.mxu0 0.0
  %1943 = vmatpush1.msra.mxu0 0.0
  %1944 = vmatprep.subr.mxu0 0.0
  %1945 = vmatpush1.msra.mxu0 0.0
  %1946 = vmatprep.subr.mxu0 0.0
  %1947 = vmatpush1.msra.mxu0 0.0
  %1948 = vmatprep.subr.mxu0 0.0
  %1949 = vmatpush1.msra.mxu0 0.0
  %1950 = vmatprep.subr.mxu0 0.0
  %1951 = vmatpush1.msra.mxu0 0.0
  %1952 = vmatprep.subr.mxu0 0.0
  %1953 = vmatpush1.msra.mxu0 0.0
  %1954 = vmatprep.subr.mxu0 0.0
  %1955 = vmatpush1.msra.mxu0 0.0
  %1956 = vmatprep.subr.mxu0 0.0
  %1957 = vmatpush1.msra.mxu0 0.0
  %1958 = vmatprep.subr.mxu0 0.0
  %1959 = vmatpush1.msra.mxu0 0.0
  %1960 = vmatprep.subr.mxu0 0.0
  %1961 = vmatpush1.msra.mxu0 0.0
  %1962 = vmatprep.subr.mxu0 0.0
  %1963 = vmatpush1.msra.mxu0 0.0
  %1964 = vmatprep.subr.mxu0 0.0
  %1965 = vmatpush1.msra.mxu0 0.0
  %1966 = vmatprep.subr.mxu0 0.0
  %1967 = vmatpush1.msra.mxu0 0.0
  %1968 = vmatprep.subr.mxu0 0.0
  %1969 = vmatpush1.msra.mxu0 0.0
  %1970 = vmatprep.subr.mxu0 0.0
  %1971 = vmatpush1.msra.mxu0 0.0
  %1972 = vmatprep.subr.mxu0 0.0
  %1973 = vmatpush1.msra.mxu0 0.0
  %1974 = vmatprep.subr.mxu0 0.0
  %1975 = vmatpush1.msra.mxu0 0.0
  %1976 = vmatprep.subr.mxu0 0.0
  %1977 = vmatpush1.msra.mxu0 0.0
  %1978 = vmatprep.mubr.f32.mxu0 0.0
  %1979 = vmatmul.mubr.f32.gmra.mrb[0].mxu0 %v1912
  %v1980 = vpop.f32.mrb[0].mxu0
  %v1981 = vadd.f32 0.0, %v1980
  %v1982 = vpop.f32.mrb[0].mxu0
  %1983 = vdwg.mxu0
  %1985 = vrot.lane.b32.xlu0 %v1981, 64
  %v1986 = vpop.permute.xlu0 %1985
  %1988 = vst.msk [vmem:[#allocation2] sm:$0xff] %vm649, %v1986
  %v1990 = vsel %vm316, %v1578, 0
  %v1993 = vsel %vm316, %v1580, 0
  %1995 = vmatprep.subr.mxu0 0.0
  %1996 = vmatpush1.xpose.msra.mxu0 %v1993
  %1997 = vmatprep.subr.mxu0 0.0
  %1998 = vmatpush1.xpose.msra.mxu0 0.0
  %1999 = vmatprep.subr.mxu0 0.0
  %2000 = vmatpush1.xpose.msra.mxu0 0.0
  %2001 = vmatprep.subr.mxu0 0.0
  %2002 = vmatpush1.xpose.msra.mxu0 0.0
  %2003 = vmatprep.subr.mxu0 0.0
  %2004 = vmatpush1.xpose.msra.mxu0 0.0
  %2005 = vmatprep.subr.mxu0 0.0
  %2006 = vmatpush1.xpose.msra.mxu0 0.0
  %2007 = vmatprep.subr.mxu0 0.0
  %2008 = vmatpush1.xpose.msra.mxu0 0.0
  %2009 = vmatprep.subr.mxu0 0.0
  %2010 = vmatpush1.xpose.msra.mxu0 0.0
  %2011 = vmatprep.subr.mxu0 0.0
  %2012 = vmatpush1.xpose.msra.mxu0 0.0
  %2013 = vmatprep.subr.mxu0 0.0
  %2014 = vmatpush1.xpose.msra.mxu0 0.0
  %2015 = vmatprep.subr.mxu0 0.0
  %2016 = vmatpush1.xpose.msra.mxu0 0.0
  %2017 = vmatprep.subr.mxu0 0.0
  %2018 = vmatpush1.xpose.msra.mxu0 0.0
  %2019 = vmatprep.subr.mxu0 0.0
  %2020 = vmatpush1.xpose.msra.mxu0 0.0
  %2021 = vmatprep.subr.mxu0 0.0
  %2022 = vmatpush1.xpose.msra.mxu0 0.0
  %2023 = vmatprep.subr.mxu0 0.0
  %2024 = vmatpush1.xpose.msra.mxu0 0.0
  %2025 = vmatprep.subr.mxu0 0.0
  %2026 = vmatpush1.xpose.msra.mxu0 0.0
  %2027 = vmatprep.subr.mxu0 0.0
  %2028 = vmatpush1.xpose.msra.mxu0 0.0
  %2029 = vmatprep.subr.mxu0 0.0
  %2030 = vmatpush1.xpose.msra.mxu0 0.0
  %2031 = vmatprep.subr.mxu0 0.0
  %2032 = vmatpush1.xpose.msra.mxu0 0.0
  %2033 = vmatprep.subr.mxu0 0.0
  %2034 = vmatpush1.xpose.msra.mxu0 0.0
  %2035 = vmatprep.subr.mxu0 0.0
  %2036 = vmatpush1.xpose.msra.mxu0 0.0
  %2037 = vmatprep.subr.mxu0 0.0
  %2038 = vmatpush1.xpose.msra.mxu0 0.0
  %2039 = vmatprep.subr.mxu0 0.0
  %2040 = vmatpush1.xpose.msra.mxu0 0.0
  %2041 = vmatprep.subr.mxu0 0.0
  %2042 = vmatpush1.xpose.msra.mxu0 0.0
  %2043 = vmatprep.subr.mxu0 0.0
  %2044 = vmatpush1.xpose.msra.mxu0 0.0
  %2045 = vmatprep.subr.mxu0 0.0
  %2046 = vmatpush1.xpose.msra.mxu0 0.0
  %2047 = vmatprep.subr.mxu0 0.0
  %2048 = vmatpush1.xpose.msra.mxu0 0.0
  %2049 = vmatprep.subr.mxu0 0.0
  %2050 = vmatpush1.xpose.msra.mxu0 0.0
  %2051 = vmatprep.subr.mxu0 0.0
  %2052 = vmatpush1.xpose.msra.mxu0 0.0
  %2053 = vmatprep.subr.mxu0 0.0
  %2054 = vmatpush1.xpose.msra.mxu0 0.0
  %2055 = vmatprep.subr.mxu0 0.0
  %2056 = vmatpush1.xpose.msra.mxu0 0.0
  %2057 = vmatprep.subr.mxu0 0.0
  %2058 = vmatpush1.xpose.msra.mxu0 0.0
  %2059 = vmatprep.mubr.f32.mxu0 0.0
  %2060 = vmatmul.mubr.f32.gmra.mrb[0].mxu0 %v1990
  %v2061 = vpop.f32.mrb[0].mxu0
  %v2062 = vadd.f32 0.0, %v2061
  %v2063 = vpop.f32.mrb[0].mxu0
  %2064 = vdwg.mxu0
  %v2065 = vsel %vm393, %v2062, -inf
  %2066 = vmax.xlane.f32.xlu0 %v2065
  %v2067 = vpop.xlane.xlu0 %2066
  %v2068 = vsub.f32 %v2062, %v2067
  %v2069 = vmul.f32 %v2068, 1.442695
  %v2070 = vpow.pop %v2069
  %v2071 = vsel %vm393, %v2070, 0.0
  %2072 = vadd.xlane.f32.xlu0 %v2071
  %v2073 = vpop.xlane.xlu0 %2072
  %v2074 = vrcp.pop %v2073
  %v2075 = vmul.f32 %v2070, %v2074
  %v2077 = vsel %vm393, %v2075, 0
  %2079 = vmatprep.subr.mxu0 0.0
  %2080 = vmatpush1.msra.mxu0 %v1654
  %2081 = vmatprep.subr.mxu0 0.0
  %2082 = vmatpush1.msra.mxu0 0.0
  %2083 = vmatprep.subr.mxu0 0.0
  %2084 = vmatpush1.msra.mxu0 0.0
  %2085 = vmatprep.subr.mxu0 0.0
  %2086 = vmatpush1.msra.mxu0 0.0
  %2087 = vmatprep.subr.mxu0 0.0
  %2088 = vmatpush1.msra.mxu0 0.0
  %2089 = vmatprep.subr.mxu0 0.0
  %2090 = vmatpush1.msra.mxu0 0.0
  %2091 = vmatprep.subr.mxu0 0.0
  %2092 = vmatpush1.msra.mxu0 0.0
  %2093 = vmatprep.subr.mxu0 0.0
  %2094 = vmatpush1.msra.mxu0 0.0
  %2095 = vmatprep.subr.mxu0 0.0
  %2096 = vmatpush1.msra.mxu0 0.0
  %2097 = vmatprep.subr.mxu0 0.0
  %2098 = vmatpush1.msra.mxu0 0.0
  %2099 = vmatprep.subr.mxu0 0.0
  %2100 = vmatpush1.msra.mxu0 0.0
  %2101 = vmatprep.subr.mxu0 0.0
  %2102 = vmatpush1.msra.mxu0 0.0
  %2103 = vmatprep.subr.mxu0 0.0
  %2104 = vmatpush1.msra.mxu0 0.0
  %2105 = vmatprep.subr.mxu0 0.0
  %2106 = vmatpush1.msra.mxu0 0.0
  %2107 = vmatprep.subr.mxu0 0.0
  %2108 = vmatpush1.msra.mxu0 0.0
  %2109 = vmatprep.subr.mxu0 0.0
  %2110 = vmatpush1.msra.mxu0 0.0
  %2111 = vmatprep.subr.mxu0 0.0
  %2112 = vmatpush1.msra.mxu0 0.0
  %2113 = vmatprep.subr.mxu0 0.0
  %2114 = vmatpush1.msra.mxu0 0.0
  %2115 = vmatprep.subr.mxu0 0.0
  %2116 = vmatpush1.msra.mxu0 0.0
  %2117 = vmatprep.subr.mxu0 0.0
  %2118 = vmatpush1.msra.mxu0 0.0
  %2119 = vmatprep.subr.mxu0 0.0
  %2120 = vmatpush1.msra.mxu0 0.0
  %2121 = vmatprep.subr.mxu0 0.0
  %2122 = vmatpush1.msra.mxu0 0.0
  %2123 = vmatprep.subr.mxu0 0.0
  %2124 = vmatpush1.msra.mxu0 0.0
  %2125 = vmatprep.subr.mxu0 0.0
  %2126 = vmatpush1.msra.mxu0 0.0
  %2127 = vmatprep.subr.mxu0 0.0
  %2128 = vmatpush1.msra.mxu0 0.0
  %2129 = vmatprep.subr.mxu0 0.0
  %2130 = vmatpush1.msra.mxu0 0.0
  %2131 = vmatprep.subr.mxu0 0.0
  %2132 = vmatpush1.msra.mxu0 0.0
  %2133 = vmatprep.subr.mxu0 0.0
  %2134 = vmatpush1.msra.mxu0 0.0
  %2135 = vmatprep.subr.mxu0 0.0
  %2136 = vmatpush1.msra.mxu0 0.0
  %2137 = vmatprep.subr.mxu0 0.0
  %2138 = vmatpush1.msra.mxu0 0.0
  %2139 = vmatprep.subr.mxu0 0.0
  %2140 = vmatpush1.msra.mxu0 0.0
  %2141 = vmatprep.subr.mxu0 0.0
  %2142 = vmatpush1.msra.mxu0 0.0
  %2143 = vmatprep.mubr.f32.mxu0 0.0
  %2144 = vmatmul.mubr.f32.gmra.mrb[0].mxu0 %v2077
  %v2145 = vpop.f32.mrb[0].mxu0
  %v2146 = vadd.f32 0.0, %v2145
  %v2147 = vpop.f32.mrb[0].mxu0
  %2148 = vdwg.mxu0
  %2149 = vst.msk [vmem:[#allocation2 + $0x8] sm:$0xff] %vm316, %v2146
  %2150 = vrot.lane.b32.xlu0 %v1578, 64
  %v2151 = vpop.permute.xlu0 %2150
  %2152 = vrot.lane.b32.xlu0 %v1580, 64
  %v2153 = vpop.permute.xlu0 %2152
  %v2154 = vsel %vm316, %v2151, 0
  %v2156 = vsel %vm316, %v2153, 0
  %2158 = vmatprep.subr.mxu0 0.0
  %2159 = vmatpush1.xpose.msra.mxu0 %v2156
  %2160 = vmatprep.subr.mxu0 0.0
  %2161 = vmatpush1.xpose.msra.mxu0 0.0
  %2162 = vmatprep.subr.mxu0 0.0
  %2163 = vmatpush1.xpose.msra.mxu0 0.0
  %2164 = vmatprep.subr.mxu0 0.0
  %2165 = vmatpush1.xpose.msra.mxu0 0.0
  %2166 = vmatprep.subr.mxu0 0.0
  %2167 = vmatpush1.xpose.msra.mxu0 0.0
  %2168 = vmatprep.subr.mxu0 0.0
  %2169 = vmatpush1.xpose.msra.mxu0 0.0
  %2170 = vmatprep.subr.mxu0 0.0
  %2171 = vmatpush1.xpose.msra.mxu0 0.0
  %2172 = vmatprep.subr.mxu0 0.0
  %2173 = vmatpush1.xpose.msra.mxu0 0.0
  %2174 = vmatprep.subr.mxu0 0.0
  %2175 = vmatpush1.xpose.msra.mxu0 0.0
  %2176 = vmatprep.subr.mxu0 0.0
  %2177 = vmatpush1.xpose.msra.mxu0 0.0
  %2178 = vmatprep.subr.mxu0 0.0
  %2179 = vmatpush1.xpose.msra.mxu0 0.0
  %2180 = vmatprep.subr.mxu0 0.0
  %2181 = vmatpush1.xpose.msra.mxu0 0.0
  %2182 = vmatprep.subr.mxu0 0.0
  %2183 = vmatpush1.xpose.msra.mxu0 0.0
  %2184 = vmatprep.subr.mxu0 0.0
  %2185 = vmatpush1.xpose.msra.mxu0 0.0
  %2186 = vmatprep.subr.mxu0 0.0
  %2187 = vmatpush1.xpose.msra.mxu0 0.0
  %2188 = vmatprep.subr.mxu0 0.0
  %2189 = vmatpush1.xpose.msra.mxu0 0.0
  %2190 = vmatprep.subr.mxu0 0.0
  %2191 = vmatpush1.xpose.msra.mxu0 0.0
  %2192 = vmatprep.subr.mxu0 0.0
  %2193 = vmatpush1.xpose.msra.mxu0 0.0
  %2194 = vmatprep.subr.mxu0 0.0
  %2195 = vmatpush1.xpose.msra.mxu0 0.0
  %2196 = vmatprep.subr.mxu0 0.0
  %2197 = vmatpush1.xpose.msra.mxu0 0.0
  %2198 = vmatprep.subr.mxu0 0.0
  %2199 = vmatpush1.xpose.msra.mxu0 0.0
  %2200 = vmatprep.subr.mxu0 0.0
  %2201 = vmatpush1.xpose.msra.mxu0 0.0
  %2202 = vmatprep.subr.mxu0 0.0
  %2203 = vmatpush1.xpose.msra.mxu0 0.0
  %2204 = vmatprep.subr.mxu0 0.0
  %2205 = vmatpush1.xpose.msra.mxu0 0.0
  %2206 = vmatprep.subr.mxu0 0.0
  %2207 = vmatpush1.xpose.msra.mxu0 0.0
  %2208 = vmatprep.subr.mxu0 0.0
  %2209 = vmatpush1.xpose.msra.mxu0 0.0
  %2210 = vmatprep.subr.mxu0 0.0
  %2211 = vmatpush1.xpose.msra.mxu0 0.0
  %2212 = vmatprep.subr.mxu0 0.0
  %2213 = vmatpush1.xpose.msra.mxu0 0.0
  %2214 = vmatprep.subr.mxu0 0.0
  %2215 = vmatpush1.xpose.msra.mxu0 0.0
  %2216 = vmatprep.subr.mxu0 0.0
  %2217 = vmatpush1.xpose.msra.mxu0 0.0
  %2218 = vmatprep.subr.mxu0 0.0
  %2219 = vmatpush1.xpose.msra.mxu0 0.0
  %2220 = vmatprep.subr.mxu0 0.0
  %2221 = vmatpush1.xpose.msra.mxu0 0.0
  %2222 = vmatprep.mubr.f32.mxu0 0.0
  %2223 = vmatmul.mubr.f32.gmra.mrb[0].mxu0 %v2154
  %v2224 = vpop.f32.mrb[0].mxu0
  %v2225 = vadd.f32 0.0, %v2224
  %v2226 = vpop.f32.mrb[0].mxu0
  %2227 = vdwg.mxu0
  %v2228 = vsel %vm393, %v2225, -inf
  %2229 = vmax.xlane.f32.xlu0 %v2228
  %v2230 = vpop.xlane.xlu0 %2229
  %v2231 = vsub.f32 %v2225, %v2230
  %v2232 = vmul.f32 %v2231, 1.442695
  %v2233 = vpow.pop %v2232
  %v2234 = vsel %vm393, %v2233, 0.0
  %2235 = vadd.xlane.f32.xlu0 %v2234
  %v2236 = vpop.xlane.xlu0 %2235
  %v2237 = vrcp.pop %v2236
  %v2238 = vmul.f32 %v2233, %v2237
  %2240 = vrot.lane.b32.xlu0 %v1654, 64
  %v2241 = vpop.permute.xlu0 %2240
  %v2244 = vsel %vm393, %v2238, 0
  %2246 = vmatprep.subr.mxu0 0.0
  %2247 = vmatpush1.msra.mxu0 %v2241
  %2248 = vmatprep.subr.mxu0 0.0
  %2249 = vmatpush1.msra.mxu0 0.0
  %2250 = vmatprep.subr.mxu0 0.0
  %2251 = vmatpush1.msra.mxu0 0.0
  %2252 = vmatprep.subr.mxu0 0.0
  %2253 = vmatpush1.msra.mxu0 0.0
  %2254 = vmatprep.subr.mxu0 0.0
  %2255 = vmatpush1.msra.mxu0 0.0
  %2256 = vmatprep.subr.mxu0 0.0
  %2257 = vmatpush1.msra.mxu0 0.0
  %2258 = vmatprep.subr.mxu0 0.0
  %2259 = vmatpush1.msra.mxu0 0.0
  %2260 = vmatprep.subr.mxu0 0.0
  %2261 = vmatpush1.msra.mxu0 0.0
  %2262 = vmatprep.subr.mxu0 0.0
  %2263 = vmatpush1.msra.mxu0 0.0
  %2264 = vmatprep.subr.mxu0 0.0
  %2265 = vmatpush1.msra.mxu0 0.0
  %2266 = vmatprep.subr.mxu0 0.0
  %2267 = vmatpush1.msra.mxu0 0.0
  %2268 = vmatprep.subr.mxu0 0.0
  %2269 = vmatpush1.msra.mxu0 0.0
  %2270 = vmatprep.subr.mxu0 0.0
  %2271 = vmatpush1.msra.mxu0 0.0
  %2272 = vmatprep.subr.mxu0 0.0
  %2273 = vmatpush1.msra.mxu0 0.0
  %2274 = vmatprep.subr.mxu0 0.0
  %2275 = vmatpush1.msra.mxu0 0.0
  %2276 = vmatprep.subr.mxu0 0.0
  %2277 = vmatpush1.msra.mxu0 0.0
  %2278 = vmatprep.subr.mxu0 0.0
  %2279 = vmatpush1.msra.mxu0 0.0
  %2280 = vmatprep.subr.mxu0 0.0
  %2281 = vmatpush1.msra.mxu0 0.0
  %2282 = vmatprep.subr.mxu0 0.0
  %2283 = vmatpush1.msra.mxu0 0.0
  %2284 = vmatprep.subr.mxu0 0.0
  %2285 = vmatpush1.msra.mxu0 0.0
  %2286 = vmatprep.subr.mxu0 0.0
  %2287 = vmatpush1.msra.mxu0 0.0
  %2288 = vmatprep.subr.mxu0 0.0
  %2289 = vmatpush1.msra.mxu0 0.0
  %2290 = vmatprep.subr.mxu0 0.0
  %2291 = vmatpush1.msra.mxu0 0.0
  %2292 = vmatprep.subr.mxu0 0.0
  %2293 = vmatpush1.msra.mxu0 0.0
  %2294 = vmatprep.subr.mxu0 0.0
  %2295 = vmatpush1.msra.mxu0 0.0
  %2296 = vmatprep.subr.mxu0 0.0
  %2297 = vmatpush1.msra.mxu0 0.0
  %2298 = vmatprep.subr.mxu0 0.0
  %2299 = vmatpush1.msra.mxu0 0.0
  %2300 = vmatprep.subr.mxu0 0.0
  %2301 = vmatpush1.msra.mxu0 0.0
  %2302 = vmatprep.subr.mxu0 0.0
  %2303 = vmatpush1.msra.mxu0 0.0
  %2304 = vmatprep.subr.mxu0 0.0
  %2305 = vmatpush1.msra.mxu0 0.0
  %2306 = vmatprep.subr.mxu0 0.0
  %2307 = vmatpush1.msra.mxu0 0.0
  %2308 = vmatprep.subr.mxu0 0.0
  %2309 = vmatpush1.msra.mxu0 0.0
  %2310 = vmatprep.mubr.f32.mxu0 0.0
  %2311 = vmatmul.mubr.f32.gmra.mrb[0].mxu0 %v2244
  %v2312 = vpop.f32.mrb[0].mxu0
  %v2313 = vadd.f32 0.0, %v2312
  %v2314 = vpop.f32.mrb[0].mxu0
  %2315 = vdwg.mxu0
  %2317 = vrot.lane.b32.xlu0 %v2313, 64
  %v2318 = vpop.permute.xlu0 %2317
  %2320 = vst.msk [vmem:[#allocation2 + $0x8] sm:$0xff] %vm649, %v2318
  %v2321 = vld [vmem:[#allocation2] sm:$0xff]
  %v2322 = vld [vmem:[#allocation2 + $0x8] sm:$0xff]
  %s2323 = scalar_lea.vmem %s5, 128
  %v2324 = vld [vmem:[%s2323] sm:$0xff]
  %v2325 = vld [vmem:[%s2323 + $0x8] sm:$0xff]
  %v2326 = vld [vmem:[%s2323 + $0x10] sm:$0xff]
  %v2327 = vld [vmem:[%s2323 + $0x18] sm:$0xff]
  %v2328 = vld [vmem:[%s2323 + $0x20] sm:$0xff]
  %v2329 = vld [vmem:[%s2323 + $0x28] sm:$0xff]
  %v2330 = vld [vmem:[%s2323 + $0x30] sm:$0xff]
  %v2331 = vld [vmem:[%s2323 + $0x38] sm:$0xff]
  %v2332 = vld [vmem:[%s2323 + $0x40] sm:$0xff]
  %v2333 = vld [vmem:[%s2323 + $0x48] sm:$0xff]
  %v2334 = vld [vmem:[%s2323 + $0x50] sm:$0xff]
  %v2335 = vld [vmem:[%s2323 + $0x58] sm:$0xff]
  %v2336 = vld [vmem:[%s2323 + $0x60] sm:$0xff]
  %v2337 = vld [vmem:[%s2323 + $0x68] sm:$0xff]
  %v2338 = vld [vmem:[%s2323 + $0x70] sm:$0xff]
  %v2339 = vld [vmem:[%s2323 + $0x78] sm:$0xff]
  %s2340 = scalar_lea.vmem %s6, 1
  %v2341 = vld [vmem:[%s2340] sm:$0x1]
  %v2343 = vlaneseq
  %v2344 = vshrl.u32 %v2343, 7
  %v2345 = vsub.s32 0, %v2344
  %v2346 = vrot.slane %v2341, %v2345
  %2348 = vmatprep.subr.mxu0 0.0
  %2349 = vmatpush1.msra.mxu0 %v2324
  %2350 = vmatprep.subr.mxu0 0.0
  %2351 = vmatpush1.msra.mxu0 %v2325
  %2352 = vmatprep.subr.mxu0 0.0
  %2353 = vmatpush1.msra.mxu0 %v2326
  %2354 = vmatprep.subr.mxu0 0.0
  %2355 = vmatpush1.msra.mxu0 %v2327
  %2356 = vmatprep.subr.mxu0 0.0
  %2357 = vmatpush1.msra.mxu0 %v2328
  %2358 = vmatprep.subr.mxu0 0.0
  %2359 = vmatpush1.msra.mxu0 %v2329
  %2360 = vmatprep.subr.mxu0 0.0
  %2361 = vmatpush1.msra.mxu0 %v2330
  %2362 = vmatprep.subr.mxu0 0.0
  %2363 = vmatpush1.msra.mxu0 %v2331
  %2364 = vmatprep.subr.mxu0 0.0
  %2365 = vmatpush1.msra.mxu0 %v2332
  %2366 = vmatprep.subr.mxu0 0.0
  %2367 = vmatpush1.msra.mxu0 %v2333
  %2368 = vmatprep.subr.mxu0 0.0
  %2369 = vmatpush1.msra.mxu0 %v2334
  %2370 = vmatprep.subr.mxu0 0.0
  %2371 = vmatpush1.msra.mxu0 %v2335
  %2372 = vmatprep.subr.mxu0 0.0
  %2373 = vmatpush1.msra.mxu0 %v2336
  %2374 = vmatprep.subr.mxu0 0.0
  %2375 = vmatpush1.msra.mxu0 %v2337
  %2376 = vmatprep.subr.mxu0 0.0
  %2377 = vmatpush1.msra.mxu0 %v2338
  %2378 = vmatprep.subr.mxu0 0.0
  %2379 = vmatpush1.msra.mxu0 %v2339
  %2380 = vmatprep.subr.mxu0 0.0
  %2381 = vmatpush1.msra.mxu0 0.0
  %2382 = vmatprep.subr.mxu0 0.0
  %2383 = vmatpush1.msra.mxu0 0.0
  %2384 = vmatprep.subr.mxu0 0.0
  %2385 = vmatpush1.msra.mxu0 0.0
  %2386 = vmatprep.subr.mxu0 0.0
  %2387 = vmatpush1.msra.mxu0 0.0
  %2388 = vmatprep.subr.mxu0 0.0
  %2389 = vmatpush1.msra.mxu0 0.0
  %2390 = vmatprep.subr.mxu0 0.0
  %2391 = vmatpush1.msra.mxu0 0.0
  %2392 = vmatprep.subr.mxu0 0.0
  %2393 = vmatpush1.msra.mxu0 0.0
  %2394 = vmatprep.subr.mxu0 0.0
  %2395 = vmatpush1.msra.mxu0 0.0
  %2396 = vmatprep.subr.mxu0 0.0
  %2397 = vmatpush1.msra.mxu0 0.0
  %2398 = vmatprep.subr.mxu0 0.0
  %2399 = vmatpush1.msra.mxu0 0.0
  %2400 = vmatprep.subr.mxu0 0.0
  %2401 = vmatpush1.msra.mxu0 0.0
  %2402 = vmatprep.subr.mxu0 0.0
  %2403 = vmatpush1.msra.mxu0 0.0
  %2404 = vmatprep.subr.mxu0 0.0
  %2405 = vmatpush1.msra.mxu0 0.0
  %2406 = vmatprep.subr.mxu0 0.0
  %2407 = vmatpush1.msra.mxu0 0.0
  %2408 = vmatprep.subr.mxu0 0.0
  %2409 = vmatpush1.msra.mxu0 0.0
  %2410 = vmatprep.subr.mxu0 0.0
  %2411 = vmatpush1.msra.mxu0 0.0
  %2412 = vmatprep.mubr.f32.mxu0 0.0
  %2413 = vmatmul.mubr.f32.gmra.mrb[0].mxu0 %v2321
  %v2414 = vpop.f32.mrb[0].mxu0
  %v2415 = vadd.f32 %v2346, %v2414
  %v2416 = vpop.f32.mrb[0].mxu0
  %2417 = vmatprep.mubr.f32.mxu0 0.0
  %2418 = vmatmul.mubr.f32.gmra.mrb[0].mxu0 %v2322
  %v2419 = vpop.f32.mrb[0].mxu0
  %v2420 = vadd.f32 %v2346, %v2419
  %v2421 = vpop.f32.mrb[0].mxu0
  %2422 = vdwg.mxu0
  %v2423 = vadd.f32 %v2415, %v1436
  %v2424 = vadd.f32 %v2420, %v1437
  %s2425 = scalar_lea.vmem %s7, 1
  %v2426 = vld [vmem:[%s2425] sm:$0x1]
  %s2427 = scalar_lea.vmem %s8, 1
  %v2428 = vld [vmem:[%s2427] sm:$0x1]
  %2429 = vadd.xlane.f32.xlu0 %v2423
  %v2430 = vpop.xlane.xlu0 %2429
  %2431 = vadd.xlane.f32.xlu0 %v2424
  %v2432 = vpop.xlane.xlu0 %2431
  %v2433 = vmul.f32 %v2430, %v64
  %v2434 = vmul.f32 %v2432, %v64
  %v2435 = vsub.f32 %v2423, %v2433
  %v2436 = vsub.f32 %v2424, %v2434
  %v2437 = vmul.f32 %v2435, %v2435
  %v2438 = vmul.f32 %v2436, %v2436
  %2439 = vadd.xlane.f32.xlu0 %v2437
  %v2440 = vpop.xlane.xlu0 %2439
  %2441 = vadd.xlane.f32.xlu0 %v2438
  %v2442 = vpop.xlane.xlu0 %2441
  %v2443 = vmul.f32 %v2440, %v64
  %v2444 = vmul.f32 %v2442, %v64
  %v2445 = vadd.f32 %v2443, 1e-12
  %v2446 = vadd.f32 %v2444, 1e-12
  %v2447 = vrsqrt.pop %v2445
  %v2448 = vrsqrt.pop %v2446
  %v2449 = vmul.f32 %v2435, %v2447
  %v2450 = vmul.f32 %v2436, %v2448
  %v2452 = vlaneseq
  %v2453 = vshrl.u32 %v2452, 7
  %v2454 = vsub.s32 0, %v2453
  %v2455 = vrot.slane %v2426, %v2454
  %v2457 = vmul.f32 %v2449, %v2455
  %v2458 = vmul.f32 %v2450, %v2455
  %v2460 = vlaneseq
  %v2461 = vshrl.u32 %v2460, 7
  %v2462 = vsub.s32 0, %v2461
  %v2463 = vrot.slane %v2428, %v2462
  %v2465 = vadd.f32 %v2457, %v2463
  %v2466 = vadd.f32 %v2458, %v2463
  %s2467 = scalar_lea.vmem %s9, 256
  %v2468 = vld [vmem:[%s2467] sm:$0xff]
  %v2469 = vld [vmem:[%s2467 + $0x8] sm:$0xff]
  %v2470 = vld [vmem:[%s2467 + $0x10] sm:$0xff]
  %v2471 = vld [vmem:[%s2467 + $0x18] sm:$0xff]
  %v2472 = vld [vmem:[%s2467 + $0x20] sm:$0xff]
  %v2473 = vld [vmem:[%s2467 + $0x28] sm:$0xff]
  %v2474 = vld [vmem:[%s2467 + $0x30] sm:$0xff]
  %v2475 = vld [vmem:[%s2467 + $0x38] sm:$0xff]
  %v2476 = vld [vmem:[%s2467 + $0x40] sm:$0xff]
  %v2477 = vld [vmem:[%s2467 + $0x48] sm:$0xff]
  %v2478 = vld [vmem:[%s2467 + $0x50] sm:$0xff]
  %v2479 = vld [vmem:[%s2467 + $0x58] sm:$0xff]
  %v2480 = vld [vmem:[%s2467 + $0x60] sm:$0xff]
  %v2481 = vld [vmem:[%s2467 + $0x68] sm:$0xff]
  %v2482 = vld [vmem:[%s2467 + $0x70] sm:$0xff]
  %v2483 = vld [vmem:[%s2467 + $0x78] sm:$0xff]
  %v2484 = vld [vmem:[%s2467 + $0x80] sm:$0xff]
  %v2485 = vld [vmem:[%s2467 + $0x88] sm:$0xff]
  %v2486 = vld [vmem:[%s2467 + $0x90] sm:$0xff]
  %v2487 = vld [vmem:[%s2467 + $0x98] sm:$0xff]
  %v2488 = vld [vmem:[%s2467 + $0xa0] sm:$0xff]
  %v2489 = vld [vmem:[%s2467 + $0xa8] sm:$0xff]
  %v2490 = vld [vmem:[%s2467 + $0xb0] sm:$0xff]
  %v2491 = vld [vmem:[%s2467 + $0xb8] sm:$0xff]
  %v2492 = vld [vmem:[%s2467 + $0xc0] sm:$0xff]
  %v2493 = vld [vmem:[%s2467 + $0xc8] sm:$0xff]
  %v2494 = vld [vmem:[%s2467 + $0xd0] sm:$0xff]
  %v2495 = vld [vmem:[%s2467 + $0xd8] sm:$0xff]
  %v2496 = vld [vmem:[%s2467 + $0xe0] sm:$0xff]
  %v2497 = vld [vmem:[%s2467 + $0xe8] sm:$0xff]
  %v2498 = vld [vmem:[%s2467 + $0xf0] sm:$0xff]
  %v2499 = vld [vmem:[%s2467 + $0xf8] sm:$0xff]
  %s2500 = scalar_lea.vmem %s10, 2
  %v2501 = vld [vmem:[%s2500] sm:$0x3]
  %v2503 = vlaneseq
  %v2504 = vshrl.u32 %v2503, 7
  %v2505 = vsub.s32 0, %v2504
  %v2506 = vrot.slane %v2501, %v2505
  %v2507 = vlaneseq
  %v2508 = vshrl.u32 %v2507, 7
  %v2509 = vsub.s32 1, %v2508
  %v2510 = vrot.slane %v2501, %v2509
  %2513 = vmatprep.subr.mxu0 %v2469
  %2514 = vmatpush1.msra.mxu0 %v2468
  %2515 = vmatprep.subr.mxu0 %v2471
  %2516 = vmatpush1.msra.mxu0 %v2470
  %2517 = vmatprep.subr.mxu0 %v2473
  %2518 = vmatpush1.msra.mxu0 %v2472
  %2519 = vmatprep.subr.mxu0 %v2475
  %2520 = vmatpush1.msra.mxu0 %v2474
  %2521 = vmatprep.subr.mxu0 %v2477
  %2522 = vmatpush1.msra.mxu0 %v2476
  %2523 = vmatprep.subr.mxu0 %v2479
  %2524 = vmatpush1.msra.mxu0 %v2478
  %2525 = vmatprep.subr.mxu0 %v2481
  %2526 = vmatpush1.msra.mxu0 %v2480
  %2527 = vmatprep.subr.mxu0 %v2483
  %2528 = vmatpush1.msra.mxu0 %v2482
  %2529 = vmatprep.subr.mxu0 %v2485
  %2530 = vmatpush1.msra.mxu0 %v2484
  %2531 = vmatprep.subr.mxu0 %v2487
  %2532 = vmatpush1.msra.mxu0 %v2486
  %2533 = vmatprep.subr.mxu0 %v2489
  %2534 = vmatpush1.msra.mxu0 %v2488
  %2535 = vmatprep.subr.mxu0 %v2491
  %2536 = vmatpush1.msra.mxu0 %v2490
  %2537 = vmatprep.subr.mxu0 %v2493
  %2538 = vmatpush1.msra.mxu0 %v2492
  %2539 = vmatprep.subr.mxu0 %v2495
  %2540 = vmatpush1.msra.mxu0 %v2494
  %2541 = vmatprep.subr.mxu0 %v2497
  %2542 = vmatpush1.msra.mxu0 %v2496
  %2543 = vmatprep.subr.mxu0 %v2499
  %2544 = vmatpush1.msra.mxu0 %v2498
  %2545 = vmatprep.subr.mxu0 0.0
  %2546 = vmatpush1.msra.mxu0 0.0
  %2547 = vmatprep.subr.mxu0 0.0
  %2548 = vmatpush1.msra.mxu0 0.0
  %2549 = vmatprep.subr.mxu0 0.0
  %2550 = vmatpush1.msra.mxu0 0.0
  %2551 = vmatprep.subr.mxu0 0.0
  %2552 = vmatpush1.msra.mxu0 0.0
  %2553 = vmatprep.subr.mxu0 0.0
  %2554 = vmatpush1.msra.mxu0 0.0
  %2555 = vmatprep.subr.mxu0 0.0
  %2556 = vmatpush1.msra.mxu0 0.0
  %2557 = vmatprep.subr.mxu0 0.0
  %2558 = vmatpush1.msra.mxu0 0.0
  %2559 = vmatprep.subr.mxu0 0.0
  %2560 = vmatpush1.msra.mxu0 0.0
  %2561 = vmatprep.subr.mxu0 0.0
  %2562 = vmatpush1.msra.mxu0 0.0
  %2563 = vmatprep.subr.mxu0 0.0
  %2564 = vmatpush1.msra.mxu0 0.0
  %2565 = vmatprep.subr.mxu0 0.0
  %2566 = vmatpush1.msra.mxu0 0.0
  %2567 = vmatprep.subr.mxu0 0.0
  %2568 = vmatpush1.msra.mxu0 0.0
  %2569 = vmatprep.subr.mxu0 0.0
  %2570 = vmatpush1.msra.mxu0 0.0
  %2571 = vmatprep.subr.mxu0 0.0
  %2572 = vmatpush1.msra.mxu0 0.0
  %2573 = vmatprep.subr.mxu0 0.0
  %2574 = vmatpush1.msra.mxu0 0.0
  %2575 = vmatprep.subr.mxu0 0.0
  %2576 = vmatpush1.msra.mxu0 0.0
  %2577 = vmatprep.mubr.f32.mxu0 0.0
  %2578 = vmatmul.mubr.f32.gmra.mrb[0].mxu0 %v2465
  %v2579 = vpop.f32.mrb[0].mxu0
  %v2580 = vadd.f32 %v2506, %v2579
  %v2581 = vpop.f32.mrb[0].mxu0
  %v2582 = vadd.f32 %v2510, %v2581
  %2583 = vmatprep.mubr.f32.mxu0 0.0
  %2584 = vmatmul.mubr.f32.gmra.mrb[0].mxu0 %v2466
  %v2585 = vpop.f32.mrb[0].mxu0
  %v2586 = vadd.f32 %v2506, %v2585
  %v2587 = vpop.f32.mrb[0].mxu0
  %v2588 = vadd.f32 %v2510, %v2587
  %2589 = vdwg.mxu0
  %v2590 = vmul.f32 %v2580, 0.5
  %v2591 = vmul.f32 %v2582, 0.5
  %v2592 = vmul.f32 %v2586, 0.5
  %v2593 = vmul.f32 %v2588, 0.5
  %v2594 = vmul.f32 %v2580, 0.044715
  %v2595 = vmul.f32 %v2582, 0.044715
  %v2596 = vmul.f32 %v2586, 0.044715
  %v2597 = vmul.f32 %v2588, 0.044715
  %v2598 = vmul.f32 %v2594, %v2580
  %v2599 = vmul.f32 %v2595, %v2582
  %v2600 = vmul.f32 %v2596, %v2586
  %v2601 = vmul.f32 %v2597, %v2588
  %v2602 = vmul.f32 %v2598, %v2580
  %v2603 = vmul.f32 %v2599, %v2582
  %v2604 = vmul.f32 %v2600, %v2586
  %v2605 = vmul.f32 %v2601, %v2588
  %v2606 = vadd.f32 %v2580, %v2602
  %v2607 = vadd.f32 %v2582, %v2603
  %v2608 = vadd.f32 %v2586, %v2604
  %v2609 = vadd.f32 %v2588, %v2605
  %v2610 = vmul.f32 %v2606, 0.7978846
  %v2611 = vmul.f32 %v2607, 0.7978846
  %v2612 = vmul.f32 %v2608, 0.7978846
  %v2613 = vmul.f32 %v2609, 0.7978846
  %v2614 = vtanh.pop %v2610
  %v2615 = vtanh.pop %v2611
  %v2616 = vtanh.pop %v2612
  %v2617 = vtanh.pop %v2613
  %v2618 = vadd.f32 %v2614, 1.0
  %v2619 = vadd.f32 %v2615, 1.0
  %v2620 = vadd.f32 %v2616, 1.0
  %v2621 = vadd.f32 %v2617, 1.0
  %v2622 = vmul.f32 %v2590, %v2618
  %v2623 = vmul.f32 %v2591, %v2619
  %v2624 = vmul.f32 %v2592, %v2620
  %v2625 = vmul.f32 %v2593, %v2621
  %s2626 = scalar_lea.vmem %s11, 256
  %v2627 = vld [vmem:[%s2626] sm:$0xff]
  %v2628 = vld [vmem:[%s2626 + $0x8] sm:$0xff]
  %v2629 = vld [vmem:[%s2626 + $0x10] sm:$0xff]
  %v2630 = vld [vmem:[%s2626 + $0x18] sm:$0xff]
  %v2631 = vld [vmem:[%s2626 + $0x20] sm:$0xff]
  %v2632 = vld [vmem:[%s2626 + $0x28] sm:$0xff]
  %v2633 = vld [vmem:[%s2626 + $0x30] sm:$0xff]
  %v2634 = vld [vmem:[%s2626 + $0x38] sm:$0xff]
  %v2635 = vld [vmem:[%s2626 + $0x40] sm:$0xff]
  %v2636 = vld [vmem:[%s2626 + $0x48] sm:$0xff]
  %v2637 = vld [vmem:[%s2626 + $0x50] sm:$0xff]
  %v2638 = vld [vmem:[%s2626 + $0x58] sm:$0xff]
  %v2639 = vld [vmem:[%s2626 + $0x60] sm:$0xff]
  %v2640 = vld [vmem:[%s2626 + $0x68] sm:$0xff]
  %v2641 = vld [vmem:[%s2626 + $0x70] sm:$0xff]
  %v2642 = vld [vmem:[%s2626 + $0x78] sm:$0xff]
  %v2643 = vld [vmem:[%s2626 + $0x80] sm:$0xff]
  %v2644 = vld [vmem:[%s2626 + $0x88] sm:$0xff]
  %v2645 = vld [vmem:[%s2626 + $0x90] sm:$0xff]
  %v2646 = vld [vmem:[%s2626 + $0x98] sm:$0xff]
  %v2647 = vld [vmem:[%s2626 + $0xa0] sm:$0xff]
  %v2648 = vld [vmem:[%s2626 + $0xa8] sm:$0xff]
  %v2649 = vld [vmem:[%s2626 + $0xb0] sm:$0xff]
  %v2650 = vld [vmem:[%s2626 + $0xb8] sm:$0xff]
  %v2651 = vld [vmem:[%s2626 + $0xc0] sm:$0xff]
  %v2652 = vld [vmem:[%s2626 + $0xc8] sm:$0xff]
  %v2653 = vld [vmem:[%s2626 + $0xd0] sm:$0xff]
  %v2654 = vld [vmem:[%s2626 + $0xd8] sm:$0xff]
  %v2655 = vld [vmem:[%s2626 + $0xe0] sm:$0xff]
  %v2656 = vld [vmem:[%s2626 + $0xe8] sm:$0xff]
  %v2657 = vld [vmem:[%s2626 + $0xf0] sm:$0xff]
  %v2658 = vld [vmem:[%s2626 + $0xf8] sm:$0xff]
  %s2659 = scalar_lea.vmem %s12, 1
  %v2660 = vld [vmem:[%s2659] sm:$0x1]
  %v2662 = vlaneseq
  %v2663 = vshrl.u32 %v2662, 7
  %v2664 = vsub.s32 0, %v2663
  %v2665 = vrot.slane %v2660, %v2664
  %2667 = vmatprep.subr.mxu0 0.0
  %2668 = vmatpush1.msra.mxu0 %v2627
  %2669 = vmatprep.subr.mxu0 0.0
  %2670 = vmatpush1.msra.mxu0 %v2628
  %2671 = vmatprep.subr.mxu0 0.0
  %2672 = vmatpush1.msra.mxu0 %v2629
  %2673 = vmatprep.subr.mxu0 0.0
  %2674 = vmatpush1.msra.mxu0 %v2630
  %2675 = vmatprep.subr.mxu0 0.0
  %2676 = vmatpush1.msra.mxu0 %v2631
  %2677 = vmatprep.subr.mxu0 0.0
  %2678 = vmatpush1.msra.mxu0 %v2632
  %2679 = vmatprep.subr.mxu0 0.0
  %2680 = vmatpush1.msra.mxu0 %v2633
  %2681 = vmatprep.subr.mxu0 0.0
  %2682 = vmatpush1.msra.mxu0 %v2634
  %2683 = vmatprep.subr.mxu0 0.0
  %2684 = vmatpush1.msra.mxu0 %v2635
  %2685 = vmatprep.subr.mxu0 0.0
  %2686 = vmatpush1.msra.mxu0 %v2636
  %2687 = vmatprep.subr.mxu0 0.0
  %2688 = vmatpush1.msra.mxu0 %v2637
  %2689 = vmatprep.subr.mxu0 0.0
  %2690 = vmatpush1.msra.mxu0 %v2638
  %2691 = vmatprep.subr.mxu0 0.0
  %2692 = vmatpush1.msra.mxu0 %v2639
  %2693 = vmatprep.subr.mxu0 0.0
  %2694 = vmatpush1.msra.mxu0 %v2640
  %2695 = vmatprep.subr.mxu0 0.0
  %2696 = vmatpush1.msra.mxu0 %v2641
  %2697 = vmatprep.subr.mxu0 0.0
  %2698 = vmatpush1.msra.mxu0 %v2642
  %2699 = vmatprep.subr.mxu0 0.0
  %2700 = vmatpush1.msra.mxu0 %v2643
  %2701 = vmatprep.subr.mxu0 0.0
  %2702 = vmatpush1.msra.mxu0 %v2644
  %2703 = vmatprep.subr.mxu0 0.0
  %2704 = vmatpush1.msra.mxu0 %v2645
  %2705 = vmatprep.subr.mxu0 0.0
  %2706 = vmatpush1.msra.mxu0 %v2646
  %2707 = vmatprep.subr.mxu0 0.0
  %2708 = vmatpush1.msra.mxu0 %v2647
  %2709 = vmatprep.subr.mxu0 0.0
  %2710 = vmatpush1.msra.mxu0 %v2648
  %2711 = vmatprep.subr.mxu0 0.0
  %2712 = vmatpush1.msra.mxu0 %v2649
  %2713 = vmatprep.subr.mxu0 0.0
  %2714 = vmatpush1.msra.mxu0 %v2650
  %2715 = vmatprep.subr.mxu0 0.0
  %2716 = vmatpush1.msra.mxu0 %v2651
  %2717 = vmatprep.subr.mxu0 0.0
  %2718 = vmatpush1.msra.mxu0 %v2652
  %2719 = vmatprep.subr.mxu0 0.0
  %2720 = vmatpush1.msra.mxu0 %v2653
  %2721 = vmatprep.subr.mxu0 0.0
  %2722 = vmatpush1.msra.mxu0 %v2654
  %2723 = vmatprep.subr.mxu0 0.0
  %2724 = vmatpush1.msra.mxu0 %v2655
  %2725 = vmatprep.subr.mxu0 0.0
  %2726 = vmatpush1.msra.mxu0 %v2656
  %2727 = vmatprep.subr.mxu0 0.0
  %2728 = vmatpush1.msra.mxu0 %v2657
  %2729 = vmatprep.subr.mxu0 0.0
  %2730 = vmatpush1.msra.mxu0 %v2658
  %2731 = vmatprep.mubr.f32.mxu0 %v2623
  %2732 = vmatmul.mubr.f32.gmra.mrb[0].mxu0 %v2622
  %v2733 = vpop.f32.mrb[0].mxu0
  %v2734 = vadd.f32 %v2665, %v2733
  %v2735 = vpop.f32.mrb[0].mxu0
  %2736 = vmatprep.mubr.f32.mxu0 %v2625
  %2737 = vmatmul.mubr.f32.gmra.mrb[0].mxu0 %v2624
  %v2738 = vpop.f32.mrb[0].mxu0
  %v2739 = vadd.f32 %v2665, %v2738
  %v2740 = vpop.f32.mrb[0].mxu0
  %2741 = vdwg.mxu0
  %v2742 = vadd.f32 %v2734, %v2465
  %v2743 = vadd.f32 %v2739, %v2466
  %s2744 = scalar_lea.vmem %s13, 1
  %v2745 = vld [vmem:[%s2744] sm:$0x1]
  %s2746 = scalar_lea.vmem %s14, 1
  %v2747 = vld [vmem:[%s2746] sm:$0x1]
  %2748 = vadd.xlane.f32.xlu0 %v2742
  %v2749 = vpop.xlane.xlu0 %2748
  %2750 = vadd.xlane.f32.xlu0 %v2743
  %v2751 = vpop.xlane.xlu0 %2750
  %v2752 = vmul.f32 %v2749, %v64
  %v2753 = vmul.f32 %v2751, %v64
  %v2754 = vsub.f32 %v2742, %v2752
  %v2755 = vsub.f32 %v2743, %v2753
  %v2756 = vmul.f32 %v2754, %v2754
  %v2757 = vmul.f32 %v2755, %v2755
  %2758 = vadd.xlane.f32.xlu0 %v2756
  %v2759 = vpop.xlane.xlu0 %2758
  %2760 = vadd.xlane.f32.xlu0 %v2757
  %v2761 = vpop.xlane.xlu0 %2760
  %v2762 = vmul.f32 %v2759, %v64
  %v2763 = vmul.f32 %v2761, %v64
  %v2764 = vadd.f32 %v2762, 1e-12
  %v2765 = vadd.f32 %v2763, 1e-12
  %v2766 = vrsqrt.pop %v2764
  %v2767 = vrsqrt.pop %v2765
  %v2768 = vmul.f32 %v2754, %v2766
  %v2769 = vmul.f32 %v2755, %v2767
  %v2771 = vlaneseq
  %v2772 = vshrl.u32 %v2771, 7
  %v2773 = vsub.s32 0, %v2772
  %v2774 = vrot.slane %v2745, %v2773
  %v2776 = vmul.f32 %v2768, %v2774
  %v2777 = vmul.f32 %v2769, %v2774
  %v2779 = vlaneseq
  %v2780 = vshrl.u32 %v2779, 7
  %v2781 = vsub.s32 0, %v2780
  %v2782 = vrot.slane %v2747, %v2781
  %v2784 = vadd.f32 %v2776, %v2782
  %v2785 = vadd.f32 %v2777, %v2782
  %v2786 = vld [vmem:[%s15] sm:$0xff]
  %v2787 = vld [vmem:[%s15 + $0x8] sm:$0xff]
  %v2788 = vld [vmem:[%s15 + $0x10] sm:$0xff]
  %v2789 = vld [vmem:[%s15 + $0x18] sm:$0xff]
  %v2790 = vld [vmem:[%s15 + $0x20] sm:$0xff]
  %v2791 = vld [vmem:[%s15 + $0x28] sm:$0xff]
  %v2792 = vld [vmem:[%s15 + $0x30] sm:$0xff]
  %v2793 = vld [vmem:[%s15 + $0x38] sm:$0xff]
  %v2794 = vld [vmem:[%s15 + $0x40] sm:$0xff]
  %v2795 = vld [vmem:[%s15 + $0x48] sm:$0xff]
  %v2796 = vld [vmem:[%s15 + $0x50] sm:$0xff]
  %v2797 = vld [vmem:[%s15 + $0x58] sm:$0xff]
  %v2798 = vld [vmem:[%s15 + $0x60] sm:$0xff]
  %v2799 = vld [vmem:[%s15 + $0x68] sm:$0xff]
  %v2800 = vld [vmem:[%s15 + $0x70] sm:$0xff]
  %v2801 = vld [vmem:[%s15 + $0x78] sm:$0xff]
  %v2802 = vld [vmem:[%s16] sm:$0x1]
  %v2804 = vlaneseq
  %v2805 = vshrl.u32 %v2804, 7
  %v2806 = vsub.s32 0, %v2805
  %v2807 = vrot.slane %v2802, %v2806
  %2809 = vmatprep.subr.mxu0 0.0
  %2810 = vmatpush1.msra.mxu0 %v2786
  %2811 = vmatprep.subr.mxu0 0.0
  %2812 = vmatpush1.msra.mxu0 %v2787
  %2813 = vmatprep.subr.mxu0 0.0
  %2814 = vmatpush1.msra.mxu0 %v2788
  %2815 = vmatprep.subr.mxu0 0.0
  %2816 = vmatpush1.msra.mxu0 %v2789
  %2817 = vmatprep.subr.mxu0 0.0
  %2818 = vmatpush1.msra.mxu0 %v2790
  %2819 = vmatprep.subr.mxu0 0.0
  %2820 = vmatpush1.msra.mxu0 %v2791
  %2821 = vmatprep.subr.mxu0 0.0
  %2822 = vmatpush1.msra.mxu0 %v2792
  %2823 = vmatprep.subr.mxu0 0.0
  %2824 = vmatpush1.msra.mxu0 %v2793
  %2825 = vmatprep.subr.mxu0 0.0
  %2826 = vmatpush1.msra.mxu0 %v2794
  %2827 = vmatprep.subr.mxu0 0.0
  %2828 = vmatpush1.msra.mxu0 %v2795
  %2829 = vmatprep.subr.mxu0 0.0
  %2830 = vmatpush1.msra.mxu0 %v2796
  %2831 = vmatprep.subr.mxu0 0.0
  %2832 = vmatpush1.msra.mxu0 %v2797
  %2833 = vmatprep.subr.mxu0 0.0
  %2834 = vmatpush1.msra.mxu0 %v2798
  %2835 = vmatprep.subr.mxu0 0.0
  %2836 = vmatpush1.msra.mxu0 %v2799
  %2837 = vmatprep.subr.mxu0 0.0
  %2838 = vmatpush1.msra.mxu0 %v2800
  %2839 = vmatprep.subr.mxu0 0.0
  %2840 = vmatpush1.msra.mxu0 %v2801
  %2841 = vmatprep.subr.mxu0 0.0
  %2842 = vmatpush1.msra.mxu0 0.0
  %2843 = vmatprep.subr.mxu0 0.0
  %2844 = vmatpush1.msra.mxu0 0.0
  %2845 = vmatprep.subr.mxu0 0.0
  %2846 = vmatpush1.msra.mxu0 0.0
  %2847 = vmatprep.subr.mxu0 0.0
  %2848 = vmatpush1.msra.mxu0 0.0
  %2849 = vmatprep.subr.mxu0 0.0
  %2850 = vmatpush1.msra.mxu0 0.0
  %2851 = vmatprep.subr.mxu0 0.0
  %2852 = vmatpush1.msra.mxu0 0.0
  %2853 = vmatprep.subr.mxu0 0.0
  %2854 = vmatpush1.msra.mxu0 0.0
  %2855 = vmatprep.subr.mxu0 0.0
  %2856 = vmatpush1.msra.mxu0 0.0
  %2857 = vmatprep.subr.mxu0 0.0
  %2858 = vmatpush1.msra.mxu0 0.0
  %2859 = vmatprep.subr.mxu0 0.0
  %2860 = vmatpush1.msra.mxu0 0.0
  %2861 = vmatprep.subr.mxu0 0.0
  %2862 = vmatpush1.msra.mxu0 0.0
  %2863 = vmatprep.subr.mxu0 0.0
  %2864 = vmatpush1.msra.mxu0 0.0
  %2865 = vmatprep.subr.mxu0 0.0
  %2866 = vmatpush1.msra.mxu0 0.0
  %2867 = vmatprep.subr.mxu0 0.0
  %2868 = vmatpush1.msra.mxu0 0.0
  %2869 = vmatprep.subr.mxu0 0.0
  %2870 = vmatpush1.msra.mxu0 0.0
  %2871 = vmatprep.subr.mxu0 0.0
  %2872 = vmatpush1.msra.mxu0 0.0
  %2873 = vmatprep.mubr.f32.mxu0 0.0
  %2874 = vmatmul.mubr.f32.gmra.mrb[0].mxu0 %v2784
  %v2875 = vpop.f32.mrb[0].mxu0
  %v2876 = vadd.f32 %v2807, %v2875
  %v2877 = vpop.f32.mrb[0].mxu0
  %2878 = vmatprep.mubr.f32.mxu0 0.0
  %2879 = vmatmul.mubr.f32.gmra.mrb[0].mxu0 %v2785
  %v2880 = vpop.f32.mrb[0].mxu0
  %v2881 = vadd.f32 %v2807, %v2880
  %v2882 = vpop.f32.mrb[0].mxu0
  %2883 = vdwg.mxu0
  %v2884 = vsel %vm393, %v2876, -inf
  %2885 = vmax.xlane.f32.xlu0 %v2884
  %v2886 = vpop.xlane.xlu0 %2885
  %v2887 = vsel %vm393, %v2881, -inf
  %2888 = vmax.xlane.f32.xlu0 %v2887
  %v2889 = vpop.xlane.xlu0 %2888
  %v2890 = vlaneseq
  %v2891 = vand.u32 %v2890, 127
  %vm2892 = vcmp.eq.f32.partialorder %v2876, %v2886
  %vm2893 = vcmp.eq.f32.partialorder %v2881, %v2889
  %v2894 = vsel %vm2892, %v2891, 8
  %v2895 = vsel %vm2893, %v2891, 8
  %v2896 = vsel %vm393, %v2894, 2147483647
  %v2897 = vand.u32 %v2896, 65535
  %v2898 = vshra.s32 %v2896, 16
  %v2899 = vcvt.s32.f32 %v2897
  %v2900 = vcvt.s32.f32 %v2898
  %2901 = vmin.xlane.f32.xlu0 %v2900
  %v2902 = vpop.xlane.xlu0 %2901
  %vm2903 = vcmp.eq.f32.partialorder %v2900, %v2902
  %v2904 = vsel %vm2903, %v2899, inf
  %2905 = vmin.xlane.f32.xlu0 %v2904
  %v2906 = vpop.xlane.xlu0 %2905
  %v2907 = vcvt.f32.s32 %v2906
  %v2908 = vcvt.f32.s32 %v2902
  %v2909 = vshll.u32 %v2908, 16
  %v2910 = vadd.s32 %v2909, %v2907
  %v2911 = vsel %vm393, %v2895, 2147483647
  %v2912 = vand.u32 %v2911, 65535
  %v2913 = vshra.s32 %v2911, 16
  %v2914 = vcvt.s32.f32 %v2912
  %v2915 = vcvt.s32.f32 %v2913
  %2916 = vmin.xlane.f32.xlu0 %v2915
  %v2917 = vpop.xlane.xlu0 %2916
  %vm2918 = vcmp.eq.f32.partialorder %v2915, %v2917
  %v2919 = vsel %vm2918, %v2914, inf
  %2920 = vmin.xlane.f32.xlu0 %v2919
  %v2921 = vpop.xlane.xlu0 %2920
  %v2922 = vcvt.f32.s32 %v2921
  %v2923 = vcvt.f32.s32 %v2917
  %v2924 = vshll.u32 %v2923, 16
  %v2925 = vadd.s32 %v2924, %v2922
  %vm2926 = vcmask 7168
  %2927 = vst.msk [vmem:[%s17] sm:$0xff] %vm2926, %v2910
  %2928 = vst.msk [vmem:[%s17 + $0x8] sm:$0xff] %vm2926, %v2925
  // Predicated region
  $region70: #{bert_model_forward.1} parent=0 // pred_check
    _
  $region71: #{bert_model_forward.1} parent=0 // pred_check_branch
    %2930 = sbr.rel (0) target = $region73
  $region72: #{bert_model_forward.1} parent=0 // pred_region
    _
  $region73: #{bert_model_forward.1} parent=0 // pred_fallthru
    _
  // Predicated region
  $region74: #{bert_model_forward.1} parent=0 // pred_check
    _
  $region75: #{bert_model_forward.1} parent=0 // pred_check_branch
    %2932 = sbr.rel (0) target = $region77
  $region76: #{bert_model_forward.1} parent=0 // pred_region
    _
  $region77: #{bert_model_forward.1} parent=0 // pred_fallthru
    _

</llo_original>
